<compile_context>
chip_gen: v5e
topology: v5e:2x2
jax: 0.10.0
libtpu: 0.0.40
codegen_flags: <defaults>
</compile_context>

<pallas_src>
import functools

import jax
import jax.numpy as jnp
import numpy as np
from jax import lax
from jax.experimental import pallas as pl
from jax.experimental.pallas import tpu as pltpu

LANE = 128  # TPU lane width


def _round_up(x, m):
    return (x + m - 1) // m * m


def _fold_bn(gamma, beta, mean, var, eps, cout_p):
    """Eval-mode BN folded to per-channel scale/bias, zero-padded to cout_p."""
    scale = gamma / jnp.sqrt(var + eps)
    bias = beta - mean * scale
    pad = cout_p - scale.shape[0]
    scale = jnp.pad(scale, (0, pad)).reshape(1, cout_p).astype(jnp.float32)
    bias = jnp.pad(bias, (0, pad)).reshape(1, cout_p).astype(jnp.float32)
    return scale, bias


def _pack_conv3x3(w, cin_p, cout_p, dtype):
    """(cout, cin, 3, 3) -> (3, 3*cin_p, cout_p); rows within dy ordered (dx, cin)."""
    cout, cin, _, _ = w.shape
    w = jnp.transpose(w, (2, 3, 1, 0))                           # (3, 3, cin, cout)
    w = jnp.pad(w, ((0, 0), (0, 0), (0, cin_p - cin), (0, cout_p - cout)))
    return w.reshape(3, 3 * cin_p, cout_p).astype(dtype)


def _pack_conv1x1(w, cin_p, cout_p, dtype):
    """(cout, cin, 1, 1) -> (cin_p, cout_p)."""
    cout, cin = w.shape[0], w.shape[1]
    w = jnp.transpose(w.reshape(cout, cin), (1, 0))              # (cin, cout)
    w = jnp.pad(w, ((0, cin_p - cin), (0, cout_p - cout)))
    return w.astype(dtype)


# ----------------------------- kernel ---------------------------------------
def _conv3x3(a, w_ref, H, W, C, Cout):
    """3x3 'same' conv of one (H, W, C) tile as 3 matmuls with K = 3*C.

    Column taps are packed along the lane axis with zero-filled shifts, row
    taps are zero-filled shifts along the (cheap) leading axis.
    """
    zcol = jnp.zeros((H, 1, C), a.dtype)
    # xs[y, x] = [a[y, x-1], a[y, x], a[y, x+1]] (zero outside)  -> (H, W, 3C)
    xs = jnp.concatenate(
        [jnp.concatenate([zcol, a[:, :W - 1, :]], axis=1),
         a,
         jnp.concatenate([a[:, 1:, :], zcol], axis=1)],
        axis=-1)
    zrow = jnp.zeros((1, W, 3 * C), a.dtype)

    acc = jnp.zeros((H * W, Cout), jnp.float32)
    for dy in range(3):                       # kernel row taps (ky = dy - 1)
        if dy == 0:
            strip = jnp.concatenate([zrow, xs[:H - 1]], axis=0)   # a[y-1, ...]
        elif dy == 2:
            strip = jnp.concatenate([xs[1:], zrow], axis=0)       # a[y+1, ...]
        else:
            strip = xs                                            # a[y, ...]
        acc += jnp.dot(strip.reshape(H * W, 3 * C), w_ref[dy],
                       preferred_element_type=jnp.float32)
    return acc


def _basic_block_kernel(x_ref, w1_ref, s1_ref, b1_ref, w2_ref, s2_ref, b2_ref,
                        *rest, H, W, cin_p, cout_p, has_proj):
    """Fused conv3x3 -> BN -> ReLU -> conv3x3 -> BN -> (+shortcut) -> ReLU."""
    if has_proj:
        wsc_ref, ssc_ref, bsc_ref, out_ref = rest
    else:
        (out_ref,) = rest

    x = x_ref[0]                                         # (H, W, cin_p), bf16

    # conv1 -> bn1 -> relu (f32 accumulation / elementwise)
    h = _conv3x3(x, w1_ref, H, W, cin_p, cout_p)
    h = jnp.maximum(h * s1_ref[...] + b1_ref[...], 0.0)
    h = h.reshape(H, W, cout_p).astype(x.dtype)          # bf16 for MXU feed

    # conv2 -> bn2
    o = _conv3x3(h, w2_ref, H, W, cout_p, cout_p)
    o = o * s2_ref[...] + b2_ref[...]

    # shortcut
    xf = x.reshape(H * W, cin_p)
    if has_proj:
        sc = jnp.dot(xf, wsc_ref[...], preferred_element_type=jnp.float32)
        sc = sc * ssc_ref[...] + bsc_ref[...]
    else:
        sc = xf.astype(jnp.float32)                      # identity (cin_p == cout_p)

    out = jnp.maximum(o + sc, 0.0)
    out_ref[...] = out.reshape(1, H, W, cout_p).astype(out_ref.dtype)


# ----------------------------- wrappers --------------------------------------
def prepare_basic_block(params, in_planes, eps=1e-5, compute_dtype=jnp.bfloat16):
    """Fold BN, pad channels to a lane multiple, pack weights (do once, reuse)."""
    planes = params["conv1_w"].shape[0]
    cin_p = _round_up(in_planes, LANE)
    cout_p = _round_up(planes, LANE)
    has_proj = "sc_w" in params
    if not has_proj:
        assert cin_p == cout_p
    prep = dict(planes=planes, in_planes=in_planes, cin_p=cin_p, cout_p=cout_p,
                has_proj=has_proj, dtype=compute_dtype)
    prep["w1"] = _pack_conv3x3(params["conv1_w"], cin_p, cout_p, compute_dtype)
    prep["s1"], prep["b1"] = _fold_bn(params["bn1_g"], params["bn1_b"],
                                      params["bn1_m"], params["bn1_v"], eps, cout_p)
    prep["w2"] = _pack_conv3x3(params["conv2_w"], cout_p, cout_p, compute_dtype)
    prep["s2"], prep["b2"] = _fold_bn(params["bn2_g"], params["bn2_b"],
                                      params["bn2_m"], params["bn2_v"], eps, cout_p)
    if has_proj:
        prep["wsc"] = _pack_conv1x1(params["sc_w"], cin_p, cout_p, compute_dtype)
        prep["ssc"], prep["bsc"] = _fold_bn(params["bnsc_g"], params["bnsc_b"],
                                            params["bnsc_m"], params["bnsc_v"],
                                            eps, cout_p)
    return prep


def basic_block_apply_nhwc(x_nhwc, prep):
    """Fast path: x_nhwc is (N, H, W, cin_p), channel-padded, compute dtype.

    Returns (N, H, W, cout_p) in the same dtype (padded lanes are exactly 0),
    directly chainable into the next block with zero layout glue.
    """
    N, H, W, cin_p = x_nhwc.shape
    assert cin_p == prep["cin_p"]
    cout_p = prep["cout_p"]
    has_proj = prep["has_proj"]

    full3 = lambda n: (0, 0, 0)
    full2 = lambda n: (0, 0)
    inputs = [x_nhwc, prep["w1"], prep["s1"], prep["b1"],
              prep["w2"], prep["s2"], prep["b2"]]
    in_specs = [
        pl.BlockSpec((1, H, W, cin_p), lambda n: (n, 0, 0, 0)),
        pl.BlockSpec((3, 3 * cin_p, cout_p), full3),
        pl.BlockSpec((1, cout_p), full2),
        pl.BlockSpec((1, cout_p), full2),
        pl.BlockSpec((3, 3 * cout_p, cout_p), full3),
        pl.BlockSpec((1, cout_p), full2),
        pl.BlockSpec((1, cout_p), full2),
    ]
    if has_proj:
        inputs += [prep["wsc"], prep["ssc"], prep["bsc"]]
        in_specs += [pl.BlockSpec((cin_p, cout_p), full2),
                     pl.BlockSpec((1, cout_p), full2),
                     pl.BlockSpec((1, cout_p), full2)]

    kernel = functools.partial(_basic_block_kernel, H=H, W=W,
                               cin_p=cin_p, cout_p=cout_p, has_proj=has_proj)

    return pl.pallas_call(
        kernel,
        out_shape=jax.ShapeDtypeStruct((N, H, W, cout_p), x_nhwc.dtype),
        grid=(N,),
        in_specs=in_specs,
        out_specs=pl.BlockSpec((1, H, W, cout_p), lambda n: (n, 0, 0, 0)),
        compiler_params=pltpu.CompilerParams(
            dimension_semantics=("parallel",)),   # batch elems independent -> 2 TCs on v7x
    )(*inputs)


def basic_block_forward(x_nchw, params, stride=1, eps=1e-5):
    """NCHW wrapper matching the PyTorch module interface.

    In a chained NHWC network the transpose / channel pad below happens once at
    the network boundary, not per block (use basic_block_apply_nhwc directly).
    """
    assert stride == 1, "only stride=1 implemented"  # TODO(synk): strided conv path
    N, Cin, H, W = x_nchw.shape
    prep = prepare_basic_block(params, Cin, eps)
    x_nhwc = jnp.transpose(x_nchw, (0, 2, 3, 1))
    x_nhwc = jnp.pad(x_nhwc, ((0, 0), (0, 0), (0, 0), (0, prep["cin_p"] - Cin)))
    x_nhwc = x_nhwc.astype(prep["dtype"])
    out = basic_block_apply_nhwc(x_nhwc, prep)
    out = out[..., :prep["planes"]].astype(jnp.float32)
    return jnp.transpose(out, (0, 3, 1, 2))


# ---------------- pure-JAX reference (for correctness check) ----------------
def ref_forward(x, params, eps=1e-5):
    def conv(x, w, pad):
        return lax.conv_general_dilated(
            x, w, window_strides=(1, 1), padding=((pad, pad), (pad, pad)),
            dimension_numbers=("NCHW", "OIHW", "NCHW"))

    def bn(x, g, b, m, v):
        g, b, m, v = (a[None, :, None, None] for a in (g, b, m, v))
        return (x - m) / jnp.sqrt(v + eps) * g + b

    out = jax.nn.relu(bn(conv(x, params["conv1_w"], 1),
                         params["bn1_g"], params["bn1_b"], params["bn1_m"], params["bn1_v"]))
    out = bn(conv(out, params["conv2_w"], 1),
             params["bn2_g"], params["bn2_b"], params["bn2_m"], params["bn2_v"])
    if "sc_w" in params:
        sc = bn(conv(x, params["sc_w"], 0),
                params["bnsc_g"], params["bnsc_b"], params["bnsc_m"], params["bnsc_v"])
    else:
        sc = x
    return jax.nn.relu(out + sc)


def init_params(key, in_planes, planes, stride=1):
    ks = jax.random.split(key, 16)
    p = {}
    p["conv1_w"] = 0.1 * jax.random.normal(ks[0], (planes, in_planes, 3, 3), jnp.float32)
    p["bn1_g"] = 1.0 + 0.1 * jax.random.normal(ks[1], (planes,), jnp.float32)
    p["bn1_b"] = 0.1 * jax.random.normal(ks[2], (planes,), jnp.float32)
    p["bn1_m"] = 0.1 * jax.random.normal(ks[3], (planes,), jnp.float32)
    p["bn1_v"] = 0.5 + jax.random.uniform(ks[4], (planes,), jnp.float32)
    p["conv2_w"] = 0.1 * jax.random.normal(ks[5], (planes, planes, 3, 3), jnp.float32)
    p["bn2_g"] = 1.0 + 0.1 * jax.random.normal(ks[6], (planes,), jnp.float32)
    p["bn2_b"] = 0.1 * jax.random.normal(ks[7], (planes,), jnp.float32)
    p["bn2_m"] = 0.1 * jax.random.normal(ks[8], (planes,), jnp.float32)
    p["bn2_v"] = 0.5 + jax.random.uniform(ks[9], (planes,), jnp.float32)
    if stride != 1 or in_planes != planes:
        p["sc_w"] = 0.1 * jax.random.normal(ks[10], (planes, in_planes, 1, 1), jnp.float32)
        p["bnsc_g"] = 1.0 + 0.1 * jax.random.normal(ks[11], (planes,), jnp.float32)
        p["bnsc_b"] = 0.1 * jax.random.normal(ks[12], (planes,), jnp.float32)
        p["bnsc_m"] = 0.1 * jax.random.normal(ks[13], (planes,), jnp.float32)
        p["bnsc_v"] = 0.5 + jax.random.uniform(ks[14], (planes,), jnp.float32)
    return p


if __name__ == "__main__":
    N, Cin, H, W = 2, 4, 16, 16
    x = jax.random.normal(jax.random.PRNGKey(0), (N, Cin, H, W), jnp.float32)

    # bf16 activations/weights with f32 accumulation -> slightly looser tolerance.
    TOL = 5e-2

    # Case 1: identity shortcut (in_planes == planes, stride=1)
    p_id = init_params(jax.random.PRNGKey(1), Cin, 4)
    y_id = jax.block_until_ready(basic_block_forward(x, p_id))
    r_id = ref_forward(x, p_id)
    assert y_id.shape == (N, 4, H, W)
    np.testing.assert_allclose(np.asarray(y_id), np.asarray(r_id), rtol=TOL, atol=TOL)

    # Case 2: projection shortcut (in_planes != planes -> 1x1 conv + BN)
    p_pr = init_params(jax.random.PRNGKey(2), Cin, 8)
    y_pr = jax.block_until_ready(basic_block_forward(x, p_pr))
    r_pr = ref_forward(x, p_pr)
    assert y_pr.shape == (N, 8, H, W)
    np.testing.assert_allclose(np.asarray(y_pr), np.asarray(r_pr), rtol=TOL, atol=TOL)

    print("KERNEL_OK")
</pallas_src>

<mosaic_0001>
module attributes {stable_mosaic.version = 11 : i64} {
  func.func @_basic_block_kernel(%arg0: i32, %arg1: memref<1x16x16x128xbf16, #tpu.memory_space<vmem>>, %arg2: memref<3x384x128xbf16, #tpu.memory_space<vmem>>, %arg3: memref<1x128xf32, #tpu.memory_space<vmem>>, %arg4: memref<1x128xf32, #tpu.memory_space<vmem>>, %arg5: memref<3x384x128xbf16, #tpu.memory_space<vmem>>, %arg6: memref<1x128xf32, #tpu.memory_space<vmem>>, %arg7: memref<1x128xf32, #tpu.memory_space<vmem>>, %arg8: memref<1x16x16x128xbf16, #tpu.memory_space<vmem>>) attributes {dimension_semantics = [#tpu.dimension_semantics<parallel>], iteration_bounds = array<i64: 2>, scalar_prefetch = 0 : i64, scratch_operands = 0 : i64, tpu.core_type = #tpu.core_type<tc>, window_params = [{transform_indices = @transform_0, window_bounds = array<i64: 1, 16, 16, 128>}, {pipeline_mode = #tpu.pipeline_mode<synchronous>, transform_indices = @transform_1, window_bounds = array<i64: 3, 384, 128>}, {pipeline_mode = #tpu.pipeline_mode<synchronous>, transform_indices = @transform_2, window_bounds = array<i64: 1, 128>}, {pipeline_mode = #tpu.pipeline_mode<synchronous>, transform_indices = @transform_3, window_bounds = array<i64: 1, 128>}, {pipeline_mode = #tpu.pipeline_mode<synchronous>, transform_indices = @transform_4, window_bounds = array<i64: 3, 384, 128>}, {pipeline_mode = #tpu.pipeline_mode<synchronous>, transform_indices = @transform_5, window_bounds = array<i64: 1, 128>}, {pipeline_mode = #tpu.pipeline_mode<synchronous>, transform_indices = @transform_6, window_bounds = array<i64: 1, 128>}, {transform_indices = @transform_7, window_bounds = array<i64: 1, 16, 16, 128>}]} {
    %c0 = arith.constant 0 : index
    %c0_0 = arith.constant 0 : index
    %c0_1 = arith.constant 0 : index
    %c0_2 = arith.constant 0 : index
    %0 = vector.load %arg1[%c0, %c0_0, %c0_1, %c0_2] : memref<1x16x16x128xbf16, #tpu.memory_space<vmem>>, vector<1x16x16x128xbf16>
    %1 = vector.shape_cast %0 : vector<1x16x16x128xbf16> to vector<16x16x128xbf16>
    %cst = arith.constant 0.000000e+00 : bf16
    %2 = vector.broadcast %cst : bf16 to vector<16x1x128xbf16>
    %3 = vector.extract_strided_slice %1 {offsets = [0, 0, 0], sizes = [16, 15, 128], strides = [1, 1, 1]} : vector<16x16x128xbf16> to vector<16x15x128xbf16>
    %4 = tpu.concatenate %2, %3 in 1 : vector<16x1x128xbf16>, vector<16x15x128xbf16> -> vector<16x16x128xbf16>
    %5 = vector.extract_strided_slice %1 {offsets = [0, 1, 0], sizes = [16, 15, 128], strides = [1, 1, 1]} : vector<16x16x128xbf16> to vector<16x15x128xbf16>
    %6 = tpu.concatenate %5, %2 in 1 : vector<16x15x128xbf16>, vector<16x1x128xbf16> -> vector<16x16x128xbf16>
    %7 = tpu.concatenate %4, %1, %6 in 2 : vector<16x16x128xbf16>, vector<16x16x128xbf16>, vector<16x16x128xbf16> -> vector<16x16x384xbf16>
    %cst_3 = arith.constant 0.000000e+00 : bf16
    %8 = vector.broadcast %cst_3 : bf16 to vector<1x16x384xbf16>
    %cst_4 = arith.constant 0.000000e+00 : f32
    %9 = vector.broadcast %cst_4 : f32 to vector<256x128xf32>
    %10 = vector.extract_strided_slice %7 {offsets = [0, 0, 0], sizes = [15, 16, 384], strides = [1, 1, 1]} : vector<16x16x384xbf16> to vector<15x16x384xbf16>
    %11 = tpu.concatenate %8, %10 in 0 : vector<1x16x384xbf16>, vector<15x16x384xbf16> -> vector<16x16x384xbf16>
    %12 = vector.shape_cast %11 : vector<16x16x384xbf16> to vector<256x384xbf16>
    %c0_5 = arith.constant 0 : index
    %c0_6 = arith.constant 0 : index
    %c0_7 = arith.constant 0 : index
    %13 = vector.load %arg2[%c0_5, %c0_6, %c0_7] : memref<3x384x128xbf16, #tpu.memory_space<vmem>>, vector<1x384x128xbf16>
    %14 = vector.shape_cast %13 : vector<1x384x128xbf16> to vector<384x128xbf16>
    %cst_8 = arith.constant dense<0.000000e+00> : vector<256x128xf32>
    %15 = tpu.matmul %12, %14, %cst_8 {dimension_numbers = #tpu.dot_dimension_numbers<[1], [0], [0], [1], [0, 0, 1, 1], [], []>} : vector<256x384xbf16>, vector<384x128xbf16>, vector<256x128xf32> -> vector<256x128xf32>
    %16 = arith.addf %9, %15 : vector<256x128xf32>
    %17 = vector.shape_cast %7 : vector<16x16x384xbf16> to vector<256x384xbf16>
    %c1 = arith.constant 1 : index
    %c0_9 = arith.constant 0 : index
    %c0_10 = arith.constant 0 : index
    %18 = vector.load %arg2[%c1, %c0_9, %c0_10] : memref<3x384x128xbf16, #tpu.memory_space<vmem>>, vector<1x384x128xbf16>
    %19 = vector.shape_cast %18 : vector<1x384x128xbf16> to vector<384x128xbf16>
    %cst_11 = arith.constant dense<0.000000e+00> : vector<256x128xf32>
    %20 = tpu.matmul %17, %19, %cst_11 {dimension_numbers = #tpu.dot_dimension_numbers<[1], [0], [0], [1], [0, 0, 1, 1], [], []>} : vector<256x384xbf16>, vector<384x128xbf16>, vector<256x128xf32> -> vector<256x128xf32>
    %21 = arith.addf %16, %20 : vector<256x128xf32>
    %22 = vector.extract_strided_slice %7 {offsets = [1, 0, 0], sizes = [15, 16, 384], strides = [1, 1, 1]} : vector<16x16x384xbf16> to vector<15x16x384xbf16>
    %23 = tpu.concatenate %22, %8 in 0 : vector<15x16x384xbf16>, vector<1x16x384xbf16> -> vector<16x16x384xbf16>
    %24 = vector.shape_cast %23 : vector<16x16x384xbf16> to vector<256x384xbf16>
    %c2 = arith.constant 2 : index
    %c0_12 = arith.constant 0 : index
    %c0_13 = arith.constant 0 : index
    %25 = vector.load %arg2[%c2, %c0_12, %c0_13] : memref<3x384x128xbf16, #tpu.memory_space<vmem>>, vector<1x384x128xbf16>
    %26 = vector.shape_cast %25 : vector<1x384x128xbf16> to vector<384x128xbf16>
    %cst_14 = arith.constant dense<0.000000e+00> : vector<256x128xf32>
    %27 = tpu.matmul %24, %26, %cst_14 {dimension_numbers = #tpu.dot_dimension_numbers<[1], [0], [0], [1], [0, 0, 1, 1], [], []>} : vector<256x384xbf16>, vector<384x128xbf16>, vector<256x128xf32> -> vector<256x128xf32>
    %28 = arith.addf %21, %27 : vector<256x128xf32>
    %c0_15 = arith.constant 0 : index
    %c0_16 = arith.constant 0 : index
    %29 = vector.load %arg3[%c0_15, %c0_16] : memref<1x128xf32, #tpu.memory_space<vmem>>, vector<1x128xf32>
    %30 = vector.broadcast %29 : vector<1x128xf32> to vector<256x128xf32>
    %31 = arith.mulf %28, %30 : vector<256x128xf32>
    %c0_17 = arith.constant 0 : index
    %c0_18 = arith.constant 0 : index
    %32 = vector.load %arg4[%c0_17, %c0_18] : memref<1x128xf32, #tpu.memory_space<vmem>>, vector<1x128xf32>
    %33 = vector.broadcast %32 : vector<1x128xf32> to vector<256x128xf32>
    %34 = arith.addf %31, %33 : vector<256x128xf32>
    %cst_19 = arith.constant 0.000000e+00 : f32
    %35 = vector.broadcast %cst_19 : f32 to vector<256x128xf32>
    %36 = arith.maximumf %34, %35 : vector<256x128xf32>
    %37 = vector.shape_cast %36 : vector<256x128xf32> to vector<16x16x128xf32>
    %38 = arith.truncf %37 : vector<16x16x128xf32> to vector<16x16x128xbf16>
    %cst_20 = arith.constant 0.000000e+00 : bf16
    %39 = vector.broadcast %cst_20 : bf16 to vector<16x1x128xbf16>
    %40 = vector.extract_strided_slice %38 {offsets = [0, 0, 0], sizes = [16, 15, 128], strides = [1, 1, 1]} : vector<16x16x128xbf16> to vector<16x15x128xbf16>
    %41 = tpu.concatenate %39, %40 in 1 : vector<16x1x128xbf16>, vector<16x15x128xbf16> -> vector<16x16x128xbf16>
    %42 = vector.extract_strided_slice %38 {offsets = [0, 1, 0], sizes = [16, 15, 128], strides = [1, 1, 1]} : vector<16x16x128xbf16> to vector<16x15x128xbf16>
    %43 = tpu.concatenate %42, %39 in 1 : vector<16x15x128xbf16>, vector<16x1x128xbf16> -> vector<16x16x128xbf16>
    %44 = tpu.concatenate %41, %38, %43 in 2 : vector<16x16x128xbf16>, vector<16x16x128xbf16>, vector<16x16x128xbf16> -> vector<16x16x384xbf16>
    %cst_21 = arith.constant 0.000000e+00 : bf16
    %45 = vector.broadcast %cst_21 : bf16 to vector<1x16x384xbf16>
    %cst_22 = arith.constant 0.000000e+00 : f32
    %46 = vector.broadcast %cst_22 : f32 to vector<256x128xf32>
    %47 = vector.extract_strided_slice %44 {offsets = [0, 0, 0], sizes = [15, 16, 384], strides = [1, 1, 1]} : vector<16x16x384xbf16> to vector<15x16x384xbf16>
    %48 = tpu.concatenate %45, %47 in 0 : vector<1x16x384xbf16>, vector<15x16x384xbf16> -> vector<16x16x384xbf16>
    %49 = vector.shape_cast %48 : vector<16x16x384xbf16> to vector<256x384xbf16>
    %c0_23 = arith.constant 0 : index
    %c0_24 = arith.constant 0 : index
    %c0_25 = arith.constant 0 : index
    %50 = vector.load %arg5[%c0_23, %c0_24, %c0_25] : memref<3x384x128xbf16, #tpu.memory_space<vmem>>, vector<1x384x128xbf16>
    %51 = vector.shape_cast %50 : vector<1x384x128xbf16> to vector<384x128xbf16>
    %cst_26 = arith.constant dense<0.000000e+00> : vector<256x128xf32>
    %52 = tpu.matmul %49, %51, %cst_26 {dimension_numbers = #tpu.dot_dimension_numbers<[1], [0], [0], [1], [0, 0, 1, 1], [], []>} : vector<256x384xbf16>, vector<384x128xbf16>, vector<256x128xf32> -> vector<256x128xf32>
    %53 = arith.addf %46, %52 : vector<256x128xf32>
    %54 = vector.shape_cast %44 : vector<16x16x384xbf16> to vector<256x384xbf16>
    %c1_27 = arith.constant 1 : index
    %c0_28 = arith.constant 0 : index
    %c0_29 = arith.constant 0 : index
    %55 = vector.load %arg5[%c1_27, %c0_28, %c0_29] : memref<3x384x128xbf16, #tpu.memory_space<vmem>>, vector<1x384x128xbf16>
    %56 = vector.shape_cast %55 : vector<1x384x128xbf16> to vector<384x128xbf16>
    %cst_30 = arith.constant dense<0.000000e+00> : vector<256x128xf32>
    %57 = tpu.matmul %54, %56, %cst_30 {dimension_numbers = #tpu.dot_dimension_numbers<[1], [0], [0], [1], [0, 0, 1, 1], [], []>} : vector<256x384xbf16>, vector<384x128xbf16>, vector<256x128xf32> -> vector<256x128xf32>
    %58 = arith.addf %53, %57 : vector<256x128xf32>
    %59 = vector.extract_strided_slice %44 {offsets = [1, 0, 0], sizes = [15, 16, 384], strides = [1, 1, 1]} : vector<16x16x384xbf16> to vector<15x16x384xbf16>
    %60 = tpu.concatenate %59, %45 in 0 : vector<15x16x384xbf16>, vector<1x16x384xbf16> -> vector<16x16x384xbf16>
    %61 = vector.shape_cast %60 : vector<16x16x384xbf16> to vector<256x384xbf16>
    %c2_31 = arith.constant 2 : index
    %c0_32 = arith.constant 0 : index
    %c0_33 = arith.constant 0 : index
    %62 = vector.load %arg5[%c2_31, %c0_32, %c0_33] : memref<3x384x128xbf16, #tpu.memory_space<vmem>>, vector<1x384x128xbf16>
    %63 = vector.shape_cast %62 : vector<1x384x128xbf16> to vector<384x128xbf16>
    %cst_34 = arith.constant dense<0.000000e+00> : vector<256x128xf32>
    %64 = tpu.matmul %61, %63, %cst_34 {dimension_numbers = #tpu.dot_dimension_numbers<[1], [0], [0], [1], [0, 0, 1, 1], [], []>} : vector<256x384xbf16>, vector<384x128xbf16>, vector<256x128xf32> -> vector<256x128xf32>
    %65 = arith.addf %58, %64 : vector<256x128xf32>
    %c0_35 = arith.constant 0 : index
    %c0_36 = arith.constant 0 : index
    %66 = vector.load %arg6[%c0_35, %c0_36] : memref<1x128xf32, #tpu.memory_space<vmem>>, vector<1x128xf32>
    %67 = vector.broadcast %66 : vector<1x128xf32> to vector<256x128xf32>
    %68 = arith.mulf %65, %67 : vector<256x128xf32>
    %c0_37 = arith.constant 0 : index
    %c0_38 = arith.constant 0 : index
    %69 = vector.load %arg7[%c0_37, %c0_38] : memref<1x128xf32, #tpu.memory_space<vmem>>, vector<1x128xf32>
    %70 = vector.broadcast %69 : vector<1x128xf32> to vector<256x128xf32>
    %71 = arith.addf %68, %70 : vector<256x128xf32>
    %72 = vector.shape_cast %1 : vector<16x16x128xbf16> to vector<256x128xbf16>
    %73 = arith.extf %72 : vector<256x128xbf16> to vector<256x128xf32>
    %74 = arith.addf %71, %73 : vector<256x128xf32>
    %cst_39 = arith.constant 0.000000e+00 : f32
    %75 = vector.broadcast %cst_39 : f32 to vector<256x128xf32>
    %76 = arith.maximumf %74, %75 : vector<256x128xf32>
    %77 = vector.shape_cast %76 : vector<256x128xf32> to vector<1x16x16x128xf32>
    %78 = arith.truncf %77 : vector<1x16x16x128xf32> to vector<1x16x16x128xbf16>
    %c0_40 = arith.constant 0 : index
    %c0_41 = arith.constant 0 : index
    %c0_42 = arith.constant 0 : index
    %c0_43 = arith.constant 0 : index
    %79 = vector.load %arg8[%c0_40, %c0_41, %c0_42, %c0_43] : memref<1x16x16x128xbf16, #tpu.memory_space<vmem>>, vector<1x16x16x128xbf16>
    tpu.vector_store %arg8[%c0_40, %c0_41, %c0_42, %c0_43], %78 {strides = array<i32>} : memref<1x16x16x128xbf16, #tpu.memory_space<vmem>>, vector<1x16x16x128xbf16>,
    return
  }
  func.func @transform_0(%arg0: i32) -> (i32, i32, i32, i32) {
    %c0_i32 = arith.constant 0 : i32
    %c0_i32_0 = arith.constant 0 : i32
    %c0_i32_1 = arith.constant 0 : i32
    %c0_i32_2 = arith.constant 0 : i32
    return %arg0, %c0_i32, %c0_i32_0, %c0_i32_1 : i32, i32, i32, i32
  }
  func.func @transform_1(%arg0: i32) -> (i32, i32, i32) {
    %c0_i32 = arith.constant 0 : i32
    %c0_i32_0 = arith.constant 0 : i32
    %c0_i32_1 = arith.constant 0 : i32
    %c0_i32_2 = arith.constant 0 : i32
    return %c0_i32, %c0_i32_0, %c0_i32_1 : i32, i32, i32
  }
  func.func @transform_2(%arg0: i32) -> (i32, i32) {
    %c0_i32 = arith.constant 0 : i32
    %c0_i32_0 = arith.constant 0 : i32
    %c0_i32_1 = arith.constant 0 : i32
    return %c0_i32, %c0_i32_0 : i32, i32
  }
  func.func @transform_3(%arg0: i32) -> (i32, i32) {
    %c0_i32 = arith.constant 0 : i32
    %c0_i32_0 = arith.constant 0 : i32
    %c0_i32_1 = arith.constant 0 : i32
    return %c0_i32, %c0_i32_0 : i32, i32
  }
  func.func @transform_4(%arg0: i32) -> (i32, i32, i32) {
    %c0_i32 = arith.constant 0 : i32
    %c0_i32_0 = arith.constant 0 : i32
    %c0_i32_1 = arith.constant 0 : i32
    %c0_i32_2 = arith.constant 0 : i32
    return %c0_i32, %c0_i32_0, %c0_i32_1 : i32, i32, i32
  }
  func.func @transform_5(%arg0: i32) -> (i32, i32) {
    %c0_i32 = arith.constant 0 : i32
    %c0_i32_0 = arith.constant 0 : i32
    %c0_i32_1 = arith.constant 0 : i32
    return %c0_i32, %c0_i32_0 : i32, i32
  }
  func.func @transform_6(%arg0: i32) -> (i32, i32) {
    %c0_i32 = arith.constant 0 : i32
    %c0_i32_0 = arith.constant 0 : i32
    %c0_i32_1 = arith.constant 0 : i32
    return %c0_i32, %c0_i32_0 : i32, i32
  }
  func.func @transform_7(%arg0: i32) -> (i32, i32, i32, i32) {
    %c0_i32 = arith.constant 0 : i32
    %c0_i32_0 = arith.constant 0 : i32
    %c0_i32_1 = arith.constant 0 : i32
    %c0_i32_2 = arith.constant 0 : i32
    return %arg0, %c0_i32, %c0_i32_0, %c0_i32_1 : i32, i32, i32, i32
  }
}

</mosaic_0001>

<llo_original>
// kernel: tpu_custom_call.1
$region0: #{tpu_custom_call.1}
  #allocation0 [shape = 'u32[]', space=smem, size = 0x4, offset = 0x4, fixed_abs, tag = 'smem constant byte address 0x4 - core index']
  #allocation1 [shape = 'u32[72,128]{1,0:T(1,128)}', space=vmem, size = 0x9000, scoped, tag = 'internal scratch']
  %s0 = inlined_call_operand.hbm [shape: bf16[2,16,16,128], index: 0, kind: input, shape index: {}]
  %s1 = inlined_call_operand.hbm [shape: bf16[3,384,128], index: 1, kind: input, shape index: {}]
  %s2 = inlined_call_operand.vmem [shape: f32[1,128], index: 2, kind: input, shape index: {}]
  %s3 = inlined_call_operand.vmem [shape: f32[1,128], index: 3, kind: input, shape index: {}]
  %s4 = inlined_call_operand.hbm [shape: bf16[3,384,128], index: 4, kind: input, shape index: {}]
  %s5 = inlined_call_operand.vmem [shape: f32[1,128], index: 5, kind: input, shape index: {}]
  %s6 = inlined_call_operand.vmem [shape: f32[1,128], index: 6, kind: input, shape index: {}]
  %s7 = inlined_call_operand.hbm [shape: bf16[2,16,16,128], index: 7, kind: output, shape index: {}]
  %s8 = sld [smem:[#allocation0]]
  $region73: #{tpu_custom_call.1} parent=0
    _
  %s10 = ssub.s32 1, %s8
  %s11 = scalar_select 0, %s10, %s8
  $region1: #{tpu_custom_call.1} parent=0
    #allocation2 [shape = 'u8[131072]{0}', space=vmem, size = 0x20000, scoped, tag = 'input window, operand 0']
    #allocation3 [shape = 's32[2]{0}', space=sflag, size = 0x8, scoped, tag = 'scoped memory for tpu_custom_call.1']
    #allocation4 [shape = 's32[2]{0}', space=sflag, size = 0x8, scoped, tag = 'scoped memory for tpu_custom_call.1']
    #allocation5 [shape = 'u8[294912]{0}', space=vmem, size = 0x48000, scoped, tag = 'input window, operand 1, single buffered']
    #allocation6 [shape = 's32[1]{0}', space=sflag, size = 0x4, scoped, tag = 'scoped memory for tpu_custom_call.1']
    #allocation7 [shape = 'u8[294912]{0}', space=vmem, size = 0x48000, scoped, tag = 'input window, operand 4, single buffered']
    #allocation8 [shape = 'u8[131072]{0}', space=vmem, size = 0x20000, scoped, tag = 'output window, operand 0']
    %12 = vsyncpa [#allocation3], 0
    %s13 = scalar_lea.sflag [#allocation3], 1
    %14 = vsyncpa %s13, 0
    %15 = vsyncpa [#allocation6], 0
    %16 = vsyncpa [#allocation4], 0
    %s17 = scalar_lea.sflag [#allocation4], 1
    %18 = vsyncpa %s17, 0
    loop: start=0, step=1, limit=4
    $region2: #{tpu_custom_call.1} parent=1 // loop_pre_header
      _
    $region3: #{tpu_custom_call.1} parent=1 // loop_header
      %s20 = sphi 0, %s24
      %p21 = scmp.ge.s32.totalorder %s20, 4
      %s30 = sphi 0, %s32
      %s33 = sphi 0, %s30
      %s34 = sphi 0, %s33
      %s50 = sphi 0, %s34
      %s54 = sphi 0, %s54
      %s56 = sphi 0, %s54
      %s57 = sphi 0, %s56
      %s71 = sphi 0, %s57
      %s75 = sphi 0, %s75
      %s77 = sphi 0, %s75
      %s78 = sphi 0, %s77
      %s92 = sphi 0, %s78
      %s96 = sphi 0, %s96
      %s98 = sphi 0, %s96
      %s99 = sphi 0, %s98
      %s113 = sphi 0, %s99
      %s117 = sphi 0, %s117
      %s119 = sphi 0, %s117
      %s120 = sphi 0, %s119
      %s134 = sphi 0, %s120
      %s138 = sphi 0, %s138
      %s140 = sphi 0, %s138
      %s141 = sphi 0, %s140
      %s155 = sphi 0, %s141
      %s159 = sphi 0, %s159
      %s161 = sphi 0, %s159
      %s162 = sphi 0, %s161
      %s176 = sphi 0, %s162
      %s182 = sphi 0, %s184
      %s185 = sphi 0, %s182
      %s186 = sphi 0, %s185
      %s202 = sphi 0, %s186
    $region4: #{tpu_custom_call.1} parent=1 // loop_header_branch
      %23 = sbr.rel (%p21) target = $region8
    $region5: #{tpu_custom_call.1} parent=1 // loop_body
      %s25 = ssub.s32 %s20, 1
      %s26 = ssub.s32 %s20, 2
      %s27 = sadd.s32 %s20, 1
      %s28 = ssub.s32 %s20, %s27
      %p29 = scmp.eq.s32.totalorder %s28, 0
      %s31 = sadd.s32 %s30, 1
      %s32 = scalar_select %p29, %s30, %s31
      %p35 = pneg %p29
      %p36 = scmp.eq.s32.totalorder %s20, 1
      %p37 = por %p35, %p36
      %p38 = scmp.ne.s32.totalorder %s30, %s33
      %p39 = scmp.eq.s32.totalorder %s20, 0
      %p40 = por %p38, %p39
      %p41 = scmp.ne.s32.totalorder %s30, %s33
      %p42 = scmp.eq.s32.totalorder %s25, 1
      %p43 = por %p41, %p42
      %p44 = scmp.ne.s32.totalorder %s33, %s34
      %p45 = scmp.eq.s32.totalorder %s25, 0
      %p46 = por %p44, %p45
      %p47 = scmp.ne.s32.totalorder %s33, %s34
      %p48 = scmp.eq.s32.totalorder %s26, 1
      %p49 = por %p47, %p48
      %p51 = scmp.ne.s32.totalorder %s34, %s50
      %p52 = scmp.eq.s32.totalorder %s26, 0
      %p53 = por %p51, %p52
      %s55 = sadd.s32 %s54, 1
      %p58 = scmp.eq.s32.totalorder %s20, 1
      %p59 = scmp.ne.s32.totalorder %s54, %s56
      %p60 = scmp.eq.s32.totalorder %s20, 0
      %p61 = por %p59, %p60
      %p62 = scmp.ne.s32.totalorder %s54, %s56
      %p63 = scmp.eq.s32.totalorder %s25, 1
      %p64 = por %p62, %p63
      %p65 = scmp.ne.s32.totalorder %s56, %s57
      %p66 = scmp.eq.s32.totalorder %s25, 0
      %p67 = por %p65, %p66
      %p68 = scmp.ne.s32.totalorder %s56, %s57
      %p69 = scmp.eq.s32.totalorder %s26, 1
      %p70 = por %p68, %p69
      %p72 = scmp.ne.s32.totalorder %s57, %s71
      %p73 = scmp.eq.s32.totalorder %s26, 0
      %p74 = por %p72, %p73
      %s76 = sadd.s32 %s75, 1
      %p79 = scmp.eq.s32.totalorder %s20, 1
      %p80 = scmp.ne.s32.totalorder %s75, %s77
      %p81 = scmp.eq.s32.totalorder %s20, 0
      %p82 = por %p80, %p81
      %p83 = scmp.ne.s32.totalorder %s75, %s77
      %p84 = scmp.eq.s32.totalorder %s25, 1
      %p85 = por %p83, %p84
      %p86 = scmp.ne.s32.totalorder %s77, %s78
      %p87 = scmp.eq.s32.totalorder %s25, 0
      %p88 = por %p86, %p87
      %p89 = scmp.ne.s32.totalorder %s77, %s78
      %p90 = scmp.eq.s32.totalorder %s26, 1
      %p91 = por %p89, %p90
      %p93 = scmp.ne.s32.totalorder %s78, %s92
      %p94 = scmp.eq.s32.totalorder %s26, 0
      %p95 = por %p93, %p94
      %s97 = sadd.s32 %s96, 1
      %p100 = scmp.eq.s32.totalorder %s20, 1
      %p101 = scmp.ne.s32.totalorder %s96, %s98
      %p102 = scmp.eq.s32.totalorder %s20, 0
      %p103 = por %p101, %p102
      %p104 = scmp.ne.s32.totalorder %s96, %s98
      %p105 = scmp.eq.s32.totalorder %s25, 1
      %p106 = por %p104, %p105
      %p107 = scmp.ne.s32.totalorder %s98, %s99
      %p108 = scmp.eq.s32.totalorder %s25, 0
      %p109 = por %p107, %p108
      %p110 = scmp.ne.s32.totalorder %s98, %s99
      %p111 = scmp.eq.s32.totalorder %s26, 1
      %p112 = por %p110, %p111
      %p114 = scmp.ne.s32.totalorder %s99, %s113
      %p115 = scmp.eq.s32.totalorder %s26, 0
      %p116 = por %p114, %p115
      %s118 = sadd.s32 %s117, 1
      %p121 = scmp.eq.s32.totalorder %s20, 1
      %p122 = scmp.ne.s32.totalorder %s117, %s119
      %p123 = scmp.eq.s32.totalorder %s20, 0
      %p124 = por %p122, %p123
      %p125 = scmp.ne.s32.totalorder %s117, %s119
      %p126 = scmp.eq.s32.totalorder %s25, 1
      %p127 = por %p125, %p126
      %p128 = scmp.ne.s32.totalorder %s119, %s120
      %p129 = scmp.eq.s32.totalorder %s25, 0
      %p130 = por %p128, %p129
      %p131 = scmp.ne.s32.totalorder %s119, %s120
      %p132 = scmp.eq.s32.totalorder %s26, 1
      %p133 = por %p131, %p132
      %p135 = scmp.ne.s32.totalorder %s120, %s134
      %p136 = scmp.eq.s32.totalorder %s26, 0
      %p137 = por %p135, %p136
      %s139 = sadd.s32 %s138, 1
      %p142 = scmp.eq.s32.totalorder %s20, 1
      %p143 = scmp.ne.s32.totalorder %s138, %s140
      %p144 = scmp.eq.s32.totalorder %s20, 0
      %p145 = por %p143, %p144
      %p146 = scmp.ne.s32.totalorder %s138, %s140
      %p147 = scmp.eq.s32.totalorder %s25, 1
      %p148 = por %p146, %p147
      %p149 = scmp.ne.s32.totalorder %s140, %s141
      %p150 = scmp.eq.s32.totalorder %s25, 0
      %p151 = por %p149, %p150
      %p152 = scmp.ne.s32.totalorder %s140, %s141
      %p153 = scmp.eq.s32.totalorder %s26, 1
      %p154 = por %p152, %p153
      %p156 = scmp.ne.s32.totalorder %s141, %s155
      %p157 = scmp.eq.s32.totalorder %s26, 0
      %p158 = por %p156, %p157
      %s160 = sadd.s32 %s159, 1
      %p163 = scmp.eq.s32.totalorder %s20, 1
      %p164 = scmp.ne.s32.totalorder %s159, %s161
      %p165 = scmp.eq.s32.totalorder %s20, 0
      %p166 = por %p164, %p165
      %p167 = scmp.ne.s32.totalorder %s159, %s161
      %p168 = scmp.eq.s32.totalorder %s25, 1
      %p169 = por %p167, %p168
      %p170 = scmp.ne.s32.totalorder %s161, %s162
      %p171 = scmp.eq.s32.totalorder %s25, 0
      %p172 = por %p170, %p171
      %p173 = scmp.ne.s32.totalorder %s161, %s162
      %p174 = scmp.eq.s32.totalorder %s26, 1
      %p175 = por %p173, %p174
      %p177 = scmp.ne.s32.totalorder %s162, %s176
      %p178 = scmp.eq.s32.totalorder %s26, 0
      %p179 = por %p177, %p178
      %s180 = ssub.s32 %s20, %s27
      %p181 = scmp.eq.s32.totalorder %s180, 0
      %s183 = sadd.s32 %s182, 1
      %s184 = scalar_select %p181, %s182, %s183
      %p187 = pneg %p181
      %p188 = scmp.eq.s32.totalorder %s20, 1
      %p189 = por %p187, %p188
      %p190 = scmp.ne.s32.totalorder %s182, %s185
      %p191 = scmp.eq.s32.totalorder %s20, 0
      %p192 = por %p190, %p191
      %p193 = scmp.ne.s32.totalorder %s182, %s185
      %p194 = scmp.eq.s32.totalorder %s25, 1
      %p195 = por %p193, %p194
      %p196 = scmp.ne.s32.totalorder %s185, %s186
      %p197 = scmp.eq.s32.totalorder %s25, 0
      %p198 = por %p196, %p197
      %p199 = scmp.ne.s32.totalorder %s185, %s186
      %p200 = scmp.eq.s32.totalorder %s26, 1
      %p201 = por %p199, %p200
      %p203 = scmp.ne.s32.totalorder %s186, %s202
      %p204 = scmp.eq.s32.totalorder %s26, 0
      %p205 = por %p203, %p204
      %p206 = scmp.le.s32.totalorder 1, %s20
      %p207 = scmp.lt.s32.totalorder %s20, 3
      %p208 = pnand %p206, %p207
      %p209 = pneg %p208
      // Predicated region
      $region9: #{tpu_custom_call.1} parent=5 // pred_check
        _
      $region10: #{tpu_custom_call.1} parent=5 // pred_check_branch
        %211 = sbr.rel (%p208) target = $region12
      $region11: #{tpu_custom_call.1} parent=5 // pred_region
        %s212 = ssub.s32 %s20, 1
        // Predicated region
        $region13: #{tpu_custom_call.1} parent=11 // pred_check
          %p213 = pneg %p67
        $region14: #{tpu_custom_call.1} parent=11 // pred_check_branch
          %215 = sbr.rel (%p213) target = $region16
        $region15: #{tpu_custom_call.1} parent=11 // pred_region
          %217 = vsyncadd [#allocation6], 0
          %s218 = sshll.u32 %s1, 4
          %s219 = int_to_ptr.hbm [resolvable:$true] %s218
          %s220 = sshll.u32 [#allocation5], 4
          %s221 = int_to_ptr.vmem [resolvable:$true] %s220
          %226 = dma.hbm_to_vmem [thread:$0]  %s219, 9216, %s221, [#allocation6], 64, 64, 4
        $region16: #{tpu_custom_call.1} parent=11 // pred_fallthru
          _
        // Predicated region
        $region17: #{tpu_custom_call.1} parent=11 // pred_check
          %p227 = pneg %p88
        $region18: #{tpu_custom_call.1} parent=11 // pred_check_branch
          %229 = sbr.rel (%p227) target = $region20
        $region19: #{tpu_custom_call.1} parent=11 // pred_region
          _
        $region20: #{tpu_custom_call.1} parent=11 // pred_fallthru
          _
        // Predicated region
        $region21: #{tpu_custom_call.1} parent=11 // pred_check
          %p230 = pneg %p109
        $region22: #{tpu_custom_call.1} parent=11 // pred_check_branch
          %232 = sbr.rel (%p230) target = $region24
        $region23: #{tpu_custom_call.1} parent=11 // pred_region
          _
        $region24: #{tpu_custom_call.1} parent=11 // pred_fallthru
          _
        // Predicated region
        $region25: #{tpu_custom_call.1} parent=11 // pred_check
          %p233 = pneg %p130
        $region26: #{tpu_custom_call.1} parent=11 // pred_check_branch
          %235 = sbr.rel (%p233) target = $region28
        $region27: #{tpu_custom_call.1} parent=11 // pred_region
          %237 = vsyncadd [#allocation6], 0
          %s238 = sshll.u32 %s4, 4
          %s239 = int_to_ptr.hbm [resolvable:$true] %s238
          %s240 = sshll.u32 [#allocation7], 4
          %s241 = int_to_ptr.vmem [resolvable:$true] %s240
          %246 = dma.hbm_to_vmem [thread:$0]  %s239, 9216, %s241, [#allocation6], 64, 64, 4
        $region28: #{tpu_custom_call.1} parent=11 // pred_fallthru
          _
        // Predicated region
        $region29: #{tpu_custom_call.1} parent=11 // pred_check
          %p247 = pneg %p151
        $region30: #{tpu_custom_call.1} parent=11 // pred_check_branch
          %249 = sbr.rel (%p247) target = $region32
        $region31: #{tpu_custom_call.1} parent=11 // pred_region
          _
        $region32: #{tpu_custom_call.1} parent=11 // pred_fallthru
          _
        // Predicated region
        $region33: #{tpu_custom_call.1} parent=11 // pred_check
          %p250 = pneg %p172
        $region34: #{tpu_custom_call.1} parent=11 // pred_check_branch
          %252 = sbr.rel (%p250) target = $region36
        $region35: #{tpu_custom_call.1} parent=11 // pred_region
          _
        $region36: #{tpu_custom_call.1} parent=11 // pred_fallthru
          _
      $region12: #{tpu_custom_call.1} parent=5 // pred_fallthru
        _
      %p253 = scmp.lt.s32.totalorder %s20, 2
      // Predicated region
      $region37: #{tpu_custom_call.1} parent=5 // pred_check
        %p254 = pneg %p253
      $region38: #{tpu_custom_call.1} parent=5 // pred_check_branch
        %256 = sbr.rel (%p254) target = $region40
      $region39: #{tpu_custom_call.1} parent=5 // pred_region
        // Predicated region
        $region41: #{tpu_custom_call.1} parent=39 // pred_check
          %p257 = pneg %p40
        $region42: #{tpu_custom_call.1} parent=39 // pred_check_branch
          %259 = sbr.rel (%p257) target = $region44
        $region43: #{tpu_custom_call.1} parent=39 // pred_region
          %s260 = sand.u32 %s30, 1
          %s261 = scalar_lea.sflag [#allocation3], %s260
          %s262 = sand.u32 %s30, 1
          %s263 = smul.addr %s262, 128
          %s264 = scalar_lea.vmem [#allocation2], %s263
          %266 = vsyncadd %s261, 0
          %s267 = smul.addr %s20, 32
          %s268 = smul.addr %s267, 4
          %s269 = scalar_lea.hbm %s0, %s268
          %s270 = sshll.u32 %s269, 4
          %s271 = int_to_ptr.hbm [resolvable:$true] %s270
          %s272 = sshll.u32 %s264, 4
          %s273 = int_to_ptr.vmem [resolvable:$true] %s272
          %278 = dma.hbm_to_vmem [thread:$0]  %s271, 2048, %s273, %s261, 64, 64, 4
        $region44: #{tpu_custom_call.1} parent=39 // pred_fallthru
          _
      $region40: #{tpu_custom_call.1} parent=5 // pred_fallthru
        _
      %p279 = scmp.le.s32.totalorder 1, %s20
      %p280 = scmp.lt.s32.totalorder %s20, 3
      %p281 = pnand %p279, %p280
      %p282 = pneg %p281
      // Predicated region
      $region45: #{tpu_custom_call.1} parent=5 // pred_check
        _
      $region46: #{tpu_custom_call.1} parent=5 // pred_check_branch
        %284 = sbr.rel (%p281) target = $region48
      $region47: #{tpu_custom_call.1} parent=5 // pred_region
        %s285 = ssub.s32 %s20, 1
        %s286 = sand.u32 %s33, 1
        %s287 = scalar_lea.sflag [#allocation3], %s286
        %s288 = sand.u32 %s33, 1
        %s289 = smul.addr %s288, 128
        %s290 = scalar_lea.vmem [#allocation2], %s289
        // Predicated region
        $region49: #{tpu_custom_call.1} parent=47 // pred_check
          %p291 = pneg %p46
        $region50: #{tpu_custom_call.1} parent=47 // pred_check_branch
          %293 = sbr.rel (%p291) target = $region52
        $region51: #{tpu_custom_call.1} parent=47 // pred_region
          %295 = dma.done %s287, 2048
        $region52: #{tpu_custom_call.1} parent=47 // pred_fallthru
          _
        // Predicated region
        $region53: #{tpu_custom_call.1} parent=47 // pred_check
          %p296 = pneg %p67
        $region54: #{tpu_custom_call.1} parent=47 // pred_check_branch
          %298 = sbr.rel (%p296) target = $region56
        $region55: #{tpu_custom_call.1} parent=47 // pred_region
          %300 = dma.done [#allocation6], 9216
        $region56: #{tpu_custom_call.1} parent=47 // pred_fallthru
          _
        // Predicated region
        $region57: #{tpu_custom_call.1} parent=47 // pred_check
          %p301 = pneg %p130
        $region58: #{tpu_custom_call.1} parent=47 // pred_check_branch
          %303 = sbr.rel (%p301) target = $region60
        $region59: #{tpu_custom_call.1} parent=47 // pred_region
          %305 = dma.done [#allocation6], 9216
        $region60: #{tpu_custom_call.1} parent=47 // pred_fallthru
          _
        %s306 = sand.u32 %s33, 1
        %s307 = scalar_lea.sflag [#allocation3], %s306
        %s308 = sand.u32 %s33, 1
        %s309 = smul.addr %s308, 128
        %s310 = scalar_lea.vmem [#allocation2], %s309
        %p311 = pneg %p46
        %p312 = pneg %p43
        %p313 = pneg %p67
        %p314 = pneg %p64
        %p315 = pneg %p88
        %p316 = pneg %p85
        %p317 = pneg %p109
        %p318 = pneg %p106
        %p319 = pneg %p130
        %p320 = pneg %p127
        %p321 = pneg %p151
        %p322 = pneg %p148
        %p323 = pneg %p172
        %p324 = pneg %p169
        %p325 = pneg %p198
        %p326 = pneg %p195
        %s327 = sand.u32 %s185, 1
        %s328 = scalar_lea.sflag [#allocation4], %s327
        %s329 = sand.u32 %s185, 1
        %s330 = smul.addr %s329, 128
        %s331 = scalar_lea.vmem [#allocation8], %s330
        %v333 = vld [vmem:[%s290] sm:$0xf]
        %v334 = vld [vmem:[%s290 + $0x4] sm:$0xf]
        %v335 = vld [vmem:[%s290 + $0x8] sm:$0xf]
        %v336 = vld [vmem:[%s290 + $0xc] sm:$0xf]
        %v337 = vld [vmem:[%s290 + $0x10] sm:$0xf]
        %v338 = vld [vmem:[%s290 + $0x14] sm:$0xf]
        %v339 = vld [vmem:[%s290 + $0x18] sm:$0xf]
        %v340 = vld [vmem:[%s290 + $0x1c] sm:$0xf]
        %v341 = vld [vmem:[%s290 + $0x20] sm:$0xf]
        %v342 = vld [vmem:[%s290 + $0x24] sm:$0xf]
        %v343 = vld [vmem:[%s290 + $0x28] sm:$0xf]
        %v344 = vld [vmem:[%s290 + $0x2c] sm:$0xf]
        %v345 = vld [vmem:[%s290 + $0x30] sm:$0xf]
        %v346 = vld [vmem:[%s290 + $0x34] sm:$0xf]
        %v347 = vld [vmem:[%s290 + $0x38] sm:$0xf]
        %v348 = vld [vmem:[%s290 + $0x3c] sm:$0xf]
        %v349 = vld [vmem:[%s290 + $0x40] sm:$0xf]
        %v350 = vld [vmem:[%s290 + $0x44] sm:$0xf]
        %v351 = vld [vmem:[%s290 + $0x48] sm:$0xf]
        %v352 = vld [vmem:[%s290 + $0x4c] sm:$0xf]
        %v353 = vld [vmem:[%s290 + $0x50] sm:$0xf]
        %v354 = vld [vmem:[%s290 + $0x54] sm:$0xf]
        %v355 = vld [vmem:[%s290 + $0x58] sm:$0xf]
        %v356 = vld [vmem:[%s290 + $0x5c] sm:$0xf]
        %v357 = vld [vmem:[%s290 + $0x60] sm:$0xf]
        %v358 = vld [vmem:[%s290 + $0x64] sm:$0xf]
        %v359 = vld [vmem:[%s290 + $0x68] sm:$0xf]
        %v360 = vld [vmem:[%s290 + $0x6c] sm:$0xf]
        %v361 = vld [vmem:[%s290 + $0x70] sm:$0xf]
        %v362 = vld [vmem:[%s290 + $0x74] sm:$0xf]
        %v363 = vld [vmem:[%s290 + $0x78] sm:$0xf]
        %v364 = vld [vmem:[%s290 + $0x7c] sm:$0xf]
        %v397 = vunpack.c.l.b16 %v333
        %v398 = vunpack.c.l.b16 %v334
        %v399 = vunpack.c.l.b16 %v335
        %v400 = vunpack.c.l.b16 %v336
        %v401 = vunpack.c.l.b16 %v337
        %v402 = vunpack.c.l.b16 %v338
        %v403 = vunpack.c.l.b16 %v339
        %v404 = vunpack.c.l.b16 %v340
        %v405 = vunpack.c.l.b16 %v341
        %v406 = vunpack.c.l.b16 %v342
        %v407 = vunpack.c.l.b16 %v343
        %v408 = vunpack.c.l.b16 %v344
        %v409 = vunpack.c.l.b16 %v345
        %v410 = vunpack.c.l.b16 %v346
        %v411 = vunpack.c.l.b16 %v347
        %v412 = vunpack.c.l.b16 %v348
        %v413 = vunpack.c.l.b16 %v349
        %v414 = vunpack.c.l.b16 %v350
        %v415 = vunpack.c.l.b16 %v351
        %v416 = vunpack.c.l.b16 %v352
        %v417 = vunpack.c.l.b16 %v353
        %v418 = vunpack.c.l.b16 %v354
        %v419 = vunpack.c.l.b16 %v355
        %v420 = vunpack.c.l.b16 %v356
        %v421 = vunpack.c.l.b16 %v357
        %v422 = vunpack.c.l.b16 %v358
        %v423 = vunpack.c.l.b16 %v359
        %v424 = vunpack.c.l.b16 %v360
        %v425 = vunpack.c.l.b16 %v361
        %v426 = vunpack.c.l.b16 %v362
        %v427 = vunpack.c.l.b16 %v363
        %v428 = vunpack.c.l.b16 %v364
        %v429 = vpack.c.b16 %v398, %v397
        %v430 = vpack.c.b16 %v400, %v399
        %v431 = vpack.c.b16 %v402, %v401
        %v432 = vpack.c.b16 %v404, %v403
        %v433 = vpack.c.b16 %v406, %v405
        %v434 = vpack.c.b16 %v408, %v407
        %v435 = vpack.c.b16 %v410, %v409
        %v436 = vpack.c.b16 %v412, %v411
        %v437 = vpack.c.b16 %v414, %v413
        %v438 = vpack.c.b16 %v416, %v415
        %v439 = vpack.c.b16 %v418, %v417
        %v440 = vpack.c.b16 %v420, %v419
        %v441 = vpack.c.b16 %v422, %v421
        %v442 = vpack.c.b16 %v424, %v423
        %v443 = vpack.c.b16 %v426, %v425
        %v444 = vpack.c.b16 %v428, %v427
        %v446 = vshrl.u32 %v429, 16
        %v448 = vrot.slane %v446, 7
        %v449 = vshll.u32 %v429, 16
        %v451 = vor.u32 %v448, %v449
        %v453 = vshrl.u32 %v430, 16
        %v455 = vrot.slane %v453, 7
        %v456 = vshll.u32 %v430, 16
        %v458 = vor.u32 %v455, %v456
        %v460 = vshrl.u32 %v431, 16
        %v462 = vrot.slane %v460, 7
        %v463 = vshll.u32 %v431, 16
        %v465 = vor.u32 %v462, %v463
        %v467 = vshrl.u32 %v432, 16
        %v469 = vrot.slane %v467, 7
        %v470 = vshll.u32 %v432, 16
        %v472 = vor.u32 %v469, %v470
        %v474 = vshrl.u32 %v433, 16
        %v476 = vrot.slane %v474, 7
        %v477 = vshll.u32 %v433, 16
        %v479 = vor.u32 %v476, %v477
        %v481 = vshrl.u32 %v434, 16
        %v483 = vrot.slane %v481, 7
        %v484 = vshll.u32 %v434, 16
        %v486 = vor.u32 %v483, %v484
        %v488 = vshrl.u32 %v435, 16
        %v490 = vrot.slane %v488, 7
        %v491 = vshll.u32 %v435, 16
        %v493 = vor.u32 %v490, %v491
        %v495 = vshrl.u32 %v436, 16
        %v497 = vrot.slane %v495, 7
        %v498 = vshll.u32 %v436, 16
        %v500 = vor.u32 %v497, %v498
        %v502 = vshrl.u32 %v437, 16
        %v504 = vrot.slane %v502, 7
        %v505 = vshll.u32 %v437, 16
        %v507 = vor.u32 %v504, %v505
        %v509 = vshrl.u32 %v438, 16
        %v511 = vrot.slane %v509, 7
        %v512 = vshll.u32 %v438, 16
        %v514 = vor.u32 %v511, %v512
        %v516 = vshrl.u32 %v439, 16
        %v518 = vrot.slane %v516, 7
        %v519 = vshll.u32 %v439, 16
        %v521 = vor.u32 %v518, %v519
        %v523 = vshrl.u32 %v440, 16
        %v525 = vrot.slane %v523, 7
        %v526 = vshll.u32 %v440, 16
        %v528 = vor.u32 %v525, %v526
        %v530 = vshrl.u32 %v441, 16
        %v532 = vrot.slane %v530, 7
        %v533 = vshll.u32 %v441, 16
        %v535 = vor.u32 %v532, %v533
        %v537 = vshrl.u32 %v442, 16
        %v539 = vrot.slane %v537, 7
        %v540 = vshll.u32 %v442, 16
        %v542 = vor.u32 %v539, %v540
        %v544 = vshrl.u32 %v443, 16
        %v546 = vrot.slane %v544, 7
        %v547 = vshll.u32 %v443, 16
        %v549 = vor.u32 %v546, %v547
        %v551 = vshrl.u32 %v444, 16
        %v553 = vrot.slane %v551, 7
        %v554 = vshll.u32 %v444, 16
        %v556 = vor.u32 %v553, %v554
        %vm573 = vcmask 1040384
        %vm574 = vsmask.f32 256
        %vm575 = vmand %vm573, %vm574
        %v576 = vsel %vm575, 0, %v451
        %v577 = vsel %vm575, 0, %v458
        %v578 = vsel %vm575, 0, %v465
        %v579 = vsel %vm575, 0, %v472
        %v580 = vsel %vm575, 0, %v479
        %v581 = vsel %vm575, 0, %v486
        %v582 = vsel %vm575, 0, %v493
        %v583 = vsel %vm575, 0, %v500
        %v584 = vsel %vm575, 0, %v507
        %v585 = vsel %vm575, 0, %v514
        %v586 = vsel %vm575, 0, %v521
        %v587 = vsel %vm575, 0, %v528
        %v588 = vsel %vm575, 0, %v535
        %v589 = vsel %vm575, 0, %v542
        %v590 = vsel %vm575, 0, %v549
        %v591 = vsel %vm575, 0, %v556
        %v592 = vrot.slane %v449, 1
        %v593 = vor.u32 %v446, %v592
        %v594 = vrot.slane %v456, 1
        %v595 = vor.u32 %v453, %v594
        %v596 = vrot.slane %v463, 1
        %v597 = vor.u32 %v460, %v596
        %v598 = vrot.slane %v470, 1
        %v599 = vor.u32 %v467, %v598
        %v600 = vrot.slane %v477, 1
        %v601 = vor.u32 %v474, %v600
        %v602 = vrot.slane %v484, 1
        %v603 = vor.u32 %v481, %v602
        %v604 = vrot.slane %v491, 1
        %v605 = vor.u32 %v488, %v604
        %v606 = vrot.slane %v498, 1
        %v607 = vor.u32 %v495, %v606
        %v608 = vrot.slane %v505, 1
        %v609 = vor.u32 %v502, %v608
        %v610 = vrot.slane %v512, 1
        %v611 = vor.u32 %v509, %v610
        %v612 = vrot.slane %v519, 1
        %v613 = vor.u32 %v516, %v612
        %v614 = vrot.slane %v526, 1
        %v615 = vor.u32 %v523, %v614
        %v616 = vrot.slane %v533, 1
        %v617 = vor.u32 %v530, %v616
        %v618 = vrot.slane %v540, 1
        %v619 = vor.u32 %v537, %v618
        %v620 = vrot.slane %v547, 1
        %v621 = vor.u32 %v544, %v620
        %v622 = vrot.slane %v554, 1
        %v623 = vor.u32 %v551, %v622
        %vm640 = vcmask 1047552
        %vm641 = vsmask.f32 7424
        %vm642 = vmand %vm640, %vm641
        %v643 = vsel %vm642, %v593, 0
        %v644 = vsel %vm642, %v595, 0
        %v645 = vsel %vm642, %v597, 0
        %v646 = vsel %vm642, %v599, 0
        %v647 = vsel %vm642, %v601, 0
        %v648 = vsel %vm642, %v603, 0
        %v649 = vsel %vm642, %v605, 0
        %v650 = vsel %vm642, %v607, 0
        %v651 = vsel %vm642, %v609, 0
        %v652 = vsel %vm642, %v611, 0
        %v653 = vsel %vm642, %v613, 0
        %v654 = vsel %vm642, %v615, 0
        %v655 = vsel %vm642, %v617, 0
        %v656 = vsel %vm642, %v619, 0
        %v657 = vsel %vm642, %v621, 0
        %v658 = vsel %vm642, %v623, 0
        %v675 = vld [vmem:[#allocation5] sm:$0xf]
        %v676 = vld [vmem:[#allocation5 + $0x4] sm:$0xf]
        %v677 = vld [vmem:[#allocation5 + $0x8] sm:$0xf]
        %v678 = vld [vmem:[#allocation5 + $0xc] sm:$0xf]
        %v679 = vld [vmem:[#allocation5 + $0x10] sm:$0xf]
        %v680 = vld [vmem:[#allocation5 + $0x14] sm:$0xf]
        %v681 = vld [vmem:[#allocation5 + $0x18] sm:$0xf]
        %v682 = vld [vmem:[#allocation5 + $0x1c] sm:$0xf]
        %v683 = vld [vmem:[#allocation5 + $0x20] sm:$0xf]
        %v684 = vld [vmem:[#allocation5 + $0x24] sm:$0xf]
        %v685 = vld [vmem:[#allocation5 + $0x28] sm:$0xf]
        %v686 = vld [vmem:[#allocation5 + $0x2c] sm:$0xf]
        %v687 = vld [vmem:[#allocation5 + $0x30] sm:$0xf]
        %v688 = vld [vmem:[#allocation5 + $0x34] sm:$0xf]
        %v689 = vld [vmem:[#allocation5 + $0x38] sm:$0xf]
        %v690 = vld [vmem:[#allocation5 + $0x3c] sm:$0xf]
        %v691 = vld [vmem:[#allocation5 + $0x40] sm:$0xf]
        %v692 = vld [vmem:[#allocation5 + $0x44] sm:$0xf]
        %v693 = vld [vmem:[#allocation5 + $0x48] sm:$0xf]
        %v694 = vld [vmem:[#allocation5 + $0x4c] sm:$0xf]
        %v695 = vld [vmem:[#allocation5 + $0x50] sm:$0xf]
        %v696 = vld [vmem:[#allocation5 + $0x54] sm:$0xf]
        %v697 = vld [vmem:[#allocation5 + $0x58] sm:$0xf]
        %v698 = vld [vmem:[#allocation5 + $0x5c] sm:$0xf]
        %v699 = vld [vmem:[#allocation5 + $0x60] sm:$0xf]
        %v700 = vld [vmem:[#allocation5 + $0x64] sm:$0xf]
        %v701 = vld [vmem:[#allocation5 + $0x68] sm:$0xf]
        %v702 = vld [vmem:[#allocation5 + $0x6c] sm:$0xf]
        %v703 = vld [vmem:[#allocation5 + $0x70] sm:$0xf]
        %v704 = vld [vmem:[#allocation5 + $0x74] sm:$0xf]
        %v705 = vld [vmem:[#allocation5 + $0x78] sm:$0xf]
        %v706 = vld [vmem:[#allocation5 + $0x7c] sm:$0xf]
        %v707 = vld [vmem:[#allocation5 + $0x80] sm:$0xf]
        %v708 = vld [vmem:[#allocation5 + $0x84] sm:$0xf]
        %v709 = vld [vmem:[#allocation5 + $0x88] sm:$0xf]
        %v710 = vld [vmem:[#allocation5 + $0x8c] sm:$0xf]
        %v711 = vld [vmem:[#allocation5 + $0x90] sm:$0xf]
        %v712 = vld [vmem:[#allocation5 + $0x94] sm:$0xf]
        %v713 = vld [vmem:[#allocation5 + $0x98] sm:$0xf]
        %v714 = vld [vmem:[#allocation5 + $0x9c] sm:$0xf]
        %v715 = vld [vmem:[#allocation5 + $0xa0] sm:$0xf]
        %v716 = vld [vmem:[#allocation5 + $0xa4] sm:$0xf]
        %v717 = vld [vmem:[#allocation5 + $0xa8] sm:$0xf]
        %v718 = vld [vmem:[#allocation5 + $0xac] sm:$0xf]
        %v719 = vld [vmem:[#allocation5 + $0xb0] sm:$0xf]
        %v720 = vld [vmem:[#allocation5 + $0xb4] sm:$0xf]
        %v721 = vld [vmem:[#allocation5 + $0xb8] sm:$0xf]
        %v722 = vld [vmem:[#allocation5 + $0xbc] sm:$0xf]
        %s723 = scalar_lea.vmem [#allocation5], 192
        %v724 = vld [vmem:[%s723] sm:$0xf]
        %v725 = vld [vmem:[%s723 + $0x4] sm:$0xf]
        %v726 = vld [vmem:[%s723 + $0x8] sm:$0xf]
        %v727 = vld [vmem:[%s723 + $0xc] sm:$0xf]
        %v728 = vld [vmem:[%s723 + $0x10] sm:$0xf]
        %v729 = vld [vmem:[%s723 + $0x14] sm:$0xf]
        %v730 = vld [vmem:[%s723 + $0x18] sm:$0xf]
        %v731 = vld [vmem:[%s723 + $0x1c] sm:$0xf]
        %v732 = vld [vmem:[%s723 + $0x20] sm:$0xf]
        %v733 = vld [vmem:[%s723 + $0x24] sm:$0xf]
        %v734 = vld [vmem:[%s723 + $0x28] sm:$0xf]
        %v735 = vld [vmem:[%s723 + $0x2c] sm:$0xf]
        %v736 = vld [vmem:[%s723 + $0x30] sm:$0xf]
        %v737 = vld [vmem:[%s723 + $0x34] sm:$0xf]
        %v738 = vld [vmem:[%s723 + $0x38] sm:$0xf]
        %v739 = vld [vmem:[%s723 + $0x3c] sm:$0xf]
        %v740 = vld [vmem:[%s723 + $0x40] sm:$0xf]
        %v741 = vld [vmem:[%s723 + $0x44] sm:$0xf]
        %v742 = vld [vmem:[%s723 + $0x48] sm:$0xf]
        %v743 = vld [vmem:[%s723 + $0x4c] sm:$0xf]
        %v744 = vld [vmem:[%s723 + $0x50] sm:$0xf]
        %v745 = vld [vmem:[%s723 + $0x54] sm:$0xf]
        %v746 = vld [vmem:[%s723 + $0x58] sm:$0xf]
        %v747 = vld [vmem:[%s723 + $0x5c] sm:$0xf]
        %v748 = vld [vmem:[%s723 + $0x60] sm:$0xf]
        %v749 = vld [vmem:[%s723 + $0x64] sm:$0xf]
        %v750 = vld [vmem:[%s723 + $0x68] sm:$0xf]
        %v751 = vld [vmem:[%s723 + $0x6c] sm:$0xf]
        %v752 = vld [vmem:[%s723 + $0x70] sm:$0xf]
        %v753 = vld [vmem:[%s723 + $0x74] sm:$0xf]
        %v754 = vld [vmem:[%s723 + $0x78] sm:$0xf]
        %v755 = vld [vmem:[%s723 + $0x7c] sm:$0xf]
        %v756 = vld [vmem:[%s723 + $0x80] sm:$0xf]
        %v757 = vld [vmem:[%s723 + $0x84] sm:$0xf]
        %v758 = vld [vmem:[%s723 + $0x88] sm:$0xf]
        %v759 = vld [vmem:[%s723 + $0x8c] sm:$0xf]
        %v760 = vld [vmem:[%s723 + $0x90] sm:$0xf]
        %v761 = vld [vmem:[%s723 + $0x94] sm:$0xf]
        %v762 = vld [vmem:[%s723 + $0x98] sm:$0xf]
        %v763 = vld [vmem:[%s723 + $0x9c] sm:$0xf]
        %v764 = vld [vmem:[%s723 + $0xa0] sm:$0xf]
        %v765 = vld [vmem:[%s723 + $0xa4] sm:$0xf]
        %v766 = vld [vmem:[%s723 + $0xa8] sm:$0xf]
        %v767 = vld [vmem:[%s723 + $0xac] sm:$0xf]
        %v768 = vld [vmem:[%s723 + $0xb0] sm:$0xf]
        %v769 = vld [vmem:[%s723 + $0xb4] sm:$0xf]
        %v770 = vld [vmem:[%s723 + $0xb8] sm:$0xf]
        %v771 = vld [vmem:[%s723 + $0xbc] sm:$0xf]
        %v820 = vunpack.c.l.b16 %v724
        %v821 = vunpack.c.l.b16 %v725
        %v822 = vunpack.c.l.b16 %v726
        %v823 = vunpack.c.l.b16 %v727
        %v824 = vunpack.c.l.b16 %v728
        %v825 = vunpack.c.l.b16 %v729
        %v826 = vunpack.c.l.b16 %v730
        %v827 = vunpack.c.l.b16 %v731
        %v828 = vunpack.c.l.b16 %v732
        %v829 = vunpack.c.l.b16 %v733
        %v830 = vunpack.c.l.b16 %v734
        %v831 = vunpack.c.l.b16 %v735
        %v832 = vunpack.c.l.b16 %v736
        %v833 = vunpack.c.l.b16 %v737
        %v834 = vunpack.c.l.b16 %v738
        %v835 = vunpack.c.l.b16 %v739
        %v836 = vunpack.c.l.b16 %v740
        %v837 = vunpack.c.l.b16 %v741
        %v838 = vunpack.c.l.b16 %v742
        %v839 = vunpack.c.l.b16 %v743
        %v840 = vunpack.c.l.b16 %v744
        %v841 = vunpack.c.l.b16 %v745
        %v842 = vunpack.c.l.b16 %v746
        %v843 = vunpack.c.l.b16 %v747
        %v844 = vunpack.c.l.b16 %v748
        %v845 = vunpack.c.l.b16 %v749
        %v846 = vunpack.c.l.b16 %v750
        %v847 = vunpack.c.l.b16 %v751
        %v848 = vunpack.c.l.b16 %v752
        %v849 = vunpack.c.l.b16 %v753
        %v850 = vunpack.c.l.b16 %v754
        %v851 = vunpack.c.l.b16 %v755
        %v852 = vunpack.c.l.b16 %v756
        %v853 = vunpack.c.l.b16 %v757
        %v854 = vunpack.c.l.b16 %v758
        %v855 = vunpack.c.l.b16 %v759
        %v856 = vunpack.c.l.b16 %v760
        %v857 = vunpack.c.l.b16 %v761
        %v858 = vunpack.c.l.b16 %v762
        %v859 = vunpack.c.l.b16 %v763
        %v860 = vunpack.c.l.b16 %v764
        %v861 = vunpack.c.l.b16 %v765
        %v862 = vunpack.c.l.b16 %v766
        %v863 = vunpack.c.l.b16 %v767
        %v864 = vunpack.c.l.b16 %v768
        %v865 = vunpack.c.l.b16 %v769
        %v866 = vunpack.c.l.b16 %v770
        %v867 = vunpack.c.l.b16 %v771
        %v868 = vpack.c.b16 %v821, %v820
        %v869 = vpack.c.b16 %v823, %v822
        %v870 = vpack.c.b16 %v825, %v824
        %v871 = vpack.c.b16 %v827, %v826
        %v872 = vpack.c.b16 %v829, %v828
        %v873 = vpack.c.b16 %v831, %v830
        %v874 = vpack.c.b16 %v833, %v832
        %v875 = vpack.c.b16 %v835, %v834
        %v876 = vpack.c.b16 %v837, %v836
        %v877 = vpack.c.b16 %v839, %v838
        %v878 = vpack.c.b16 %v841, %v840
        %v879 = vpack.c.b16 %v843, %v842
        %v880 = vpack.c.b16 %v845, %v844
        %v881 = vpack.c.b16 %v847, %v846
        %v882 = vpack.c.b16 %v849, %v848
        %v883 = vpack.c.b16 %v851, %v850
        %v884 = vpack.c.b16 %v853, %v852
        %v885 = vpack.c.b16 %v855, %v854
        %v886 = vpack.c.b16 %v857, %v856
        %v887 = vpack.c.b16 %v859, %v858
        %v888 = vpack.c.b16 %v861, %v860
        %v889 = vpack.c.b16 %v863, %v862
        %v890 = vpack.c.b16 %v865, %v864
        %v891 = vpack.c.b16 %v867, %v866
        %916 = vmatpush.bf16.msra.mxu0 %v875
        %917 = vmatpush.bf16.msra.mxu0 %v874
        %918 = vmatpush.bf16.msra.mxu0 %v873
        %919 = vmatpush.bf16.msra.mxu0 %v872
        %920 = vmatpush.bf16.msra.mxu0 %v871
        %921 = vmatpush.bf16.msra.mxu0 %v870
        %922 = vmatpush.bf16.msra.mxu0 %v869
        %923 = vmatpush.bf16.msra.mxu0 %v868
        %924 = vmatmul.bf16.gmra.mxu0 %v576
        %v925 = vpop.f32.mrf.mxu0
        %v926 = vadd.f32 0.0, %v925
        %v927 = vpop.f32.mrf.mxu0
        %v928 = vadd.f32 0.0, %v927
        %929 = vmatmul.bf16.gmra.mxu0 %v577
        %v930 = vpop.f32.mrf.mxu0
        %v931 = vadd.f32 0.0, %v930
        %v932 = vpop.f32.mrf.mxu0
        %v933 = vadd.f32 0.0, %v932
        %934 = vmatmul.bf16.gmra.mxu0 %v578
        %v935 = vpop.f32.mrf.mxu0
        %v936 = vadd.f32 0.0, %v935
        %v937 = vpop.f32.mrf.mxu0
        %v938 = vadd.f32 0.0, %v937
        %939 = vmatmul.bf16.gmra.mxu0 %v579
        %v940 = vpop.f32.mrf.mxu0
        %v941 = vadd.f32 0.0, %v940
        %v942 = vpop.f32.mrf.mxu0
        %v943 = vadd.f32 0.0, %v942
        %944 = vmatmul.bf16.gmra.mxu0 %v580
        %v945 = vpop.f32.mrf.mxu0
        %v946 = vadd.f32 0.0, %v945
        %v947 = vpop.f32.mrf.mxu0
        %v948 = vadd.f32 0.0, %v947
        %949 = vmatmul.bf16.gmra.mxu0 %v581
        %v950 = vpop.f32.mrf.mxu0
        %v951 = vadd.f32 0.0, %v950
        %v952 = vpop.f32.mrf.mxu0
        %v953 = vadd.f32 0.0, %v952
        %954 = vmatmul.bf16.gmra.mxu0 %v582
        %v955 = vpop.f32.mrf.mxu0
        %v956 = vadd.f32 0.0, %v955
        %v957 = vpop.f32.mrf.mxu0
        %v958 = vadd.f32 0.0, %v957
        %959 = vmatmul.bf16.gmra.mxu0 %v583
        %v960 = vpop.f32.mrf.mxu0
        %v961 = vadd.f32 0.0, %v960
        %v962 = vpop.f32.mrf.mxu0
        %v963 = vadd.f32 0.0, %v962
        %964 = vmatmul.bf16.gmra.mxu0 %v584
        %v965 = vpop.f32.mrf.mxu0
        %v966 = vadd.f32 0.0, %v965
        %v967 = vpop.f32.mrf.mxu0
        %v968 = vadd.f32 0.0, %v967
        %969 = vmatmul.bf16.gmra.mxu0 %v585
        %v970 = vpop.f32.mrf.mxu0
        %v971 = vadd.f32 0.0, %v970
        %v972 = vpop.f32.mrf.mxu0
        %v973 = vadd.f32 0.0, %v972
        %974 = vmatmul.bf16.gmra.mxu0 %v586
        %v975 = vpop.f32.mrf.mxu0
        %v976 = vadd.f32 0.0, %v975
        %v977 = vpop.f32.mrf.mxu0
        %v978 = vadd.f32 0.0, %v977
        %979 = vmatmul.bf16.gmra.mxu0 %v587
        %v980 = vpop.f32.mrf.mxu0
        %v981 = vadd.f32 0.0, %v980
        %v982 = vpop.f32.mrf.mxu0
        %v983 = vadd.f32 0.0, %v982
        %984 = vmatmul.bf16.gmra.mxu0 %v588
        %v985 = vpop.f32.mrf.mxu0
        %v986 = vadd.f32 0.0, %v985
        %v987 = vpop.f32.mrf.mxu0
        %v988 = vadd.f32 0.0, %v987
        %989 = vmatmul.bf16.gmra.mxu0 %v589
        %v990 = vpop.f32.mrf.mxu0
        %v991 = vadd.f32 0.0, %v990
        %v992 = vpop.f32.mrf.mxu0
        %v993 = vadd.f32 0.0, %v992
        %994 = vmatmul.bf16.gmra.mxu0 %v590
        %v995 = vpop.f32.mrf.mxu0
        %v996 = vadd.f32 0.0, %v995
        %v997 = vpop.f32.mrf.mxu0
        %v998 = vadd.f32 0.0, %v997
        %999 = vmatmul.bf16.gmra.mxu0 %v591
        %v1000 = vpop.f32.mrf.mxu0
        %v1001 = vadd.f32 0.0, %v1000
        %v1002 = vpop.f32.mrf.mxu0
        %v1003 = vadd.f32 0.0, %v1002
        %1004 = vdwg.mxu0
        %1005 = vmatpush.bf16.msra.mxu0 %v883
        %1006 = vmatpush.bf16.msra.mxu0 %v882
        %1007 = vmatpush.bf16.msra.mxu0 %v881
        %1008 = vmatpush.bf16.msra.mxu0 %v880
        %1009 = vmatpush.bf16.msra.mxu0 %v879
        %1010 = vmatpush.bf16.msra.mxu0 %v878
        %1011 = vmatpush.bf16.msra.mxu0 %v877
        %1012 = vmatpush.bf16.msra.mxu0 %v876
        %1013 = vmatmul.bf16.gmra.mxu0 %v429
        %v1014 = vpop.f32.mrf.mxu0
        %v1015 = vadd.f32 %v926, %v1014
        %v1016 = vpop.f32.mrf.mxu0
        %v1017 = vadd.f32 %v928, %v1016
        %1018 = vmatmul.bf16.gmra.mxu0 %v430
        %v1019 = vpop.f32.mrf.mxu0
        %v1020 = vadd.f32 %v931, %v1019
        %v1021 = vpop.f32.mrf.mxu0
        %v1022 = vadd.f32 %v933, %v1021
        %1023 = vmatmul.bf16.gmra.mxu0 %v431
        %v1024 = vpop.f32.mrf.mxu0
        %v1025 = vadd.f32 %v936, %v1024
        %v1026 = vpop.f32.mrf.mxu0
        %v1027 = vadd.f32 %v938, %v1026
        %1028 = vmatmul.bf16.gmra.mxu0 %v432
        %v1029 = vpop.f32.mrf.mxu0
        %v1030 = vadd.f32 %v941, %v1029
        %v1031 = vpop.f32.mrf.mxu0
        %v1032 = vadd.f32 %v943, %v1031
        %1033 = vmatmul.bf16.gmra.mxu0 %v433
        %v1034 = vpop.f32.mrf.mxu0
        %v1035 = vadd.f32 %v946, %v1034
        %v1036 = vpop.f32.mrf.mxu0
        %v1037 = vadd.f32 %v948, %v1036
        %1038 = vmatmul.bf16.gmra.mxu0 %v434
        %v1039 = vpop.f32.mrf.mxu0
        %v1040 = vadd.f32 %v951, %v1039
        %v1041 = vpop.f32.mrf.mxu0
        %v1042 = vadd.f32 %v953, %v1041
        %1043 = vmatmul.bf16.gmra.mxu0 %v435
        %v1044 = vpop.f32.mrf.mxu0
        %v1045 = vadd.f32 %v956, %v1044
        %v1046 = vpop.f32.mrf.mxu0
        %v1047 = vadd.f32 %v958, %v1046
        %1048 = vmatmul.bf16.gmra.mxu0 %v436
        %v1049 = vpop.f32.mrf.mxu0
        %v1050 = vadd.f32 %v961, %v1049
        %v1051 = vpop.f32.mrf.mxu0
        %v1052 = vadd.f32 %v963, %v1051
        %1053 = vmatmul.bf16.gmra.mxu0 %v437
        %v1054 = vpop.f32.mrf.mxu0
        %v1055 = vadd.f32 %v966, %v1054
        %v1056 = vpop.f32.mrf.mxu0
        %v1057 = vadd.f32 %v968, %v1056
        %1058 = vmatmul.bf16.gmra.mxu0 %v438
        %v1059 = vpop.f32.mrf.mxu0
        %v1060 = vadd.f32 %v971, %v1059
        %v1061 = vpop.f32.mrf.mxu0
        %v1062 = vadd.f32 %v973, %v1061
        %1063 = vmatmul.bf16.gmra.mxu0 %v439
        %v1064 = vpop.f32.mrf.mxu0
        %v1065 = vadd.f32 %v976, %v1064
        %v1066 = vpop.f32.mrf.mxu0
        %v1067 = vadd.f32 %v978, %v1066
        %1068 = vmatmul.bf16.gmra.mxu0 %v440
        %v1069 = vpop.f32.mrf.mxu0
        %v1070 = vadd.f32 %v981, %v1069
        %v1071 = vpop.f32.mrf.mxu0
        %v1072 = vadd.f32 %v983, %v1071
        %1073 = vmatmul.bf16.gmra.mxu0 %v441
        %v1074 = vpop.f32.mrf.mxu0
        %v1075 = vadd.f32 %v986, %v1074
        %v1076 = vpop.f32.mrf.mxu0
        %v1077 = vadd.f32 %v988, %v1076
        %1078 = vmatmul.bf16.gmra.mxu0 %v442
        %v1079 = vpop.f32.mrf.mxu0
        %v1080 = vadd.f32 %v991, %v1079
        %v1081 = vpop.f32.mrf.mxu0
        %v1082 = vadd.f32 %v993, %v1081
        %1083 = vmatmul.bf16.gmra.mxu0 %v443
        %v1084 = vpop.f32.mrf.mxu0
        %v1085 = vadd.f32 %v996, %v1084
        %v1086 = vpop.f32.mrf.mxu0
        %v1087 = vadd.f32 %v998, %v1086
        %1088 = vmatmul.bf16.gmra.mxu0 %v444
        %v1089 = vpop.f32.mrf.mxu0
        %v1090 = vadd.f32 %v1001, %v1089
        %v1091 = vpop.f32.mrf.mxu0
        %v1092 = vadd.f32 %v1003, %v1091
        %1093 = vdwg.mxu0
        %1094 = vmatpush.bf16.msra.mxu0 %v891
        %1095 = vmatpush.bf16.msra.mxu0 %v890
        %1096 = vmatpush.bf16.msra.mxu0 %v889
        %1097 = vmatpush.bf16.msra.mxu0 %v888
        %1098 = vmatpush.bf16.msra.mxu0 %v887
        %1099 = vmatpush.bf16.msra.mxu0 %v886
        %1100 = vmatpush.bf16.msra.mxu0 %v885
        %1101 = vmatpush.bf16.msra.mxu0 %v884
        %1102 = vmatmul.bf16.gmra.mxu0 %v643
        %v1103 = vpop.f32.mrf.mxu0
        %v1104 = vadd.f32 %v1015, %v1103
        %v1105 = vpop.f32.mrf.mxu0
        %v1106 = vadd.f32 %v1017, %v1105
        %1107 = vmatmul.bf16.gmra.mxu0 %v644
        %v1108 = vpop.f32.mrf.mxu0
        %v1109 = vadd.f32 %v1020, %v1108
        %v1110 = vpop.f32.mrf.mxu0
        %v1111 = vadd.f32 %v1022, %v1110
        %1112 = vmatmul.bf16.gmra.mxu0 %v645
        %v1113 = vpop.f32.mrf.mxu0
        %v1114 = vadd.f32 %v1025, %v1113
        %v1115 = vpop.f32.mrf.mxu0
        %v1116 = vadd.f32 %v1027, %v1115
        %1117 = vmatmul.bf16.gmra.mxu0 %v646
        %v1118 = vpop.f32.mrf.mxu0
        %v1119 = vadd.f32 %v1030, %v1118
        %v1120 = vpop.f32.mrf.mxu0
        %v1121 = vadd.f32 %v1032, %v1120
        %1122 = vmatmul.bf16.gmra.mxu0 %v647
        %v1123 = vpop.f32.mrf.mxu0
        %v1124 = vadd.f32 %v1035, %v1123
        %v1125 = vpop.f32.mrf.mxu0
        %v1126 = vadd.f32 %v1037, %v1125
        %1127 = vmatmul.bf16.gmra.mxu0 %v648
        %v1128 = vpop.f32.mrf.mxu0
        %v1129 = vadd.f32 %v1040, %v1128
        %v1130 = vpop.f32.mrf.mxu0
        %v1131 = vadd.f32 %v1042, %v1130
        %1132 = vmatmul.bf16.gmra.mxu0 %v649
        %v1133 = vpop.f32.mrf.mxu0
        %v1134 = vadd.f32 %v1045, %v1133
        %v1135 = vpop.f32.mrf.mxu0
        %v1136 = vadd.f32 %v1047, %v1135
        %1137 = vmatmul.bf16.gmra.mxu0 %v650
        %v1138 = vpop.f32.mrf.mxu0
        %v1139 = vadd.f32 %v1050, %v1138
        %v1140 = vpop.f32.mrf.mxu0
        %v1141 = vadd.f32 %v1052, %v1140
        %1142 = vmatmul.bf16.gmra.mxu0 %v651
        %v1143 = vpop.f32.mrf.mxu0
        %v1144 = vadd.f32 %v1055, %v1143
        %v1145 = vpop.f32.mrf.mxu0
        %v1146 = vadd.f32 %v1057, %v1145
        %1147 = vmatmul.bf16.gmra.mxu0 %v652
        %v1148 = vpop.f32.mrf.mxu0
        %v1149 = vadd.f32 %v1060, %v1148
        %v1150 = vpop.f32.mrf.mxu0
        %v1151 = vadd.f32 %v1062, %v1150
        %1152 = vmatmul.bf16.gmra.mxu0 %v653
        %v1153 = vpop.f32.mrf.mxu0
        %v1154 = vadd.f32 %v1065, %v1153
        %v1155 = vpop.f32.mrf.mxu0
        %v1156 = vadd.f32 %v1067, %v1155
        %1157 = vmatmul.bf16.gmra.mxu0 %v654
        %v1158 = vpop.f32.mrf.mxu0
        %v1159 = vadd.f32 %v1070, %v1158
        %v1160 = vpop.f32.mrf.mxu0
        %v1161 = vadd.f32 %v1072, %v1160
        %1162 = vmatmul.bf16.gmra.mxu0 %v655
        %v1163 = vpop.f32.mrf.mxu0
        %v1164 = vadd.f32 %v1075, %v1163
        %v1165 = vpop.f32.mrf.mxu0
        %v1166 = vadd.f32 %v1077, %v1165
        %1167 = vmatmul.bf16.gmra.mxu0 %v656
        %v1168 = vpop.f32.mrf.mxu0
        %v1169 = vadd.f32 %v1080, %v1168
        %v1170 = vpop.f32.mrf.mxu0
        %v1171 = vadd.f32 %v1082, %v1170
        %1172 = vmatmul.bf16.gmra.mxu0 %v657
        %v1173 = vpop.f32.mrf.mxu0
        %v1174 = vadd.f32 %v1085, %v1173
        %v1175 = vpop.f32.mrf.mxu0
        %v1176 = vadd.f32 %v1087, %v1175
        %1177 = vmatmul.bf16.gmra.mxu0 %v658
        %v1178 = vpop.f32.mrf.mxu0
        %v1179 = vadd.f32 %v1090, %v1178
        %v1180 = vpop.f32.mrf.mxu0
        %v1181 = vadd.f32 %v1092, %v1180
        %1182 = vdwg.mxu0
        %v1231 = vunpack.c.l.b16 %v675
        %v1232 = vunpack.c.l.b16 %v676
        %v1233 = vunpack.c.l.b16 %v677
        %v1234 = vunpack.c.l.b16 %v678
        %v1235 = vunpack.c.l.b16 %v679
        %v1236 = vunpack.c.l.b16 %v680
        %v1237 = vunpack.c.l.b16 %v681
        %v1238 = vunpack.c.l.b16 %v682
        %v1239 = vunpack.c.l.b16 %v683
        %v1240 = vunpack.c.l.b16 %v684
        %v1241 = vunpack.c.l.b16 %v685
        %v1242 = vunpack.c.l.b16 %v686
        %v1243 = vunpack.c.l.b16 %v687
        %v1244 = vunpack.c.l.b16 %v688
        %v1245 = vunpack.c.l.b16 %v689
        %v1246 = vunpack.c.l.b16 %v690
        %v1247 = vunpack.c.l.b16 %v691
        %v1248 = vunpack.c.l.b16 %v692
        %v1249 = vunpack.c.l.b16 %v693
        %v1250 = vunpack.c.l.b16 %v694
        %v1251 = vunpack.c.l.b16 %v695
        %v1252 = vunpack.c.l.b16 %v696
        %v1253 = vunpack.c.l.b16 %v697
        %v1254 = vunpack.c.l.b16 %v698
        %v1255 = vunpack.c.l.b16 %v699
        %v1256 = vunpack.c.l.b16 %v700
        %v1257 = vunpack.c.l.b16 %v701
        %v1258 = vunpack.c.l.b16 %v702
        %v1259 = vunpack.c.l.b16 %v703
        %v1260 = vunpack.c.l.b16 %v704
        %v1261 = vunpack.c.l.b16 %v705
        %v1262 = vunpack.c.l.b16 %v706
        %v1263 = vunpack.c.l.b16 %v707
        %v1264 = vunpack.c.l.b16 %v708
        %v1265 = vunpack.c.l.b16 %v709
        %v1266 = vunpack.c.l.b16 %v710
        %v1267 = vunpack.c.l.b16 %v711
        %v1268 = vunpack.c.l.b16 %v712
        %v1269 = vunpack.c.l.b16 %v713
        %v1270 = vunpack.c.l.b16 %v714
        %v1271 = vunpack.c.l.b16 %v715
        %v1272 = vunpack.c.l.b16 %v716
        %v1273 = vunpack.c.l.b16 %v717
        %v1274 = vunpack.c.l.b16 %v718
        %v1275 = vunpack.c.l.b16 %v719
        %v1276 = vunpack.c.l.b16 %v720
        %v1277 = vunpack.c.l.b16 %v721
        %v1278 = vunpack.c.l.b16 %v722
        %v1279 = vpack.c.b16 %v1232, %v1231
        %v1280 = vpack.c.b16 %v1234, %v1233
        %v1281 = vpack.c.b16 %v1236, %v1235
        %v1282 = vpack.c.b16 %v1238, %v1237
        %v1283 = vpack.c.b16 %v1240, %v1239
        %v1284 = vpack.c.b16 %v1242, %v1241
        %v1285 = vpack.c.b16 %v1244, %v1243
        %v1286 = vpack.c.b16 %v1246, %v1245
        %v1287 = vpack.c.b16 %v1248, %v1247
        %v1288 = vpack.c.b16 %v1250, %v1249
        %v1289 = vpack.c.b16 %v1252, %v1251
        %v1290 = vpack.c.b16 %v1254, %v1253
        %v1291 = vpack.c.b16 %v1256, %v1255
        %v1292 = vpack.c.b16 %v1258, %v1257
        %v1293 = vpack.c.b16 %v1260, %v1259
        %v1294 = vpack.c.b16 %v1262, %v1261
        %v1295 = vpack.c.b16 %v1264, %v1263
        %v1296 = vpack.c.b16 %v1266, %v1265
        %v1297 = vpack.c.b16 %v1268, %v1267
        %v1298 = vpack.c.b16 %v1270, %v1269
        %v1299 = vpack.c.b16 %v1272, %v1271
        %v1300 = vpack.c.b16 %v1274, %v1273
        %v1301 = vpack.c.b16 %v1276, %v1275
        %v1302 = vpack.c.b16 %v1278, %v1277
        %1327 = vmatpush.bf16.msra.mxu0 %v1286
        %1328 = vmatpush.bf16.msra.mxu0 %v1285
        %1329 = vmatpush.bf16.msra.mxu0 %v1284
        %1330 = vmatpush.bf16.msra.mxu0 %v1283
        %1331 = vmatpush.bf16.msra.mxu0 %v1282
        %1332 = vmatpush.bf16.msra.mxu0 %v1281
        %1333 = vmatpush.bf16.msra.mxu0 %v1280
        %1334 = vmatpush.bf16.msra.mxu0 %v1279
        %1335 = vmatmul.bf16.gmra.mxu0 0
        %v1336 = vpop.f32.mrf.mxu0
        %v1337 = vadd.f32 %v1104, %v1336
        %v1338 = vpop.f32.mrf.mxu0
        %v1339 = vadd.f32 %v1106, %v1338
        %1340 = vmatmul.bf16.gmra.mxu0 %v576
        %v1341 = vpop.f32.mrf.mxu0
        %v1342 = vadd.f32 %v1109, %v1341
        %v1343 = vpop.f32.mrf.mxu0
        %v1344 = vadd.f32 %v1111, %v1343
        %1345 = vmatmul.bf16.gmra.mxu0 %v577
        %v1346 = vpop.f32.mrf.mxu0
        %v1347 = vadd.f32 %v1114, %v1346
        %v1348 = vpop.f32.mrf.mxu0
        %v1349 = vadd.f32 %v1116, %v1348
        %1350 = vmatmul.bf16.gmra.mxu0 %v578
        %v1351 = vpop.f32.mrf.mxu0
        %v1352 = vadd.f32 %v1119, %v1351
        %v1353 = vpop.f32.mrf.mxu0
        %v1354 = vadd.f32 %v1121, %v1353
        %1355 = vmatmul.bf16.gmra.mxu0 %v579
        %v1356 = vpop.f32.mrf.mxu0
        %v1357 = vadd.f32 %v1124, %v1356
        %v1358 = vpop.f32.mrf.mxu0
        %v1359 = vadd.f32 %v1126, %v1358
        %1360 = vmatmul.bf16.gmra.mxu0 %v580
        %v1361 = vpop.f32.mrf.mxu0
        %v1362 = vadd.f32 %v1129, %v1361
        %v1363 = vpop.f32.mrf.mxu0
        %v1364 = vadd.f32 %v1131, %v1363
        %1365 = vmatmul.bf16.gmra.mxu0 %v581
        %v1366 = vpop.f32.mrf.mxu0
        %v1367 = vadd.f32 %v1134, %v1366
        %v1368 = vpop.f32.mrf.mxu0
        %v1369 = vadd.f32 %v1136, %v1368
        %1370 = vmatmul.bf16.gmra.mxu0 %v582
        %v1371 = vpop.f32.mrf.mxu0
        %v1372 = vadd.f32 %v1139, %v1371
        %v1373 = vpop.f32.mrf.mxu0
        %v1374 = vadd.f32 %v1141, %v1373
        %1375 = vmatmul.bf16.gmra.mxu0 %v583
        %v1376 = vpop.f32.mrf.mxu0
        %v1377 = vadd.f32 %v1144, %v1376
        %v1378 = vpop.f32.mrf.mxu0
        %v1379 = vadd.f32 %v1146, %v1378
        %1380 = vmatmul.bf16.gmra.mxu0 %v584
        %v1381 = vpop.f32.mrf.mxu0
        %v1382 = vadd.f32 %v1149, %v1381
        %v1383 = vpop.f32.mrf.mxu0
        %v1384 = vadd.f32 %v1151, %v1383
        %1385 = vmatmul.bf16.gmra.mxu0 %v585
        %v1386 = vpop.f32.mrf.mxu0
        %v1387 = vadd.f32 %v1154, %v1386
        %v1388 = vpop.f32.mrf.mxu0
        %v1389 = vadd.f32 %v1156, %v1388
        %1390 = vmatmul.bf16.gmra.mxu0 %v586
        %v1391 = vpop.f32.mrf.mxu0
        %v1392 = vadd.f32 %v1159, %v1391
        %v1393 = vpop.f32.mrf.mxu0
        %v1394 = vadd.f32 %v1161, %v1393
        %1395 = vmatmul.bf16.gmra.mxu0 %v587
        %v1396 = vpop.f32.mrf.mxu0
        %v1397 = vadd.f32 %v1164, %v1396
        %v1398 = vpop.f32.mrf.mxu0
        %v1399 = vadd.f32 %v1166, %v1398
        %1400 = vmatmul.bf16.gmra.mxu0 %v588
        %v1401 = vpop.f32.mrf.mxu0
        %v1402 = vadd.f32 %v1169, %v1401
        %v1403 = vpop.f32.mrf.mxu0
        %v1404 = vadd.f32 %v1171, %v1403
        %1405 = vmatmul.bf16.gmra.mxu0 %v589
        %v1406 = vpop.f32.mrf.mxu0
        %v1407 = vadd.f32 %v1174, %v1406
        %v1408 = vpop.f32.mrf.mxu0
        %v1409 = vadd.f32 %v1176, %v1408
        %1410 = vmatmul.bf16.gmra.mxu0 %v590
        %v1411 = vpop.f32.mrf.mxu0
        %v1412 = vadd.f32 %v1179, %v1411
        %v1413 = vpop.f32.mrf.mxu0
        %v1414 = vadd.f32 %v1181, %v1413
        %1415 = vdwg.mxu0
        %1416 = vmatpush.bf16.msra.mxu0 %v1294
        %1417 = vmatpush.bf16.msra.mxu0 %v1293
        %1418 = vmatpush.bf16.msra.mxu0 %v1292
        %1419 = vmatpush.bf16.msra.mxu0 %v1291
        %1420 = vmatpush.bf16.msra.mxu0 %v1290
        %1421 = vmatpush.bf16.msra.mxu0 %v1289
        %1422 = vmatpush.bf16.msra.mxu0 %v1288
        %1423 = vmatpush.bf16.msra.mxu0 %v1287
        %1424 = vmatmul.bf16.gmra.mxu0 0
        %v1425 = vpop.f32.mrf.mxu0
        %v1426 = vadd.f32 %v1337, %v1425
        %v1427 = vpop.f32.mrf.mxu0
        %v1428 = vadd.f32 %v1339, %v1427
        %1429 = vmatmul.bf16.gmra.mxu0 %v429
        %v1430 = vpop.f32.mrf.mxu0
        %v1431 = vadd.f32 %v1342, %v1430
        %v1432 = vpop.f32.mrf.mxu0
        %v1433 = vadd.f32 %v1344, %v1432
        %1434 = vmatmul.bf16.gmra.mxu0 %v430
        %v1435 = vpop.f32.mrf.mxu0
        %v1436 = vadd.f32 %v1347, %v1435
        %v1437 = vpop.f32.mrf.mxu0
        %v1438 = vadd.f32 %v1349, %v1437
        %1439 = vmatmul.bf16.gmra.mxu0 %v431
        %v1440 = vpop.f32.mrf.mxu0
        %v1441 = vadd.f32 %v1352, %v1440
        %v1442 = vpop.f32.mrf.mxu0
        %v1443 = vadd.f32 %v1354, %v1442
        %1444 = vmatmul.bf16.gmra.mxu0 %v432
        %v1445 = vpop.f32.mrf.mxu0
        %v1446 = vadd.f32 %v1357, %v1445
        %v1447 = vpop.f32.mrf.mxu0
        %v1448 = vadd.f32 %v1359, %v1447
        %1449 = vmatmul.bf16.gmra.mxu0 %v433
        %v1450 = vpop.f32.mrf.mxu0
        %v1451 = vadd.f32 %v1362, %v1450
        %v1452 = vpop.f32.mrf.mxu0
        %v1453 = vadd.f32 %v1364, %v1452
        %1454 = vmatmul.bf16.gmra.mxu0 %v434
        %v1455 = vpop.f32.mrf.mxu0
        %v1456 = vadd.f32 %v1367, %v1455
        %v1457 = vpop.f32.mrf.mxu0
        %v1458 = vadd.f32 %v1369, %v1457
        %1459 = vmatmul.bf16.gmra.mxu0 %v435
        %v1460 = vpop.f32.mrf.mxu0
        %v1461 = vadd.f32 %v1372, %v1460
        %v1462 = vpop.f32.mrf.mxu0
        %v1463 = vadd.f32 %v1374, %v1462
        %1464 = vmatmul.bf16.gmra.mxu0 %v436
        %v1465 = vpop.f32.mrf.mxu0
        %v1466 = vadd.f32 %v1377, %v1465
        %v1467 = vpop.f32.mrf.mxu0
        %v1468 = vadd.f32 %v1379, %v1467
        %1469 = vmatmul.bf16.gmra.mxu0 %v437
        %v1470 = vpop.f32.mrf.mxu0
        %v1471 = vadd.f32 %v1382, %v1470
        %v1472 = vpop.f32.mrf.mxu0
        %v1473 = vadd.f32 %v1384, %v1472
        %1474 = vmatmul.bf16.gmra.mxu0 %v438
        %v1475 = vpop.f32.mrf.mxu0
        %v1476 = vadd.f32 %v1387, %v1475
        %v1477 = vpop.f32.mrf.mxu0
        %v1478 = vadd.f32 %v1389, %v1477
        %1479 = vmatmul.bf16.gmra.mxu0 %v439
        %v1480 = vpop.f32.mrf.mxu0
        %v1481 = vadd.f32 %v1392, %v1480
        %v1482 = vpop.f32.mrf.mxu0
        %v1483 = vadd.f32 %v1394, %v1482
        %1484 = vmatmul.bf16.gmra.mxu0 %v440
        %v1485 = vpop.f32.mrf.mxu0
        %v1486 = vadd.f32 %v1397, %v1485
        %v1487 = vpop.f32.mrf.mxu0
        %v1488 = vadd.f32 %v1399, %v1487
        %1489 = vmatmul.bf16.gmra.mxu0 %v441
        %v1490 = vpop.f32.mrf.mxu0
        %v1491 = vadd.f32 %v1402, %v1490
        %v1492 = vpop.f32.mrf.mxu0
        %v1493 = vadd.f32 %v1404, %v1492
        %1494 = vmatmul.bf16.gmra.mxu0 %v442
        %v1495 = vpop.f32.mrf.mxu0
        %v1496 = vadd.f32 %v1407, %v1495
        %v1497 = vpop.f32.mrf.mxu0
        %v1498 = vadd.f32 %v1409, %v1497
        %1499 = vmatmul.bf16.gmra.mxu0 %v443
        %v1500 = vpop.f32.mrf.mxu0
        %v1501 = vadd.f32 %v1412, %v1500
        %v1502 = vpop.f32.mrf.mxu0
        %v1503 = vadd.f32 %v1414, %v1502
        %1504 = vdwg.mxu0
        %1505 = vmatpush.bf16.msra.mxu0 %v1302
        %1506 = vmatpush.bf16.msra.mxu0 %v1301
        %1507 = vmatpush.bf16.msra.mxu0 %v1300
        %1508 = vmatpush.bf16.msra.mxu0 %v1299
        %1509 = vmatpush.bf16.msra.mxu0 %v1298
        %1510 = vmatpush.bf16.msra.mxu0 %v1297
        %1511 = vmatpush.bf16.msra.mxu0 %v1296
        %1512 = vmatpush.bf16.msra.mxu0 %v1295
        %1513 = vmatmul.bf16.gmra.mxu0 0
        %v1514 = vpop.f32.mrf.mxu0
        %v1515 = vadd.f32 %v1426, %v1514
        %v1516 = vpop.f32.mrf.mxu0
        %v1517 = vadd.f32 %v1428, %v1516
        %1518 = vmatmul.bf16.gmra.mxu0 %v643
        %v1519 = vpop.f32.mrf.mxu0
        %v1520 = vadd.f32 %v1431, %v1519
        %v1521 = vpop.f32.mrf.mxu0
        %v1522 = vadd.f32 %v1433, %v1521
        %1523 = vmatmul.bf16.gmra.mxu0 %v644
        %v1524 = vpop.f32.mrf.mxu0
        %v1525 = vadd.f32 %v1436, %v1524
        %v1526 = vpop.f32.mrf.mxu0
        %v1527 = vadd.f32 %v1438, %v1526
        %1528 = vmatmul.bf16.gmra.mxu0 %v645
        %v1529 = vpop.f32.mrf.mxu0
        %v1530 = vadd.f32 %v1441, %v1529
        %v1531 = vpop.f32.mrf.mxu0
        %v1532 = vadd.f32 %v1443, %v1531
        %1533 = vmatmul.bf16.gmra.mxu0 %v646
        %v1534 = vpop.f32.mrf.mxu0
        %v1535 = vadd.f32 %v1446, %v1534
        %v1536 = vpop.f32.mrf.mxu0
        %v1537 = vadd.f32 %v1448, %v1536
        %1538 = vmatmul.bf16.gmra.mxu0 %v647
        %v1539 = vpop.f32.mrf.mxu0
        %v1540 = vadd.f32 %v1451, %v1539
        %v1541 = vpop.f32.mrf.mxu0
        %v1542 = vadd.f32 %v1453, %v1541
        %1543 = vmatmul.bf16.gmra.mxu0 %v648
        %v1544 = vpop.f32.mrf.mxu0
        %v1545 = vadd.f32 %v1456, %v1544
        %v1546 = vpop.f32.mrf.mxu0
        %v1547 = vadd.f32 %v1458, %v1546
        %1548 = vmatmul.bf16.gmra.mxu0 %v649
        %v1549 = vpop.f32.mrf.mxu0
        %v1550 = vadd.f32 %v1461, %v1549
        %v1551 = vpop.f32.mrf.mxu0
        %v1552 = vadd.f32 %v1463, %v1551
        %1553 = vmatmul.bf16.gmra.mxu0 %v650
        %v1554 = vpop.f32.mrf.mxu0
        %v1555 = vadd.f32 %v1466, %v1554
        %v1556 = vpop.f32.mrf.mxu0
        %v1557 = vadd.f32 %v1468, %v1556
        %1558 = vmatmul.bf16.gmra.mxu0 %v651
        %v1559 = vpop.f32.mrf.mxu0
        %v1560 = vadd.f32 %v1471, %v1559
        %v1561 = vpop.f32.mrf.mxu0
        %v1562 = vadd.f32 %v1473, %v1561
        %1563 = vmatmul.bf16.gmra.mxu0 %v652
        %v1564 = vpop.f32.mrf.mxu0
        %v1565 = vadd.f32 %v1476, %v1564
        %v1566 = vpop.f32.mrf.mxu0
        %v1567 = vadd.f32 %v1478, %v1566
        %1568 = vmatmul.bf16.gmra.mxu0 %v653
        %v1569 = vpop.f32.mrf.mxu0
        %v1570 = vadd.f32 %v1481, %v1569
        %v1571 = vpop.f32.mrf.mxu0
        %v1572 = vadd.f32 %v1483, %v1571
        %1573 = vmatmul.bf16.gmra.mxu0 %v654
        %v1574 = vpop.f32.mrf.mxu0
        %v1575 = vadd.f32 %v1486, %v1574
        %v1576 = vpop.f32.mrf.mxu0
        %v1577 = vadd.f32 %v1488, %v1576
        %1578 = vmatmul.bf16.gmra.mxu0 %v655
        %v1579 = vpop.f32.mrf.mxu0
        %v1580 = vadd.f32 %v1491, %v1579
        %v1581 = vpop.f32.mrf.mxu0
        %v1582 = vadd.f32 %v1493, %v1581
        %1583 = vmatmul.bf16.gmra.mxu0 %v656
        %v1584 = vpop.f32.mrf.mxu0
        %v1585 = vadd.f32 %v1496, %v1584
        %v1586 = vpop.f32.mrf.mxu0
        %v1587 = vadd.f32 %v1498, %v1586
        %1588 = vmatmul.bf16.gmra.mxu0 %v657
        %v1589 = vpop.f32.mrf.mxu0
        %v1590 = vadd.f32 %v1501, %v1589
        %v1591 = vpop.f32.mrf.mxu0
        %v1592 = vadd.f32 %v1503, %v1591
        %1593 = vdwg.mxu0
        %s1594 = scalar_lea.vmem [#allocation5], 384
        %v1595 = vld [vmem:[%s1594] sm:$0xf]
        %v1596 = vld [vmem:[%s1594 + $0x4] sm:$0xf]
        %v1597 = vld [vmem:[%s1594 + $0x8] sm:$0xf]
        %v1598 = vld [vmem:[%s1594 + $0xc] sm:$0xf]
        %v1599 = vld [vmem:[%s1594 + $0x10] sm:$0xf]
        %v1600 = vld [vmem:[%s1594 + $0x14] sm:$0xf]
        %v1601 = vld [vmem:[%s1594 + $0x18] sm:$0xf]
        %v1602 = vld [vmem:[%s1594 + $0x1c] sm:$0xf]
        %v1603 = vld [vmem:[%s1594 + $0x20] sm:$0xf]
        %v1604 = vld [vmem:[%s1594 + $0x24] sm:$0xf]
        %v1605 = vld [vmem:[%s1594 + $0x28] sm:$0xf]
        %v1606 = vld [vmem:[%s1594 + $0x2c] sm:$0xf]
        %v1607 = vld [vmem:[%s1594 + $0x30] sm:$0xf]
        %v1608 = vld [vmem:[%s1594 + $0x34] sm:$0xf]
        %v1609 = vld [vmem:[%s1594 + $0x38] sm:$0xf]
        %v1610 = vld [vmem:[%s1594 + $0x3c] sm:$0xf]
        %v1611 = vld [vmem:[%s1594 + $0x40] sm:$0xf]
        %v1612 = vld [vmem:[%s1594 + $0x44] sm:$0xf]
        %v1613 = vld [vmem:[%s1594 + $0x48] sm:$0xf]
        %v1614 = vld [vmem:[%s1594 + $0x4c] sm:$0xf]
        %v1615 = vld [vmem:[%s1594 + $0x50] sm:$0xf]
        %v1616 = vld [vmem:[%s1594 + $0x54] sm:$0xf]
        %v1617 = vld [vmem:[%s1594 + $0x58] sm:$0xf]
        %v1618 = vld [vmem:[%s1594 + $0x5c] sm:$0xf]
        %v1619 = vld [vmem:[%s1594 + $0x60] sm:$0xf]
        %v1620 = vld [vmem:[%s1594 + $0x64] sm:$0xf]
        %v1621 = vld [vmem:[%s1594 + $0x68] sm:$0xf]
        %v1622 = vld [vmem:[%s1594 + $0x6c] sm:$0xf]
        %v1623 = vld [vmem:[%s1594 + $0x70] sm:$0xf]
        %v1624 = vld [vmem:[%s1594 + $0x74] sm:$0xf]
        %v1625 = vld [vmem:[%s1594 + $0x78] sm:$0xf]
        %v1626 = vld [vmem:[%s1594 + $0x7c] sm:$0xf]
        %v1627 = vld [vmem:[%s1594 + $0x80] sm:$0xf]
        %v1628 = vld [vmem:[%s1594 + $0x84] sm:$0xf]
        %v1629 = vld [vmem:[%s1594 + $0x88] sm:$0xf]
        %v1630 = vld [vmem:[%s1594 + $0x8c] sm:$0xf]
        %v1631 = vld [vmem:[%s1594 + $0x90] sm:$0xf]
        %v1632 = vld [vmem:[%s1594 + $0x94] sm:$0xf]
        %v1633 = vld [vmem:[%s1594 + $0x98] sm:$0xf]
        %v1634 = vld [vmem:[%s1594 + $0x9c] sm:$0xf]
        %v1635 = vld [vmem:[%s1594 + $0xa0] sm:$0xf]
        %v1636 = vld [vmem:[%s1594 + $0xa4] sm:$0xf]
        %v1637 = vld [vmem:[%s1594 + $0xa8] sm:$0xf]
        %v1638 = vld [vmem:[%s1594 + $0xac] sm:$0xf]
        %v1639 = vld [vmem:[%s1594 + $0xb0] sm:$0xf]
        %v1640 = vld [vmem:[%s1594 + $0xb4] sm:$0xf]
        %v1641 = vld [vmem:[%s1594 + $0xb8] sm:$0xf]
        %v1642 = vld [vmem:[%s1594 + $0xbc] sm:$0xf]
        %v1691 = vunpack.c.l.b16 %v1595
        %v1692 = vunpack.c.l.b16 %v1596
        %v1693 = vunpack.c.l.b16 %v1597
        %v1694 = vunpack.c.l.b16 %v1598
        %v1695 = vunpack.c.l.b16 %v1599
        %v1696 = vunpack.c.l.b16 %v1600
        %v1697 = vunpack.c.l.b16 %v1601
        %v1698 = vunpack.c.l.b16 %v1602
        %v1699 = vunpack.c.l.b16 %v1603
        %v1700 = vunpack.c.l.b16 %v1604
        %v1701 = vunpack.c.l.b16 %v1605
        %v1702 = vunpack.c.l.b16 %v1606
        %v1703 = vunpack.c.l.b16 %v1607
        %v1704 = vunpack.c.l.b16 %v1608
        %v1705 = vunpack.c.l.b16 %v1609
        %v1706 = vunpack.c.l.b16 %v1610
        %v1707 = vunpack.c.l.b16 %v1611
        %v1708 = vunpack.c.l.b16 %v1612
        %v1709 = vunpack.c.l.b16 %v1613
        %v1710 = vunpack.c.l.b16 %v1614
        %v1711 = vunpack.c.l.b16 %v1615
        %v1712 = vunpack.c.l.b16 %v1616
        %v1713 = vunpack.c.l.b16 %v1617
        %v1714 = vunpack.c.l.b16 %v1618
        %v1715 = vunpack.c.l.b16 %v1619
        %v1716 = vunpack.c.l.b16 %v1620
        %v1717 = vunpack.c.l.b16 %v1621
        %v1718 = vunpack.c.l.b16 %v1622
        %v1719 = vunpack.c.l.b16 %v1623
        %v1720 = vunpack.c.l.b16 %v1624
        %v1721 = vunpack.c.l.b16 %v1625
        %v1722 = vunpack.c.l.b16 %v1626
        %v1723 = vunpack.c.l.b16 %v1627
        %v1724 = vunpack.c.l.b16 %v1628
        %v1725 = vunpack.c.l.b16 %v1629
        %v1726 = vunpack.c.l.b16 %v1630
        %v1727 = vunpack.c.l.b16 %v1631
        %v1728 = vunpack.c.l.b16 %v1632
        %v1729 = vunpack.c.l.b16 %v1633
        %v1730 = vunpack.c.l.b16 %v1634
        %v1731 = vunpack.c.l.b16 %v1635
        %v1732 = vunpack.c.l.b16 %v1636
        %v1733 = vunpack.c.l.b16 %v1637
        %v1734 = vunpack.c.l.b16 %v1638
        %v1735 = vunpack.c.l.b16 %v1639
        %v1736 = vunpack.c.l.b16 %v1640
        %v1737 = vunpack.c.l.b16 %v1641
        %v1738 = vunpack.c.l.b16 %v1642
        %v1739 = vpack.c.b16 %v1692, %v1691
        %v1740 = vpack.c.b16 %v1694, %v1693
        %v1741 = vpack.c.b16 %v1696, %v1695
        %v1742 = vpack.c.b16 %v1698, %v1697
        %v1743 = vpack.c.b16 %v1700, %v1699
        %v1744 = vpack.c.b16 %v1702, %v1701
        %v1745 = vpack.c.b16 %v1704, %v1703
        %v1746 = vpack.c.b16 %v1706, %v1705
        %v1747 = vpack.c.b16 %v1708, %v1707
        %v1748 = vpack.c.b16 %v1710, %v1709
        %v1749 = vpack.c.b16 %v1712, %v1711
        %v1750 = vpack.c.b16 %v1714, %v1713
        %v1751 = vpack.c.b16 %v1716, %v1715
        %v1752 = vpack.c.b16 %v1718, %v1717
        %v1753 = vpack.c.b16 %v1720, %v1719
        %v1754 = vpack.c.b16 %v1722, %v1721
        %v1755 = vpack.c.b16 %v1724, %v1723
        %v1756 = vpack.c.b16 %v1726, %v1725
        %v1757 = vpack.c.b16 %v1728, %v1727
        %v1758 = vpack.c.b16 %v1730, %v1729
        %v1759 = vpack.c.b16 %v1732, %v1731
        %v1760 = vpack.c.b16 %v1734, %v1733
        %v1761 = vpack.c.b16 %v1736, %v1735
        %v1762 = vpack.c.b16 %v1738, %v1737
        %1787 = vmatpush.bf16.msra.mxu0 %v1746
        %1788 = vmatpush.bf16.msra.mxu0 %v1745
        %1789 = vmatpush.bf16.msra.mxu0 %v1744
        %1790 = vmatpush.bf16.msra.mxu0 %v1743
        %1791 = vmatpush.bf16.msra.mxu0 %v1742
        %1792 = vmatpush.bf16.msra.mxu0 %v1741
        %1793 = vmatpush.bf16.msra.mxu0 %v1740
        %1794 = vmatpush.bf16.msra.mxu0 %v1739
        %1795 = vmatmul.bf16.gmra.mxu0 %v577
        %v1796 = vpop.f32.mrf.mxu0
        %v1797 = vadd.f32 0.0, %v1796
        %v1798 = vpop.f32.mrf.mxu0
        %v1799 = vadd.f32 0.0, %v1798
        %1800 = vmatmul.bf16.gmra.mxu0 %v578
        %v1801 = vpop.f32.mrf.mxu0
        %v1802 = vadd.f32 0.0, %v1801
        %v1803 = vpop.f32.mrf.mxu0
        %v1804 = vadd.f32 0.0, %v1803
        %1805 = vmatmul.bf16.gmra.mxu0 %v579
        %v1806 = vpop.f32.mrf.mxu0
        %v1807 = vadd.f32 0.0, %v1806
        %v1808 = vpop.f32.mrf.mxu0
        %v1809 = vadd.f32 0.0, %v1808
        %1810 = vmatmul.bf16.gmra.mxu0 %v580
        %v1811 = vpop.f32.mrf.mxu0
        %v1812 = vadd.f32 0.0, %v1811
        %v1813 = vpop.f32.mrf.mxu0
        %v1814 = vadd.f32 0.0, %v1813
        %1815 = vmatmul.bf16.gmra.mxu0 %v581
        %v1816 = vpop.f32.mrf.mxu0
        %v1817 = vadd.f32 0.0, %v1816
        %v1818 = vpop.f32.mrf.mxu0
        %v1819 = vadd.f32 0.0, %v1818
        %1820 = vmatmul.bf16.gmra.mxu0 %v582
        %v1821 = vpop.f32.mrf.mxu0
        %v1822 = vadd.f32 0.0, %v1821
        %v1823 = vpop.f32.mrf.mxu0
        %v1824 = vadd.f32 0.0, %v1823
        %1825 = vmatmul.bf16.gmra.mxu0 %v583
        %v1826 = vpop.f32.mrf.mxu0
        %v1827 = vadd.f32 0.0, %v1826
        %v1828 = vpop.f32.mrf.mxu0
        %v1829 = vadd.f32 0.0, %v1828
        %1830 = vmatmul.bf16.gmra.mxu0 %v584
        %v1831 = vpop.f32.mrf.mxu0
        %v1832 = vadd.f32 0.0, %v1831
        %v1833 = vpop.f32.mrf.mxu0
        %v1834 = vadd.f32 0.0, %v1833
        %1835 = vmatmul.bf16.gmra.mxu0 %v585
        %v1836 = vpop.f32.mrf.mxu0
        %v1837 = vadd.f32 0.0, %v1836
        %v1838 = vpop.f32.mrf.mxu0
        %v1839 = vadd.f32 0.0, %v1838
        %1840 = vmatmul.bf16.gmra.mxu0 %v586
        %v1841 = vpop.f32.mrf.mxu0
        %v1842 = vadd.f32 0.0, %v1841
        %v1843 = vpop.f32.mrf.mxu0
        %v1844 = vadd.f32 0.0, %v1843
        %1845 = vmatmul.bf16.gmra.mxu0 %v587
        %v1846 = vpop.f32.mrf.mxu0
        %v1847 = vadd.f32 0.0, %v1846
        %v1848 = vpop.f32.mrf.mxu0
        %v1849 = vadd.f32 0.0, %v1848
        %1850 = vmatmul.bf16.gmra.mxu0 %v588
        %v1851 = vpop.f32.mrf.mxu0
        %v1852 = vadd.f32 0.0, %v1851
        %v1853 = vpop.f32.mrf.mxu0
        %v1854 = vadd.f32 0.0, %v1853
        %1855 = vmatmul.bf16.gmra.mxu0 %v589
        %v1856 = vpop.f32.mrf.mxu0
        %v1857 = vadd.f32 0.0, %v1856
        %v1858 = vpop.f32.mrf.mxu0
        %v1859 = vadd.f32 0.0, %v1858
        %1860 = vmatmul.bf16.gmra.mxu0 %v590
        %v1861 = vpop.f32.mrf.mxu0
        %v1862 = vadd.f32 0.0, %v1861
        %v1863 = vpop.f32.mrf.mxu0
        %v1864 = vadd.f32 0.0, %v1863
        %1865 = vmatmul.bf16.gmra.mxu0 %v591
        %v1866 = vpop.f32.mrf.mxu0
        %v1867 = vadd.f32 0.0, %v1866
        %v1868 = vpop.f32.mrf.mxu0
        %v1869 = vadd.f32 0.0, %v1868
        %1870 = vmatmul.bf16.gmra.mxu0 0
        %v1871 = vpop.f32.mrf.mxu0
        %v1872 = vadd.f32 0.0, %v1871
        %v1873 = vpop.f32.mrf.mxu0
        %v1874 = vadd.f32 0.0, %v1873
        %1875 = vdwg.mxu0
        %1876 = vmatpush.bf16.msra.mxu0 %v1754
        %1877 = vmatpush.bf16.msra.mxu0 %v1753
        %1878 = vmatpush.bf16.msra.mxu0 %v1752
        %1879 = vmatpush.bf16.msra.mxu0 %v1751
        %1880 = vmatpush.bf16.msra.mxu0 %v1750
        %1881 = vmatpush.bf16.msra.mxu0 %v1749
        %1882 = vmatpush.bf16.msra.mxu0 %v1748
        %1883 = vmatpush.bf16.msra.mxu0 %v1747
        %1884 = vmatmul.bf16.gmra.mxu0 %v430
        %v1885 = vpop.f32.mrf.mxu0
        %v1886 = vadd.f32 %v1797, %v1885
        %v1887 = vpop.f32.mrf.mxu0
        %v1888 = vadd.f32 %v1799, %v1887
        %1889 = vmatmul.bf16.gmra.mxu0 %v431
        %v1890 = vpop.f32.mrf.mxu0
        %v1891 = vadd.f32 %v1802, %v1890
        %v1892 = vpop.f32.mrf.mxu0
        %v1893 = vadd.f32 %v1804, %v1892
        %1894 = vmatmul.bf16.gmra.mxu0 %v432
        %v1895 = vpop.f32.mrf.mxu0
        %v1896 = vadd.f32 %v1807, %v1895
        %v1897 = vpop.f32.mrf.mxu0
        %v1898 = vadd.f32 %v1809, %v1897
        %1899 = vmatmul.bf16.gmra.mxu0 %v433
        %v1900 = vpop.f32.mrf.mxu0
        %v1901 = vadd.f32 %v1812, %v1900
        %v1902 = vpop.f32.mrf.mxu0
        %v1903 = vadd.f32 %v1814, %v1902
        %1904 = vmatmul.bf16.gmra.mxu0 %v434
        %v1905 = vpop.f32.mrf.mxu0
        %v1906 = vadd.f32 %v1817, %v1905
        %v1907 = vpop.f32.mrf.mxu0
        %v1908 = vadd.f32 %v1819, %v1907
        %1909 = vmatmul.bf16.gmra.mxu0 %v435
        %v1910 = vpop.f32.mrf.mxu0
        %v1911 = vadd.f32 %v1822, %v1910
        %v1912 = vpop.f32.mrf.mxu0
        %v1913 = vadd.f32 %v1824, %v1912
        %1914 = vmatmul.bf16.gmra.mxu0 %v436
        %v1915 = vpop.f32.mrf.mxu0
        %v1916 = vadd.f32 %v1827, %v1915
        %v1917 = vpop.f32.mrf.mxu0
        %v1918 = vadd.f32 %v1829, %v1917
        %1919 = vmatmul.bf16.gmra.mxu0 %v437
        %v1920 = vpop.f32.mrf.mxu0
        %v1921 = vadd.f32 %v1832, %v1920
        %v1922 = vpop.f32.mrf.mxu0
        %v1923 = vadd.f32 %v1834, %v1922
        %1924 = vmatmul.bf16.gmra.mxu0 %v438
        %v1925 = vpop.f32.mrf.mxu0
        %v1926 = vadd.f32 %v1837, %v1925
        %v1927 = vpop.f32.mrf.mxu0
        %v1928 = vadd.f32 %v1839, %v1927
        %1929 = vmatmul.bf16.gmra.mxu0 %v439
        %v1930 = vpop.f32.mrf.mxu0
        %v1931 = vadd.f32 %v1842, %v1930
        %v1932 = vpop.f32.mrf.mxu0
        %v1933 = vadd.f32 %v1844, %v1932
        %1934 = vmatmul.bf16.gmra.mxu0 %v440
        %v1935 = vpop.f32.mrf.mxu0
        %v1936 = vadd.f32 %v1847, %v1935
        %v1937 = vpop.f32.mrf.mxu0
        %v1938 = vadd.f32 %v1849, %v1937
        %1939 = vmatmul.bf16.gmra.mxu0 %v441
        %v1940 = vpop.f32.mrf.mxu0
        %v1941 = vadd.f32 %v1852, %v1940
        %v1942 = vpop.f32.mrf.mxu0
        %v1943 = vadd.f32 %v1854, %v1942
        %1944 = vmatmul.bf16.gmra.mxu0 %v442
        %v1945 = vpop.f32.mrf.mxu0
        %v1946 = vadd.f32 %v1857, %v1945
        %v1947 = vpop.f32.mrf.mxu0
        %v1948 = vadd.f32 %v1859, %v1947
        %1949 = vmatmul.bf16.gmra.mxu0 %v443
        %v1950 = vpop.f32.mrf.mxu0
        %v1951 = vadd.f32 %v1862, %v1950
        %v1952 = vpop.f32.mrf.mxu0
        %v1953 = vadd.f32 %v1864, %v1952
        %1954 = vmatmul.bf16.gmra.mxu0 %v444
        %v1955 = vpop.f32.mrf.mxu0
        %v1956 = vadd.f32 %v1867, %v1955
        %v1957 = vpop.f32.mrf.mxu0
        %v1958 = vadd.f32 %v1869, %v1957
        %1959 = vmatmul.bf16.gmra.mxu0 0
        %v1960 = vpop.f32.mrf.mxu0
        %v1961 = vadd.f32 %v1872, %v1960
        %v1962 = vpop.f32.mrf.mxu0
        %v1963 = vadd.f32 %v1874, %v1962
        %1964 = vdwg.mxu0
        %1965 = vmatpush.bf16.msra.mxu0 %v1762
        %1966 = vmatpush.bf16.msra.mxu0 %v1761
        %1967 = vmatpush.bf16.msra.mxu0 %v1760
        %1968 = vmatpush.bf16.msra.mxu0 %v1759
        %1969 = vmatpush.bf16.msra.mxu0 %v1758
        %1970 = vmatpush.bf16.msra.mxu0 %v1757
        %1971 = vmatpush.bf16.msra.mxu0 %v1756
        %1972 = vmatpush.bf16.msra.mxu0 %v1755
        %1973 = vmatmul.bf16.gmra.mxu0 %v644
        %v1974 = vpop.f32.mrf.mxu0
        %v1975 = vadd.f32 %v1886, %v1974
        %v1976 = vpop.f32.mrf.mxu0
        %v1977 = vadd.f32 %v1888, %v1976
        %1978 = vmatmul.bf16.gmra.mxu0 %v645
        %v1979 = vpop.f32.mrf.mxu0
        %v1980 = vadd.f32 %v1891, %v1979
        %v1981 = vpop.f32.mrf.mxu0
        %v1982 = vadd.f32 %v1893, %v1981
        %1983 = vmatmul.bf16.gmra.mxu0 %v646
        %v1984 = vpop.f32.mrf.mxu0
        %v1985 = vadd.f32 %v1896, %v1984
        %v1986 = vpop.f32.mrf.mxu0
        %v1987 = vadd.f32 %v1898, %v1986
        %1988 = vmatmul.bf16.gmra.mxu0 %v647
        %v1989 = vpop.f32.mrf.mxu0
        %v1990 = vadd.f32 %v1901, %v1989
        %v1991 = vpop.f32.mrf.mxu0
        %v1992 = vadd.f32 %v1903, %v1991
        %1993 = vmatmul.bf16.gmra.mxu0 %v648
        %v1994 = vpop.f32.mrf.mxu0
        %v1995 = vadd.f32 %v1906, %v1994
        %v1996 = vpop.f32.mrf.mxu0
        %v1997 = vadd.f32 %v1908, %v1996
        %1998 = vmatmul.bf16.gmra.mxu0 %v649
        %v1999 = vpop.f32.mrf.mxu0
        %v2000 = vadd.f32 %v1911, %v1999
        %v2001 = vpop.f32.mrf.mxu0
        %v2002 = vadd.f32 %v1913, %v2001
        %2003 = vmatmul.bf16.gmra.mxu0 %v650
        %v2004 = vpop.f32.mrf.mxu0
        %v2005 = vadd.f32 %v1916, %v2004
        %v2006 = vpop.f32.mrf.mxu0
        %v2007 = vadd.f32 %v1918, %v2006
        %2008 = vmatmul.bf16.gmra.mxu0 %v651
        %v2009 = vpop.f32.mrf.mxu0
        %v2010 = vadd.f32 %v1921, %v2009
        %v2011 = vpop.f32.mrf.mxu0
        %v2012 = vadd.f32 %v1923, %v2011
        %2013 = vmatmul.bf16.gmra.mxu0 %v652
        %v2014 = vpop.f32.mrf.mxu0
        %v2015 = vadd.f32 %v1926, %v2014
        %v2016 = vpop.f32.mrf.mxu0
        %v2017 = vadd.f32 %v1928, %v2016
        %2018 = vmatmul.bf16.gmra.mxu0 %v653
        %v2019 = vpop.f32.mrf.mxu0
        %v2020 = vadd.f32 %v1931, %v2019
        %v2021 = vpop.f32.mrf.mxu0
        %v2022 = vadd.f32 %v1933, %v2021
        %2023 = vmatmul.bf16.gmra.mxu0 %v654
        %v2024 = vpop.f32.mrf.mxu0
        %v2025 = vadd.f32 %v1936, %v2024
        %v2026 = vpop.f32.mrf.mxu0
        %v2027 = vadd.f32 %v1938, %v2026
        %2028 = vmatmul.bf16.gmra.mxu0 %v655
        %v2029 = vpop.f32.mrf.mxu0
        %v2030 = vadd.f32 %v1941, %v2029
        %v2031 = vpop.f32.mrf.mxu0
        %v2032 = vadd.f32 %v1943, %v2031
        %2033 = vmatmul.bf16.gmra.mxu0 %v656
        %v2034 = vpop.f32.mrf.mxu0
        %v2035 = vadd.f32 %v1946, %v2034
        %v2036 = vpop.f32.mrf.mxu0
        %v2037 = vadd.f32 %v1948, %v2036
        %2038 = vmatmul.bf16.gmra.mxu0 %v657
        %v2039 = vpop.f32.mrf.mxu0
        %v2040 = vadd.f32 %v1951, %v2039
        %v2041 = vpop.f32.mrf.mxu0
        %v2042 = vadd.f32 %v1953, %v2041
        %2043 = vmatmul.bf16.gmra.mxu0 %v658
        %v2044 = vpop.f32.mrf.mxu0
        %v2045 = vadd.f32 %v1956, %v2044
        %v2046 = vpop.f32.mrf.mxu0
        %v2047 = vadd.f32 %v1958, %v2046
        %2048 = vmatmul.bf16.gmra.mxu0 0
        %v2049 = vpop.f32.mrf.mxu0
        %v2050 = vadd.f32 %v1961, %v2049
        %v2051 = vpop.f32.mrf.mxu0
        %v2052 = vadd.f32 %v1963, %v2051
        %2053 = vdwg.mxu0
        %v2054 = vadd.f32 %v1515, %v1975
        %v2055 = vadd.f32 %v1517, %v1977
        %v2056 = vadd.f32 %v1520, %v1980
        %v2057 = vadd.f32 %v1522, %v1982
        %v2058 = vadd.f32 %v1525, %v1985
        %v2059 = vadd.f32 %v1527, %v1987
        %v2060 = vadd.f32 %v1530, %v1990
        %v2061 = vadd.f32 %v1532, %v1992
        %v2062 = vadd.f32 %v1535, %v1995
        %v2063 = vadd.f32 %v1537, %v1997
        %v2064 = vadd.f32 %v1540, %v2000
        %v2065 = vadd.f32 %v1542, %v2002
        %v2066 = vadd.f32 %v1545, %v2005
        %v2067 = vadd.f32 %v1547, %v2007
        %v2068 = vadd.f32 %v1550, %v2010
        %v2069 = vadd.f32 %v1552, %v2012
        %v2070 = vadd.f32 %v1555, %v2015
        %v2071 = vadd.f32 %v1557, %v2017
        %v2072 = vadd.f32 %v1560, %v2020
        %v2073 = vadd.f32 %v1562, %v2022
        %v2074 = vadd.f32 %v1565, %v2025
        %v2075 = vadd.f32 %v1567, %v2027
        %v2076 = vadd.f32 %v1570, %v2030
        %v2077 = vadd.f32 %v1572, %v2032
        %v2078 = vadd.f32 %v1575, %v2035
        %v2079 = vadd.f32 %v1577, %v2037
        %v2080 = vadd.f32 %v1580, %v2040
        %v2081 = vadd.f32 %v1582, %v2042
        %v2082 = vadd.f32 %v1585, %v2045
        %v2083 = vadd.f32 %v1587, %v2047
        %v2084 = vadd.f32 %v1590, %v2050
        %v2085 = vadd.f32 %v1592, %v2052
        %v2086 = vld [vmem:[%s2] sm:$0x1]
        %v2088 = vperm.slane %v2086, 0
        %v2090 = vmul.f32 %v2054, %v2088
        %v2091 = vmul.f32 %v2055, %v2088
        %v2092 = vmul.f32 %v2056, %v2088
        %v2093 = vmul.f32 %v2057, %v2088
        %v2094 = vmul.f32 %v2058, %v2088
        %v2095 = vmul.f32 %v2059, %v2088
        %v2096 = vmul.f32 %v2060, %v2088
        %v2097 = vmul.f32 %v2061, %v2088
        %v2098 = vmul.f32 %v2062, %v2088
        %v2099 = vmul.f32 %v2063, %v2088
        %v2100 = vmul.f32 %v2064, %v2088
        %v2101 = vmul.f32 %v2065, %v2088
        %v2102 = vmul.f32 %v2066, %v2088
        %v2103 = vmul.f32 %v2067, %v2088
        %v2104 = vmul.f32 %v2068, %v2088
        %v2105 = vmul.f32 %v2069, %v2088
        %v2106 = vmul.f32 %v2070, %v2088
        %v2107 = vmul.f32 %v2071, %v2088
        %v2108 = vmul.f32 %v2072, %v2088
        %v2109 = vmul.f32 %v2073, %v2088
        %v2110 = vmul.f32 %v2074, %v2088
        %v2111 = vmul.f32 %v2075, %v2088
        %v2112 = vmul.f32 %v2076, %v2088
        %v2113 = vmul.f32 %v2077, %v2088
        %v2114 = vmul.f32 %v2078, %v2088
        %v2115 = vmul.f32 %v2079, %v2088
        %v2116 = vmul.f32 %v2080, %v2088
        %v2117 = vmul.f32 %v2081, %v2088
        %v2118 = vmul.f32 %v2082, %v2088
        %v2119 = vmul.f32 %v2083, %v2088
        %v2120 = vmul.f32 %v2084, %v2088
        %v2121 = vmul.f32 %v2085, %v2088
        %v2122 = vld [vmem:[%s3] sm:$0x1]
        %v2124 = vperm.slane %v2122, 0
        %v2126 = vadd.f32 %v2090, %v2124
        %v2127 = vadd.f32 %v2091, %v2124
        %v2128 = vadd.f32 %v2092, %v2124
        %v2129 = vadd.f32 %v2093, %v2124
        %v2130 = vadd.f32 %v2094, %v2124
        %v2131 = vadd.f32 %v2095, %v2124
        %v2132 = vadd.f32 %v2096, %v2124
        %v2133 = vadd.f32 %v2097, %v2124
        %v2134 = vadd.f32 %v2098, %v2124
        %v2135 = vadd.f32 %v2099, %v2124
        %v2136 = vadd.f32 %v2100, %v2124
        %v2137 = vadd.f32 %v2101, %v2124
        %v2138 = vadd.f32 %v2102, %v2124
        %v2139 = vadd.f32 %v2103, %v2124
        %v2140 = vadd.f32 %v2104, %v2124
        %v2141 = vadd.f32 %v2105, %v2124
        %v2142 = vadd.f32 %v2106, %v2124
        %v2143 = vadd.f32 %v2107, %v2124
        %v2144 = vadd.f32 %v2108, %v2124
        %v2145 = vadd.f32 %v2109, %v2124
        %v2146 = vadd.f32 %v2110, %v2124
        %v2147 = vadd.f32 %v2111, %v2124
        %v2148 = vadd.f32 %v2112, %v2124
        %v2149 = vadd.f32 %v2113, %v2124
        %v2150 = vadd.f32 %v2114, %v2124
        %v2151 = vadd.f32 %v2115, %v2124
        %v2152 = vadd.f32 %v2116, %v2124
        %v2153 = vadd.f32 %v2117, %v2124
        %v2154 = vadd.f32 %v2118, %v2124
        %v2155 = vadd.f32 %v2119, %v2124
        %v2156 = vadd.f32 %v2120, %v2124
        %v2157 = vadd.f32 %v2121, %v2124
        %v2158 = vmax.f32 %v2126, 0.0
        %v2159 = vmax.f32 %v2127, 0.0
        %v2160 = vmax.f32 %v2128, 0.0
        %v2161 = vmax.f32 %v2129, 0.0
        %v2162 = vmax.f32 %v2130, 0.0
        %v2163 = vmax.f32 %v2131, 0.0
        %v2164 = vmax.f32 %v2132, 0.0
        %v2165 = vmax.f32 %v2133, 0.0
        %v2166 = vmax.f32 %v2134, 0.0
        %v2167 = vmax.f32 %v2135, 0.0
        %v2168 = vmax.f32 %v2136, 0.0
        %v2169 = vmax.f32 %v2137, 0.0
        %v2170 = vmax.f32 %v2138, 0.0
        %v2171 = vmax.f32 %v2139, 0.0
        %v2172 = vmax.f32 %v2140, 0.0
        %v2173 = vmax.f32 %v2141, 0.0
        %v2174 = vmax.f32 %v2142, 0.0
        %v2175 = vmax.f32 %v2143, 0.0
        %v2176 = vmax.f32 %v2144, 0.0
        %v2177 = vmax.f32 %v2145, 0.0
        %v2178 = vmax.f32 %v2146, 0.0
        %v2179 = vmax.f32 %v2147, 0.0
        %v2180 = vmax.f32 %v2148, 0.0
        %v2181 = vmax.f32 %v2149, 0.0
        %v2182 = vmax.f32 %v2150, 0.0
        %v2183 = vmax.f32 %v2151, 0.0
        %v2184 = vmax.f32 %v2152, 0.0
        %v2185 = vmax.f32 %v2153, 0.0
        %v2186 = vmax.f32 %v2154, 0.0
        %v2187 = vmax.f32 %v2155, 0.0
        %v2188 = vmax.f32 %v2156, 0.0
        %v2189 = vmax.f32 %v2157, 0.0
        %v2190 = vpack.c.bf16 %v2158, %v2158
        %v2191 = vpack.c.bf16 %v2159, %v2159
        %v2192 = vpack.c.bf16 %v2160, %v2160
        %v2193 = vpack.c.bf16 %v2161, %v2161
        %v2194 = vpack.c.bf16 %v2162, %v2162
        %v2195 = vpack.c.bf16 %v2163, %v2163
        %v2196 = vpack.c.bf16 %v2164, %v2164
        %v2197 = vpack.c.bf16 %v2165, %v2165
        %v2198 = vpack.c.bf16 %v2166, %v2166
        %v2199 = vpack.c.bf16 %v2167, %v2167
        %v2200 = vpack.c.bf16 %v2168, %v2168
        %v2201 = vpack.c.bf16 %v2169, %v2169
        %v2202 = vpack.c.bf16 %v2170, %v2170
        %v2203 = vpack.c.bf16 %v2171, %v2171
        %v2204 = vpack.c.bf16 %v2172, %v2172
        %v2205 = vpack.c.bf16 %v2173, %v2173
        %v2206 = vpack.c.bf16 %v2174, %v2174
        %v2207 = vpack.c.bf16 %v2175, %v2175
        %v2208 = vpack.c.bf16 %v2176, %v2176
        %v2209 = vpack.c.bf16 %v2177, %v2177
        %v2210 = vpack.c.bf16 %v2178, %v2178
        %v2211 = vpack.c.bf16 %v2179, %v2179
        %v2212 = vpack.c.bf16 %v2180, %v2180
        %v2213 = vpack.c.bf16 %v2181, %v2181
        %v2214 = vpack.c.bf16 %v2182, %v2182
        %v2215 = vpack.c.bf16 %v2183, %v2183
        %v2216 = vpack.c.bf16 %v2184, %v2184
        %v2217 = vpack.c.bf16 %v2185, %v2185
        %v2218 = vpack.c.bf16 %v2186, %v2186
        %v2219 = vpack.c.bf16 %v2187, %v2187
        %v2220 = vpack.c.bf16 %v2188, %v2188
        %v2221 = vpack.c.bf16 %v2189, %v2189
        %v2254 = vunpack.c.l.b16 %v2190
        %v2255 = vunpack.c.l.b16 %v2191
        %v2256 = vunpack.c.l.b16 %v2192
        %v2257 = vunpack.c.l.b16 %v2193
        %v2258 = vunpack.c.l.b16 %v2194
        %v2259 = vunpack.c.l.b16 %v2195
        %v2260 = vunpack.c.l.b16 %v2196
        %v2261 = vunpack.c.l.b16 %v2197
        %v2262 = vunpack.c.l.b16 %v2198
        %v2263 = vunpack.c.l.b16 %v2199
        %v2264 = vunpack.c.l.b16 %v2200
        %v2265 = vunpack.c.l.b16 %v2201
        %v2266 = vunpack.c.l.b16 %v2202
        %v2267 = vunpack.c.l.b16 %v2203
        %v2268 = vunpack.c.l.b16 %v2204
        %v2269 = vunpack.c.l.b16 %v2205
        %v2270 = vunpack.c.l.b16 %v2206
        %v2271 = vunpack.c.l.b16 %v2207
        %v2272 = vunpack.c.l.b16 %v2208
        %v2273 = vunpack.c.l.b16 %v2209
        %v2274 = vunpack.c.l.b16 %v2210
        %v2275 = vunpack.c.l.b16 %v2211
        %v2276 = vunpack.c.l.b16 %v2212
        %v2277 = vunpack.c.l.b16 %v2213
        %v2278 = vunpack.c.l.b16 %v2214
        %v2279 = vunpack.c.l.b16 %v2215
        %v2280 = vunpack.c.l.b16 %v2216
        %v2281 = vunpack.c.l.b16 %v2217
        %v2282 = vunpack.c.l.b16 %v2218
        %v2283 = vunpack.c.l.b16 %v2219
        %v2284 = vunpack.c.l.b16 %v2220
        %v2285 = vunpack.c.l.b16 %v2221
        %v2286 = vpack.c.b16 %v2255, %v2254
        %v2287 = vpack.c.b16 %v2257, %v2256
        %v2288 = vpack.c.b16 %v2259, %v2258
        %v2289 = vpack.c.b16 %v2261, %v2260
        %v2290 = vpack.c.b16 %v2263, %v2262
        %v2291 = vpack.c.b16 %v2265, %v2264
        %v2292 = vpack.c.b16 %v2267, %v2266
        %v2293 = vpack.c.b16 %v2269, %v2268
        %v2294 = vpack.c.b16 %v2271, %v2270
        %v2295 = vpack.c.b16 %v2273, %v2272
        %v2296 = vpack.c.b16 %v2275, %v2274
        %v2297 = vpack.c.b16 %v2277, %v2276
        %v2298 = vpack.c.b16 %v2279, %v2278
        %v2299 = vpack.c.b16 %v2281, %v2280
        %v2300 = vpack.c.b16 %v2283, %v2282
        %v2301 = vpack.c.b16 %v2285, %v2284
        %v2303 = vshrl.u32 %v2286, 16
        %v2305 = vrot.slane %v2303, 7
        %v2306 = vshll.u32 %v2286, 16
        %v2308 = vor.u32 %v2305, %v2306
        %v2310 = vshrl.u32 %v2287, 16
        %v2312 = vrot.slane %v2310, 7
        %v2313 = vshll.u32 %v2287, 16
        %v2315 = vor.u32 %v2312, %v2313
        %v2317 = vshrl.u32 %v2288, 16
        %v2319 = vrot.slane %v2317, 7
        %v2320 = vshll.u32 %v2288, 16
        %v2322 = vor.u32 %v2319, %v2320
        %v2324 = vshrl.u32 %v2289, 16
        %v2326 = vrot.slane %v2324, 7
        %v2327 = vshll.u32 %v2289, 16
        %v2329 = vor.u32 %v2326, %v2327
        %v2331 = vshrl.u32 %v2290, 16
        %v2333 = vrot.slane %v2331, 7
        %v2334 = vshll.u32 %v2290, 16
        %v2336 = vor.u32 %v2333, %v2334
        %v2338 = vshrl.u32 %v2291, 16
        %v2340 = vrot.slane %v2338, 7
        %v2341 = vshll.u32 %v2291, 16
        %v2343 = vor.u32 %v2340, %v2341
        %v2345 = vshrl.u32 %v2292, 16
        %v2347 = vrot.slane %v2345, 7
        %v2348 = vshll.u32 %v2292, 16
        %v2350 = vor.u32 %v2347, %v2348
        %v2352 = vshrl.u32 %v2293, 16
        %v2354 = vrot.slane %v2352, 7
        %v2355 = vshll.u32 %v2293, 16
        %v2357 = vor.u32 %v2354, %v2355
        %v2359 = vshrl.u32 %v2294, 16
        %v2361 = vrot.slane %v2359, 7
        %v2362 = vshll.u32 %v2294, 16
        %v2364 = vor.u32 %v2361, %v2362
        %v2366 = vshrl.u32 %v2295, 16
        %v2368 = vrot.slane %v2366, 7
        %v2369 = vshll.u32 %v2295, 16
        %v2371 = vor.u32 %v2368, %v2369
        %v2373 = vshrl.u32 %v2296, 16
        %v2375 = vrot.slane %v2373, 7
        %v2376 = vshll.u32 %v2296, 16
        %v2378 = vor.u32 %v2375, %v2376
        %v2380 = vshrl.u32 %v2297, 16
        %v2382 = vrot.slane %v2380, 7
        %v2383 = vshll.u32 %v2297, 16
        %v2385 = vor.u32 %v2382, %v2383
        %v2387 = vshrl.u32 %v2298, 16
        %v2389 = vrot.slane %v2387, 7
        %v2390 = vshll.u32 %v2298, 16
        %v2392 = vor.u32 %v2389, %v2390
        %v2394 = vshrl.u32 %v2299, 16
        %v2396 = vrot.slane %v2394, 7
        %v2397 = vshll.u32 %v2299, 16
        %v2399 = vor.u32 %v2396, %v2397
        %v2401 = vshrl.u32 %v2300, 16
        %v2403 = vrot.slane %v2401, 7
        %v2404 = vshll.u32 %v2300, 16
        %v2406 = vor.u32 %v2403, %v2404
        %v2408 = vshrl.u32 %v2301, 16
        %v2410 = vrot.slane %v2408, 7
        %v2411 = vshll.u32 %v2301, 16
        %v2413 = vor.u32 %v2410, %v2411
        %v2430 = vsel %vm575, 0, %v2308
        %v2431 = vsel %vm575, 0, %v2315
        %v2432 = vsel %vm575, 0, %v2322
        %v2433 = vsel %vm575, 0, %v2329
        %v2434 = vsel %vm575, 0, %v2336
        %v2435 = vsel %vm575, 0, %v2343
        %v2436 = vsel %vm575, 0, %v2350
        %v2437 = vsel %vm575, 0, %v2357
        %v2438 = vsel %vm575, 0, %v2364
        %v2439 = vsel %vm575, 0, %v2371
        %v2440 = vsel %vm575, 0, %v2378
        %v2441 = vsel %vm575, 0, %v2385
        %v2442 = vsel %vm575, 0, %v2392
        %v2443 = vsel %vm575, 0, %v2399
        %v2444 = vsel %vm575, 0, %v2406
        %v2445 = vsel %vm575, 0, %v2413
        %v2446 = vrot.slane %v2306, 1
        %v2447 = vor.u32 %v2303, %v2446
        %v2448 = vrot.slane %v2313, 1
        %v2449 = vor.u32 %v2310, %v2448
        %v2450 = vrot.slane %v2320, 1
        %v2451 = vor.u32 %v2317, %v2450
        %v2452 = vrot.slane %v2327, 1
        %v2453 = vor.u32 %v2324, %v2452
        %v2454 = vrot.slane %v2334, 1
        %v2455 = vor.u32 %v2331, %v2454
        %v2456 = vrot.slane %v2341, 1
        %v2457 = vor.u32 %v2338, %v2456
        %v2458 = vrot.slane %v2348, 1
        %v2459 = vor.u32 %v2345, %v2458
        %v2460 = vrot.slane %v2355, 1
        %v2461 = vor.u32 %v2352, %v2460
        %v2462 = vrot.slane %v2362, 1
        %v2463 = vor.u32 %v2359, %v2462
        %v2464 = vrot.slane %v2369, 1
        %v2465 = vor.u32 %v2366, %v2464
        %v2466 = vrot.slane %v2376, 1
        %v2467 = vor.u32 %v2373, %v2466
        %v2468 = vrot.slane %v2383, 1
        %v2469 = vor.u32 %v2380, %v2468
        %v2470 = vrot.slane %v2390, 1
        %v2471 = vor.u32 %v2387, %v2470
        %v2472 = vrot.slane %v2397, 1
        %v2473 = vor.u32 %v2394, %v2472
        %v2474 = vrot.slane %v2404, 1
        %v2475 = vor.u32 %v2401, %v2474
        %v2476 = vrot.slane %v2411, 1
        %v2477 = vor.u32 %v2408, %v2476
        %v2494 = vsel %vm642, %v2447, 0
        %v2495 = vsel %vm642, %v2449, 0
        %v2496 = vsel %vm642, %v2451, 0
        %v2497 = vsel %vm642, %v2453, 0
        %v2498 = vsel %vm642, %v2455, 0
        %v2499 = vsel %vm642, %v2457, 0
        %v2500 = vsel %vm642, %v2459, 0
        %v2501 = vsel %vm642, %v2461, 0
        %v2502 = vsel %vm642, %v2463, 0
        %v2503 = vsel %vm642, %v2465, 0
        %v2504 = vsel %vm642, %v2467, 0
        %v2505 = vsel %vm642, %v2469, 0
        %v2506 = vsel %vm642, %v2471, 0
        %v2507 = vsel %vm642, %v2473, 0
        %v2508 = vsel %vm642, %v2475, 0
        %v2509 = vsel %vm642, %v2477, 0
        %v2526 = vld [vmem:[#allocation7] sm:$0xf]
        %v2527 = vld [vmem:[#allocation7 + $0x4] sm:$0xf]
        %v2528 = vld [vmem:[#allocation7 + $0x8] sm:$0xf]
        %v2529 = vld [vmem:[#allocation7 + $0xc] sm:$0xf]
        %v2530 = vld [vmem:[#allocation7 + $0x10] sm:$0xf]
        %v2531 = vld [vmem:[#allocation7 + $0x14] sm:$0xf]
        %v2532 = vld [vmem:[#allocation7 + $0x18] sm:$0xf]
        %v2533 = vld [vmem:[#allocation7 + $0x1c] sm:$0xf]
        %v2534 = vld [vmem:[#allocation7 + $0x20] sm:$0xf]
        %v2535 = vld [vmem:[#allocation7 + $0x24] sm:$0xf]
        %v2536 = vld [vmem:[#allocation7 + $0x28] sm:$0xf]
        %v2537 = vld [vmem:[#allocation7 + $0x2c] sm:$0xf]
        %v2538 = vld [vmem:[#allocation7 + $0x30] sm:$0xf]
        %v2539 = vld [vmem:[#allocation7 + $0x34] sm:$0xf]
        %v2540 = vld [vmem:[#allocation7 + $0x38] sm:$0xf]
        %v2541 = vld [vmem:[#allocation7 + $0x3c] sm:$0xf]
        %v2542 = vld [vmem:[#allocation7 + $0x40] sm:$0xf]
        %v2543 = vld [vmem:[#allocation7 + $0x44] sm:$0xf]
        %v2544 = vld [vmem:[#allocation7 + $0x48] sm:$0xf]
        %v2545 = vld [vmem:[#allocation7 + $0x4c] sm:$0xf]
        %v2546 = vld [vmem:[#allocation7 + $0x50] sm:$0xf]
        %v2547 = vld [vmem:[#allocation7 + $0x54] sm:$0xf]
        %v2548 = vld [vmem:[#allocation7 + $0x58] sm:$0xf]
        %v2549 = vld [vmem:[#allocation7 + $0x5c] sm:$0xf]
        %v2550 = vld [vmem:[#allocation7 + $0x60] sm:$0xf]
        %v2551 = vld [vmem:[#allocation7 + $0x64] sm:$0xf]
        %v2552 = vld [vmem:[#allocation7 + $0x68] sm:$0xf]
        %v2553 = vld [vmem:[#allocation7 + $0x6c] sm:$0xf]
        %v2554 = vld [vmem:[#allocation7 + $0x70] sm:$0xf]
        %v2555 = vld [vmem:[#allocation7 + $0x74] sm:$0xf]
        %v2556 = vld [vmem:[#allocation7 + $0x78] sm:$0xf]
        %v2557 = vld [vmem:[#allocation7 + $0x7c] sm:$0xf]
        %v2558 = vld [vmem:[#allocation7 + $0x80] sm:$0xf]
        %v2559 = vld [vmem:[#allocation7 + $0x84] sm:$0xf]
        %v2560 = vld [vmem:[#allocation7 + $0x88] sm:$0xf]
        %v2561 = vld [vmem:[#allocation7 + $0x8c] sm:$0xf]
        %v2562 = vld [vmem:[#allocation7 + $0x90] sm:$0xf]
        %v2563 = vld [vmem:[#allocation7 + $0x94] sm:$0xf]
        %v2564 = vld [vmem:[#allocation7 + $0x98] sm:$0xf]
        %v2565 = vld [vmem:[#allocation7 + $0x9c] sm:$0xf]
        %v2566 = vld [vmem:[#allocation7 + $0xa0] sm:$0xf]
        %v2567 = vld [vmem:[#allocation7 + $0xa4] sm:$0xf]
        %v2568 = vld [vmem:[#allocation7 + $0xa8] sm:$0xf]
        %v2569 = vld [vmem:[#allocation7 + $0xac] sm:$0xf]
        %v2570 = vld [vmem:[#allocation7 + $0xb0] sm:$0xf]
        %v2571 = vld [vmem:[#allocation7 + $0xb4] sm:$0xf]
        %v2572 = vld [vmem:[#allocation7 + $0xb8] sm:$0xf]
        %v2573 = vld [vmem:[#allocation7 + $0xbc] sm:$0xf]
        %s2574 = scalar_lea.vmem [#allocation7], 192
        %v2575 = vld [vmem:[%s2574] sm:$0xf]
        %v2576 = vld [vmem:[%s2574 + $0x4] sm:$0xf]
        %v2577 = vld [vmem:[%s2574 + $0x8] sm:$0xf]
        %v2578 = vld [vmem:[%s2574 + $0xc] sm:$0xf]
        %v2579 = vld [vmem:[%s2574 + $0x10] sm:$0xf]
        %v2580 = vld [vmem:[%s2574 + $0x14] sm:$0xf]
        %v2581 = vld [vmem:[%s2574 + $0x18] sm:$0xf]
        %v2582 = vld [vmem:[%s2574 + $0x1c] sm:$0xf]
        %v2583 = vld [vmem:[%s2574 + $0x20] sm:$0xf]
        %v2584 = vld [vmem:[%s2574 + $0x24] sm:$0xf]
        %v2585 = vld [vmem:[%s2574 + $0x28] sm:$0xf]
        %v2586 = vld [vmem:[%s2574 + $0x2c] sm:$0xf]
        %v2587 = vld [vmem:[%s2574 + $0x30] sm:$0xf]
        %v2588 = vld [vmem:[%s2574 + $0x34] sm:$0xf]
        %v2589 = vld [vmem:[%s2574 + $0x38] sm:$0xf]
        %v2590 = vld [vmem:[%s2574 + $0x3c] sm:$0xf]
        %v2591 = vld [vmem:[%s2574 + $0x40] sm:$0xf]
        %v2592 = vld [vmem:[%s2574 + $0x44] sm:$0xf]
        %v2593 = vld [vmem:[%s2574 + $0x48] sm:$0xf]
        %v2594 = vld [vmem:[%s2574 + $0x4c] sm:$0xf]
        %v2595 = vld [vmem:[%s2574 + $0x50] sm:$0xf]
        %v2596 = vld [vmem:[%s2574 + $0x54] sm:$0xf]
        %v2597 = vld [vmem:[%s2574 + $0x58] sm:$0xf]
        %v2598 = vld [vmem:[%s2574 + $0x5c] sm:$0xf]
        %v2599 = vld [vmem:[%s2574 + $0x60] sm:$0xf]
        %v2600 = vld [vmem:[%s2574 + $0x64] sm:$0xf]
        %v2601 = vld [vmem:[%s2574 + $0x68] sm:$0xf]
        %v2602 = vld [vmem:[%s2574 + $0x6c] sm:$0xf]
        %v2603 = vld [vmem:[%s2574 + $0x70] sm:$0xf]
        %v2604 = vld [vmem:[%s2574 + $0x74] sm:$0xf]
        %v2605 = vld [vmem:[%s2574 + $0x78] sm:$0xf]
        %v2606 = vld [vmem:[%s2574 + $0x7c] sm:$0xf]
        %v2607 = vld [vmem:[%s2574 + $0x80] sm:$0xf]
        %v2608 = vld [vmem:[%s2574 + $0x84] sm:$0xf]
        %v2609 = vld [vmem:[%s2574 + $0x88] sm:$0xf]
        %v2610 = vld [vmem:[%s2574 + $0x8c] sm:$0xf]
        %v2611 = vld [vmem:[%s2574 + $0x90] sm:$0xf]
        %v2612 = vld [vmem:[%s2574 + $0x94] sm:$0xf]
        %v2613 = vld [vmem:[%s2574 + $0x98] sm:$0xf]
        %v2614 = vld [vmem:[%s2574 + $0x9c] sm:$0xf]
        %v2615 = vld [vmem:[%s2574 + $0xa0] sm:$0xf]
        %v2616 = vld [vmem:[%s2574 + $0xa4] sm:$0xf]
        %v2617 = vld [vmem:[%s2574 + $0xa8] sm:$0xf]
        %v2618 = vld [vmem:[%s2574 + $0xac] sm:$0xf]
        %v2619 = vld [vmem:[%s2574 + $0xb0] sm:$0xf]
        %v2620 = vld [vmem:[%s2574 + $0xb4] sm:$0xf]
        %v2621 = vld [vmem:[%s2574 + $0xb8] sm:$0xf]
        %v2622 = vld [vmem:[%s2574 + $0xbc] sm:$0xf]
        %v2671 = vunpack.c.l.b16 %v2575
        %v2672 = vunpack.c.l.b16 %v2576
        %v2673 = vunpack.c.l.b16 %v2577
        %v2674 = vunpack.c.l.b16 %v2578
        %v2675 = vunpack.c.l.b16 %v2579
        %v2676 = vunpack.c.l.b16 %v2580
        %v2677 = vunpack.c.l.b16 %v2581
        %v2678 = vunpack.c.l.b16 %v2582
        %v2679 = vunpack.c.l.b16 %v2583
        %v2680 = vunpack.c.l.b16 %v2584
        %v2681 = vunpack.c.l.b16 %v2585
        %v2682 = vunpack.c.l.b16 %v2586
        %v2683 = vunpack.c.l.b16 %v2587
        %v2684 = vunpack.c.l.b16 %v2588
        %v2685 = vunpack.c.l.b16 %v2589
        %v2686 = vunpack.c.l.b16 %v2590
        %v2687 = vunpack.c.l.b16 %v2591
        %v2688 = vunpack.c.l.b16 %v2592
        %v2689 = vunpack.c.l.b16 %v2593
        %v2690 = vunpack.c.l.b16 %v2594
        %v2691 = vunpack.c.l.b16 %v2595
        %v2692 = vunpack.c.l.b16 %v2596
        %v2693 = vunpack.c.l.b16 %v2597
        %v2694 = vunpack.c.l.b16 %v2598
        %v2695 = vunpack.c.l.b16 %v2599
        %v2696 = vunpack.c.l.b16 %v2600
        %v2697 = vunpack.c.l.b16 %v2601
        %v2698 = vunpack.c.l.b16 %v2602
        %v2699 = vunpack.c.l.b16 %v2603
        %v2700 = vunpack.c.l.b16 %v2604
        %v2701 = vunpack.c.l.b16 %v2605
        %v2702 = vunpack.c.l.b16 %v2606
        %v2703 = vunpack.c.l.b16 %v2607
        %v2704 = vunpack.c.l.b16 %v2608
        %v2705 = vunpack.c.l.b16 %v2609
        %v2706 = vunpack.c.l.b16 %v2610
        %v2707 = vunpack.c.l.b16 %v2611
        %v2708 = vunpack.c.l.b16 %v2612
        %v2709 = vunpack.c.l.b16 %v2613
        %v2710 = vunpack.c.l.b16 %v2614
        %v2711 = vunpack.c.l.b16 %v2615
        %v2712 = vunpack.c.l.b16 %v2616
        %v2713 = vunpack.c.l.b16 %v2617
        %v2714 = vunpack.c.l.b16 %v2618
        %v2715 = vunpack.c.l.b16 %v2619
        %v2716 = vunpack.c.l.b16 %v2620
        %v2717 = vunpack.c.l.b16 %v2621
        %v2718 = vunpack.c.l.b16 %v2622
        %v2719 = vpack.c.b16 %v2672, %v2671
        %v2720 = vpack.c.b16 %v2674, %v2673
        %v2721 = vpack.c.b16 %v2676, %v2675
        %v2722 = vpack.c.b16 %v2678, %v2677
        %v2723 = vpack.c.b16 %v2680, %v2679
        %v2724 = vpack.c.b16 %v2682, %v2681
        %v2725 = vpack.c.b16 %v2684, %v2683
        %v2726 = vpack.c.b16 %v2686, %v2685
        %v2727 = vpack.c.b16 %v2688, %v2687
        %v2728 = vpack.c.b16 %v2690, %v2689
        %v2729 = vpack.c.b16 %v2692, %v2691
        %v2730 = vpack.c.b16 %v2694, %v2693
        %v2731 = vpack.c.b16 %v2696, %v2695
        %v2732 = vpack.c.b16 %v2698, %v2697
        %v2733 = vpack.c.b16 %v2700, %v2699
        %v2734 = vpack.c.b16 %v2702, %v2701
        %v2735 = vpack.c.b16 %v2704, %v2703
        %v2736 = vpack.c.b16 %v2706, %v2705
        %v2737 = vpack.c.b16 %v2708, %v2707
        %v2738 = vpack.c.b16 %v2710, %v2709
        %v2739 = vpack.c.b16 %v2712, %v2711
        %v2740 = vpack.c.b16 %v2714, %v2713
        %v2741 = vpack.c.b16 %v2716, %v2715
        %v2742 = vpack.c.b16 %v2718, %v2717
        %2767 = vmatpush.bf16.msra.mxu0 %v2726
        %2768 = vmatpush.bf16.msra.mxu0 %v2725
        %2769 = vmatpush.bf16.msra.mxu0 %v2724
        %2770 = vmatpush.bf16.msra.mxu0 %v2723
        %2771 = vmatpush.bf16.msra.mxu0 %v2722
        %2772 = vmatpush.bf16.msra.mxu0 %v2721
        %2773 = vmatpush.bf16.msra.mxu0 %v2720
        %2774 = vmatpush.bf16.msra.mxu0 %v2719
        %2775 = vmatmul.bf16.gmra.mxu0 %v2430
        %v2776 = vpop.f32.mrf.mxu0
        %v2777 = vadd.f32 0.0, %v2776
        %v2778 = vpop.f32.mrf.mxu0
        %v2779 = vadd.f32 0.0, %v2778
        %2780 = vmatmul.bf16.gmra.mxu0 %v2431
        %v2781 = vpop.f32.mrf.mxu0
        %v2782 = vadd.f32 0.0, %v2781
        %v2783 = vpop.f32.mrf.mxu0
        %v2784 = vadd.f32 0.0, %v2783
        %2785 = vmatmul.bf16.gmra.mxu0 %v2432
        %v2786 = vpop.f32.mrf.mxu0
        %v2787 = vadd.f32 0.0, %v2786
        %v2788 = vpop.f32.mrf.mxu0
        %v2789 = vadd.f32 0.0, %v2788
        %2790 = vmatmul.bf16.gmra.mxu0 %v2433
        %v2791 = vpop.f32.mrf.mxu0
        %v2792 = vadd.f32 0.0, %v2791
        %v2793 = vpop.f32.mrf.mxu0
        %v2794 = vadd.f32 0.0, %v2793
        %2795 = vmatmul.bf16.gmra.mxu0 %v2434
        %v2796 = vpop.f32.mrf.mxu0
        %v2797 = vadd.f32 0.0, %v2796
        %v2798 = vpop.f32.mrf.mxu0
        %v2799 = vadd.f32 0.0, %v2798
        %2800 = vmatmul.bf16.gmra.mxu0 %v2435
        %v2801 = vpop.f32.mrf.mxu0
        %v2802 = vadd.f32 0.0, %v2801
        %v2803 = vpop.f32.mrf.mxu0
        %v2804 = vadd.f32 0.0, %v2803
        %2805 = vmatmul.bf16.gmra.mxu0 %v2436
        %v2806 = vpop.f32.mrf.mxu0
        %v2807 = vadd.f32 0.0, %v2806
        %v2808 = vpop.f32.mrf.mxu0
        %v2809 = vadd.f32 0.0, %v2808
        %2810 = vmatmul.bf16.gmra.mxu0 %v2437
        %v2811 = vpop.f32.mrf.mxu0
        %v2812 = vadd.f32 0.0, %v2811
        %v2813 = vpop.f32.mrf.mxu0
        %v2814 = vadd.f32 0.0, %v2813
        %2815 = vmatmul.bf16.gmra.mxu0 %v2438
        %v2816 = vpop.f32.mrf.mxu0
        %v2817 = vadd.f32 0.0, %v2816
        %v2818 = vpop.f32.mrf.mxu0
        %v2819 = vadd.f32 0.0, %v2818
        %2820 = vmatmul.bf16.gmra.mxu0 %v2439
        %v2821 = vpop.f32.mrf.mxu0
        %v2822 = vadd.f32 0.0, %v2821
        %v2823 = vpop.f32.mrf.mxu0
        %v2824 = vadd.f32 0.0, %v2823
        %2825 = vmatmul.bf16.gmra.mxu0 %v2440
        %v2826 = vpop.f32.mrf.mxu0
        %v2827 = vadd.f32 0.0, %v2826
        %v2828 = vpop.f32.mrf.mxu0
        %v2829 = vadd.f32 0.0, %v2828
        %2830 = vmatmul.bf16.gmra.mxu0 %v2441
        %v2831 = vpop.f32.mrf.mxu0
        %v2832 = vadd.f32 0.0, %v2831
        %v2833 = vpop.f32.mrf.mxu0
        %v2834 = vadd.f32 0.0, %v2833
        %2835 = vmatmul.bf16.gmra.mxu0 %v2442
        %v2836 = vpop.f32.mrf.mxu0
        %v2837 = vadd.f32 0.0, %v2836
        %v2838 = vpop.f32.mrf.mxu0
        %v2839 = vadd.f32 0.0, %v2838
        %2840 = vmatmul.bf16.gmra.mxu0 %v2443
        %v2841 = vpop.f32.mrf.mxu0
        %v2842 = vadd.f32 0.0, %v2841
        %v2843 = vpop.f32.mrf.mxu0
        %v2844 = vadd.f32 0.0, %v2843
        %2845 = vmatmul.bf16.gmra.mxu0 %v2444
        %v2846 = vpop.f32.mrf.mxu0
        %v2847 = vadd.f32 0.0, %v2846
        %v2848 = vpop.f32.mrf.mxu0
        %v2849 = vadd.f32 0.0, %v2848
        %2850 = vmatmul.bf16.gmra.mxu0 %v2445
        %v2851 = vpop.f32.mrf.mxu0
        %v2852 = vadd.f32 0.0, %v2851
        %v2853 = vpop.f32.mrf.mxu0
        %v2854 = vadd.f32 0.0, %v2853
        %2855 = vdwg.mxu0
        %2856 = vmatpush.bf16.msra.mxu0 %v2734
        %2857 = vmatpush.bf16.msra.mxu0 %v2733
        %2858 = vmatpush.bf16.msra.mxu0 %v2732
        %2859 = vmatpush.bf16.msra.mxu0 %v2731
        %2860 = vmatpush.bf16.msra.mxu0 %v2730
        %2861 = vmatpush.bf16.msra.mxu0 %v2729
        %2862 = vmatpush.bf16.msra.mxu0 %v2728
        %2863 = vmatpush.bf16.msra.mxu0 %v2727
        %2864 = vmatmul.bf16.gmra.mxu0 %v2286
        %v2865 = vpop.f32.mrf.mxu0
        %v2866 = vadd.f32 %v2777, %v2865
        %v2867 = vpop.f32.mrf.mxu0
        %v2868 = vadd.f32 %v2779, %v2867
        %2869 = vmatmul.bf16.gmra.mxu0 %v2287
        %v2870 = vpop.f32.mrf.mxu0
        %v2871 = vadd.f32 %v2782, %v2870
        %v2872 = vpop.f32.mrf.mxu0
        %v2873 = vadd.f32 %v2784, %v2872
        %2874 = vmatmul.bf16.gmra.mxu0 %v2288
        %v2875 = vpop.f32.mrf.mxu0
        %v2876 = vadd.f32 %v2787, %v2875
        %v2877 = vpop.f32.mrf.mxu0
        %v2878 = vadd.f32 %v2789, %v2877
        %2879 = vmatmul.bf16.gmra.mxu0 %v2289
        %v2880 = vpop.f32.mrf.mxu0
        %v2881 = vadd.f32 %v2792, %v2880
        %v2882 = vpop.f32.mrf.mxu0
        %v2883 = vadd.f32 %v2794, %v2882
        %2884 = vmatmul.bf16.gmra.mxu0 %v2290
        %v2885 = vpop.f32.mrf.mxu0
        %v2886 = vadd.f32 %v2797, %v2885
        %v2887 = vpop.f32.mrf.mxu0
        %v2888 = vadd.f32 %v2799, %v2887
        %2889 = vmatmul.bf16.gmra.mxu0 %v2291
        %v2890 = vpop.f32.mrf.mxu0
        %v2891 = vadd.f32 %v2802, %v2890
        %v2892 = vpop.f32.mrf.mxu0
        %v2893 = vadd.f32 %v2804, %v2892
        %2894 = vmatmul.bf16.gmra.mxu0 %v2292
        %v2895 = vpop.f32.mrf.mxu0
        %v2896 = vadd.f32 %v2807, %v2895
        %v2897 = vpop.f32.mrf.mxu0
        %v2898 = vadd.f32 %v2809, %v2897
        %2899 = vmatmul.bf16.gmra.mxu0 %v2293
        %v2900 = vpop.f32.mrf.mxu0
        %v2901 = vadd.f32 %v2812, %v2900
        %v2902 = vpop.f32.mrf.mxu0
        %v2903 = vadd.f32 %v2814, %v2902
        %2904 = vmatmul.bf16.gmra.mxu0 %v2294
        %v2905 = vpop.f32.mrf.mxu0
        %v2906 = vadd.f32 %v2817, %v2905
        %v2907 = vpop.f32.mrf.mxu0
        %v2908 = vadd.f32 %v2819, %v2907
        %2909 = vmatmul.bf16.gmra.mxu0 %v2295
        %v2910 = vpop.f32.mrf.mxu0
        %v2911 = vadd.f32 %v2822, %v2910
        %v2912 = vpop.f32.mrf.mxu0
        %v2913 = vadd.f32 %v2824, %v2912
        %2914 = vmatmul.bf16.gmra.mxu0 %v2296
        %v2915 = vpop.f32.mrf.mxu0
        %v2916 = vadd.f32 %v2827, %v2915
        %v2917 = vpop.f32.mrf.mxu0
        %v2918 = vadd.f32 %v2829, %v2917
        %2919 = vmatmul.bf16.gmra.mxu0 %v2297
        %v2920 = vpop.f32.mrf.mxu0
        %v2921 = vadd.f32 %v2832, %v2920
        %v2922 = vpop.f32.mrf.mxu0
        %v2923 = vadd.f32 %v2834, %v2922
        %2924 = vmatmul.bf16.gmra.mxu0 %v2298
        %v2925 = vpop.f32.mrf.mxu0
        %v2926 = vadd.f32 %v2837, %v2925
        %v2927 = vpop.f32.mrf.mxu0
        %v2928 = vadd.f32 %v2839, %v2927
        %2929 = vmatmul.bf16.gmra.mxu0 %v2299
        %v2930 = vpop.f32.mrf.mxu0
        %v2931 = vadd.f32 %v2842, %v2930
        %v2932 = vpop.f32.mrf.mxu0
        %v2933 = vadd.f32 %v2844, %v2932
        %2934 = vmatmul.bf16.gmra.mxu0 %v2300
        %v2935 = vpop.f32.mrf.mxu0
        %v2936 = vadd.f32 %v2847, %v2935
        %v2937 = vpop.f32.mrf.mxu0
        %v2938 = vadd.f32 %v2849, %v2937
        %2939 = vmatmul.bf16.gmra.mxu0 %v2301
        %v2940 = vpop.f32.mrf.mxu0
        %v2941 = vadd.f32 %v2852, %v2940
        %v2942 = vpop.f32.mrf.mxu0
        %v2943 = vadd.f32 %v2854, %v2942
        %2944 = vdwg.mxu0
        %2945 = vmatpush.bf16.msra.mxu0 %v2742
        %2946 = vmatpush.bf16.msra.mxu0 %v2741
        %2947 = vmatpush.bf16.msra.mxu0 %v2740
        %2948 = vmatpush.bf16.msra.mxu0 %v2739
        %2949 = vmatpush.bf16.msra.mxu0 %v2738
        %2950 = vmatpush.bf16.msra.mxu0 %v2737
        %2951 = vmatpush.bf16.msra.mxu0 %v2736
        %2952 = vmatpush.bf16.msra.mxu0 %v2735
        %2953 = vmatmul.bf16.gmra.mxu0 %v2494
        %v2954 = vpop.f32.mrf.mxu0
        %v2955 = vadd.f32 %v2866, %v2954
        %v2956 = vpop.f32.mrf.mxu0
        %v2957 = vadd.f32 %v2868, %v2956
        %2958 = vmatmul.bf16.gmra.mxu0 %v2495
        %v2959 = vpop.f32.mrf.mxu0
        %v2960 = vadd.f32 %v2871, %v2959
        %v2961 = vpop.f32.mrf.mxu0
        %v2962 = vadd.f32 %v2873, %v2961
        %2963 = vmatmul.bf16.gmra.mxu0 %v2496
        %v2964 = vpop.f32.mrf.mxu0
        %v2965 = vadd.f32 %v2876, %v2964
        %v2966 = vpop.f32.mrf.mxu0
        %v2967 = vadd.f32 %v2878, %v2966
        %2968 = vmatmul.bf16.gmra.mxu0 %v2497
        %v2969 = vpop.f32.mrf.mxu0
        %v2970 = vadd.f32 %v2881, %v2969
        %v2971 = vpop.f32.mrf.mxu0
        %v2972 = vadd.f32 %v2883, %v2971
        %2973 = vmatmul.bf16.gmra.mxu0 %v2498
        %v2974 = vpop.f32.mrf.mxu0
        %v2975 = vadd.f32 %v2886, %v2974
        %v2976 = vpop.f32.mrf.mxu0
        %v2977 = vadd.f32 %v2888, %v2976
        %2978 = vmatmul.bf16.gmra.mxu0 %v2499
        %v2979 = vpop.f32.mrf.mxu0
        %v2980 = vadd.f32 %v2891, %v2979
        %v2981 = vpop.f32.mrf.mxu0
        %v2982 = vadd.f32 %v2893, %v2981
        %2983 = vmatmul.bf16.gmra.mxu0 %v2500
        %v2984 = vpop.f32.mrf.mxu0
        %v2985 = vadd.f32 %v2896, %v2984
        %v2986 = vpop.f32.mrf.mxu0
        %v2987 = vadd.f32 %v2898, %v2986
        %2988 = vmatmul.bf16.gmra.mxu0 %v2501
        %v2989 = vpop.f32.mrf.mxu0
        %v2990 = vadd.f32 %v2901, %v2989
        %v2991 = vpop.f32.mrf.mxu0
        %v2992 = vadd.f32 %v2903, %v2991
        %2993 = vmatmul.bf16.gmra.mxu0 %v2502
        %v2994 = vpop.f32.mrf.mxu0
        %v2995 = vadd.f32 %v2906, %v2994
        %v2996 = vpop.f32.mrf.mxu0
        %v2997 = vadd.f32 %v2908, %v2996
        %2998 = vmatmul.bf16.gmra.mxu0 %v2503
        %v2999 = vpop.f32.mrf.mxu0
        %v3000 = vadd.f32 %v2911, %v2999
        %v3001 = vpop.f32.mrf.mxu0
        %v3002 = vadd.f32 %v2913, %v3001
        %3003 = vmatmul.bf16.gmra.mxu0 %v2504
        %v3004 = vpop.f32.mrf.mxu0
        %v3005 = vadd.f32 %v2916, %v3004
        %v3006 = vpop.f32.mrf.mxu0
        %v3007 = vadd.f32 %v2918, %v3006
        %3008 = vmatmul.bf16.gmra.mxu0 %v2505
        %v3009 = vpop.f32.mrf.mxu0
        %v3010 = vadd.f32 %v2921, %v3009
        %v3011 = vpop.f32.mrf.mxu0
        %v3012 = vadd.f32 %v2923, %v3011
        %3013 = vmatmul.bf16.gmra.mxu0 %v2506
        %v3014 = vpop.f32.mrf.mxu0
        %v3015 = vadd.f32 %v2926, %v3014
        %v3016 = vpop.f32.mrf.mxu0
        %v3017 = vadd.f32 %v2928, %v3016
        %3018 = vmatmul.bf16.gmra.mxu0 %v2507
        %v3019 = vpop.f32.mrf.mxu0
        %v3020 = vadd.f32 %v2931, %v3019
        %v3021 = vpop.f32.mrf.mxu0
        %v3022 = vadd.f32 %v2933, %v3021
        %3023 = vmatmul.bf16.gmra.mxu0 %v2508
        %v3024 = vpop.f32.mrf.mxu0
        %v3025 = vadd.f32 %v2936, %v3024
        %v3026 = vpop.f32.mrf.mxu0
        %v3027 = vadd.f32 %v2938, %v3026
        %3028 = vmatmul.bf16.gmra.mxu0 %v2509
        %v3029 = vpop.f32.mrf.mxu0
        %v3030 = vadd.f32 %v2941, %v3029
        %v3031 = vpop.f32.mrf.mxu0
        %v3032 = vadd.f32 %v2943, %v3031
        %3033 = vdwg.mxu0
        %v3082 = vunpack.c.l.b16 %v2526
        %v3083 = vunpack.c.l.b16 %v2527
        %v3084 = vunpack.c.l.b16 %v2528
        %v3085 = vunpack.c.l.b16 %v2529
        %v3086 = vunpack.c.l.b16 %v2530
        %v3087 = vunpack.c.l.b16 %v2531
        %v3088 = vunpack.c.l.b16 %v2532
        %v3089 = vunpack.c.l.b16 %v2533
        %v3090 = vunpack.c.l.b16 %v2534
        %v3091 = vunpack.c.l.b16 %v2535
        %v3092 = vunpack.c.l.b16 %v2536
        %v3093 = vunpack.c.l.b16 %v2537
        %v3094 = vunpack.c.l.b16 %v2538
        %v3095 = vunpack.c.l.b16 %v2539
        %v3096 = vunpack.c.l.b16 %v2540
        %v3097 = vunpack.c.l.b16 %v2541
        %v3098 = vunpack.c.l.b16 %v2542
        %v3099 = vunpack.c.l.b16 %v2543
        %v3100 = vunpack.c.l.b16 %v2544
        %v3101 = vunpack.c.l.b16 %v2545
        %v3102 = vunpack.c.l.b16 %v2546
        %v3103 = vunpack.c.l.b16 %v2547
        %v3104 = vunpack.c.l.b16 %v2548
        %v3105 = vunpack.c.l.b16 %v2549
        %v3106 = vunpack.c.l.b16 %v2550
        %v3107 = vunpack.c.l.b16 %v2551
        %v3108 = vunpack.c.l.b16 %v2552
        %v3109 = vunpack.c.l.b16 %v2553
        %v3110 = vunpack.c.l.b16 %v2554
        %v3111 = vunpack.c.l.b16 %v2555
        %v3112 = vunpack.c.l.b16 %v2556
        %v3113 = vunpack.c.l.b16 %v2557
        %v3114 = vunpack.c.l.b16 %v2558
        %v3115 = vunpack.c.l.b16 %v2559
        %v3116 = vunpack.c.l.b16 %v2560
        %v3117 = vunpack.c.l.b16 %v2561
        %v3118 = vunpack.c.l.b16 %v2562
        %v3119 = vunpack.c.l.b16 %v2563
        %v3120 = vunpack.c.l.b16 %v2564
        %v3121 = vunpack.c.l.b16 %v2565
        %v3122 = vunpack.c.l.b16 %v2566
        %v3123 = vunpack.c.l.b16 %v2567
        %v3124 = vunpack.c.l.b16 %v2568
        %v3125 = vunpack.c.l.b16 %v2569
        %v3126 = vunpack.c.l.b16 %v2570
        %v3127 = vunpack.c.l.b16 %v2571
        %v3128 = vunpack.c.l.b16 %v2572
        %v3129 = vunpack.c.l.b16 %v2573
        %v3130 = vpack.c.b16 %v3083, %v3082
        %v3131 = vpack.c.b16 %v3085, %v3084
        %v3132 = vpack.c.b16 %v3087, %v3086
        %v3133 = vpack.c.b16 %v3089, %v3088
        %v3134 = vpack.c.b16 %v3091, %v3090
        %v3135 = vpack.c.b16 %v3093, %v3092
        %v3136 = vpack.c.b16 %v3095, %v3094
        %v3137 = vpack.c.b16 %v3097, %v3096
        %v3138 = vpack.c.b16 %v3099, %v3098
        %v3139 = vpack.c.b16 %v3101, %v3100
        %v3140 = vpack.c.b16 %v3103, %v3102
        %v3141 = vpack.c.b16 %v3105, %v3104
        %v3142 = vpack.c.b16 %v3107, %v3106
        %v3143 = vpack.c.b16 %v3109, %v3108
        %v3144 = vpack.c.b16 %v3111, %v3110
        %v3145 = vpack.c.b16 %v3113, %v3112
        %v3146 = vpack.c.b16 %v3115, %v3114
        %v3147 = vpack.c.b16 %v3117, %v3116
        %v3148 = vpack.c.b16 %v3119, %v3118
        %v3149 = vpack.c.b16 %v3121, %v3120
        %v3150 = vpack.c.b16 %v3123, %v3122
        %v3151 = vpack.c.b16 %v3125, %v3124
        %v3152 = vpack.c.b16 %v3127, %v3126
        %v3153 = vpack.c.b16 %v3129, %v3128
        %3178 = vmatpush.bf16.msra.mxu0 %v3137
        %3179 = vmatpush.bf16.msra.mxu0 %v3136
        %3180 = vmatpush.bf16.msra.mxu0 %v3135
        %3181 = vmatpush.bf16.msra.mxu0 %v3134
        %3182 = vmatpush.bf16.msra.mxu0 %v3133
        %3183 = vmatpush.bf16.msra.mxu0 %v3132
        %3184 = vmatpush.bf16.msra.mxu0 %v3131
        %3185 = vmatpush.bf16.msra.mxu0 %v3130
        %3186 = vmatmul.bf16.gmra.mxu0 0
        %v3187 = vpop.f32.mrf.mxu0
        %v3188 = vadd.f32 %v2955, %v3187
        %v3189 = vpop.f32.mrf.mxu0
        %v3190 = vadd.f32 %v2957, %v3189
        %3191 = vmatmul.bf16.gmra.mxu0 %v2430
        %v3192 = vpop.f32.mrf.mxu0
        %v3193 = vadd.f32 %v2960, %v3192
        %v3194 = vpop.f32.mrf.mxu0
        %v3195 = vadd.f32 %v2962, %v3194
        %3196 = vmatmul.bf16.gmra.mxu0 %v2431
        %v3197 = vpop.f32.mrf.mxu0
        %v3198 = vadd.f32 %v2965, %v3197
        %v3199 = vpop.f32.mrf.mxu0
        %v3200 = vadd.f32 %v2967, %v3199
        %3201 = vmatmul.bf16.gmra.mxu0 %v2432
        %v3202 = vpop.f32.mrf.mxu0
        %v3203 = vadd.f32 %v2970, %v3202
        %v3204 = vpop.f32.mrf.mxu0
        %v3205 = vadd.f32 %v2972, %v3204
        %3206 = vmatmul.bf16.gmra.mxu0 %v2433
        %v3207 = vpop.f32.mrf.mxu0
        %v3208 = vadd.f32 %v2975, %v3207
        %v3209 = vpop.f32.mrf.mxu0
        %v3210 = vadd.f32 %v2977, %v3209
        %3211 = vmatmul.bf16.gmra.mxu0 %v2434
        %v3212 = vpop.f32.mrf.mxu0
        %v3213 = vadd.f32 %v2980, %v3212
        %v3214 = vpop.f32.mrf.mxu0
        %v3215 = vadd.f32 %v2982, %v3214
        %3216 = vmatmul.bf16.gmra.mxu0 %v2435
        %v3217 = vpop.f32.mrf.mxu0
        %v3218 = vadd.f32 %v2985, %v3217
        %v3219 = vpop.f32.mrf.mxu0
        %v3220 = vadd.f32 %v2987, %v3219
        %3221 = vmatmul.bf16.gmra.mxu0 %v2436
        %v3222 = vpop.f32.mrf.mxu0
        %v3223 = vadd.f32 %v2990, %v3222
        %v3224 = vpop.f32.mrf.mxu0
        %v3225 = vadd.f32 %v2992, %v3224
        %3226 = vmatmul.bf16.gmra.mxu0 %v2437
        %v3227 = vpop.f32.mrf.mxu0
        %v3228 = vadd.f32 %v2995, %v3227
        %v3229 = vpop.f32.mrf.mxu0
        %v3230 = vadd.f32 %v2997, %v3229
        %3231 = vmatmul.bf16.gmra.mxu0 %v2438
        %v3232 = vpop.f32.mrf.mxu0
        %v3233 = vadd.f32 %v3000, %v3232
        %v3234 = vpop.f32.mrf.mxu0
        %v3235 = vadd.f32 %v3002, %v3234
        %3236 = vmatmul.bf16.gmra.mxu0 %v2439
        %v3237 = vpop.f32.mrf.mxu0
        %v3238 = vadd.f32 %v3005, %v3237
        %v3239 = vpop.f32.mrf.mxu0
        %v3240 = vadd.f32 %v3007, %v3239
        %3241 = vmatmul.bf16.gmra.mxu0 %v2440
        %v3242 = vpop.f32.mrf.mxu0
        %v3243 = vadd.f32 %v3010, %v3242
        %v3244 = vpop.f32.mrf.mxu0
        %v3245 = vadd.f32 %v3012, %v3244
        %3246 = vmatmul.bf16.gmra.mxu0 %v2441
        %v3247 = vpop.f32.mrf.mxu0
        %v3248 = vadd.f32 %v3015, %v3247
        %v3249 = vpop.f32.mrf.mxu0
        %v3250 = vadd.f32 %v3017, %v3249
        %3251 = vmatmul.bf16.gmra.mxu0 %v2442
        %v3252 = vpop.f32.mrf.mxu0
        %v3253 = vadd.f32 %v3020, %v3252
        %v3254 = vpop.f32.mrf.mxu0
        %v3255 = vadd.f32 %v3022, %v3254
        %3256 = vmatmul.bf16.gmra.mxu0 %v2443
        %v3257 = vpop.f32.mrf.mxu0
        %v3258 = vadd.f32 %v3025, %v3257
        %v3259 = vpop.f32.mrf.mxu0
        %v3260 = vadd.f32 %v3027, %v3259
        %3261 = vmatmul.bf16.gmra.mxu0 %v2444
        %v3262 = vpop.f32.mrf.mxu0
        %v3263 = vadd.f32 %v3030, %v3262
        %v3264 = vpop.f32.mrf.mxu0
        %v3265 = vadd.f32 %v3032, %v3264
        %3266 = vdwg.mxu0
        %3267 = vmatpush.bf16.msra.mxu0 %v3145
        %3268 = vmatpush.bf16.msra.mxu0 %v3144
        %3269 = vmatpush.bf16.msra.mxu0 %v3143
        %3270 = vmatpush.bf16.msra.mxu0 %v3142
        %3271 = vmatpush.bf16.msra.mxu0 %v3141
        %3272 = vmatpush.bf16.msra.mxu0 %v3140
        %3273 = vmatpush.bf16.msra.mxu0 %v3139
        %3274 = vmatpush.bf16.msra.mxu0 %v3138
        %3275 = vmatmul.bf16.gmra.mxu0 0
        %v3276 = vpop.f32.mrf.mxu0
        %v3277 = vadd.f32 %v3188, %v3276
        %v3278 = vpop.f32.mrf.mxu0
        %v3279 = vadd.f32 %v3190, %v3278
        %3280 = vmatmul.bf16.gmra.mxu0 %v2286
        %v3281 = vpop.f32.mrf.mxu0
        %v3282 = vadd.f32 %v3193, %v3281
        %v3283 = vpop.f32.mrf.mxu0
        %v3284 = vadd.f32 %v3195, %v3283
        %3285 = vmatmul.bf16.gmra.mxu0 %v2287
        %v3286 = vpop.f32.mrf.mxu0
        %v3287 = vadd.f32 %v3198, %v3286
        %v3288 = vpop.f32.mrf.mxu0
        %v3289 = vadd.f32 %v3200, %v3288
        %3290 = vmatmul.bf16.gmra.mxu0 %v2288
        %v3291 = vpop.f32.mrf.mxu0
        %v3292 = vadd.f32 %v3203, %v3291
        %v3293 = vpop.f32.mrf.mxu0
        %v3294 = vadd.f32 %v3205, %v3293
        %3295 = vmatmul.bf16.gmra.mxu0 %v2289
        %v3296 = vpop.f32.mrf.mxu0
        %v3297 = vadd.f32 %v3208, %v3296
        %v3298 = vpop.f32.mrf.mxu0
        %v3299 = vadd.f32 %v3210, %v3298
        %3300 = vmatmul.bf16.gmra.mxu0 %v2290
        %v3301 = vpop.f32.mrf.mxu0
        %v3302 = vadd.f32 %v3213, %v3301
        %v3303 = vpop.f32.mrf.mxu0
        %v3304 = vadd.f32 %v3215, %v3303
        %3305 = vmatmul.bf16.gmra.mxu0 %v2291
        %v3306 = vpop.f32.mrf.mxu0
        %v3307 = vadd.f32 %v3218, %v3306
        %v3308 = vpop.f32.mrf.mxu0
        %v3309 = vadd.f32 %v3220, %v3308
        %3310 = vmatmul.bf16.gmra.mxu0 %v2292
        %v3311 = vpop.f32.mrf.mxu0
        %v3312 = vadd.f32 %v3223, %v3311
        %v3313 = vpop.f32.mrf.mxu0
        %v3314 = vadd.f32 %v3225, %v3313
        %3315 = vmatmul.bf16.gmra.mxu0 %v2293
        %v3316 = vpop.f32.mrf.mxu0
        %v3317 = vadd.f32 %v3228, %v3316
        %v3318 = vpop.f32.mrf.mxu0
        %v3319 = vadd.f32 %v3230, %v3318
        %3320 = vmatmul.bf16.gmra.mxu0 %v2294
        %v3321 = vpop.f32.mrf.mxu0
        %v3322 = vadd.f32 %v3233, %v3321
        %v3323 = vpop.f32.mrf.mxu0
        %v3324 = vadd.f32 %v3235, %v3323
        %3325 = vmatmul.bf16.gmra.mxu0 %v2295
        %v3326 = vpop.f32.mrf.mxu0
        %v3327 = vadd.f32 %v3238, %v3326
        %v3328 = vpop.f32.mrf.mxu0
        %v3329 = vadd.f32 %v3240, %v3328
        %3330 = vmatmul.bf16.gmra.mxu0 %v2296
        %v3331 = vpop.f32.mrf.mxu0
        %v3332 = vadd.f32 %v3243, %v3331
        %v3333 = vpop.f32.mrf.mxu0
        %v3334 = vadd.f32 %v3245, %v3333
        %3335 = vmatmul.bf16.gmra.mxu0 %v2297
        %v3336 = vpop.f32.mrf.mxu0
        %v3337 = vadd.f32 %v3248, %v3336
        %v3338 = vpop.f32.mrf.mxu0
        %v3339 = vadd.f32 %v3250, %v3338
        %3340 = vmatmul.bf16.gmra.mxu0 %v2298
        %v3341 = vpop.f32.mrf.mxu0
        %v3342 = vadd.f32 %v3253, %v3341
        %v3343 = vpop.f32.mrf.mxu0
        %v3344 = vadd.f32 %v3255, %v3343
        %3345 = vmatmul.bf16.gmra.mxu0 %v2299
        %v3346 = vpop.f32.mrf.mxu0
        %v3347 = vadd.f32 %v3258, %v3346
        %v3348 = vpop.f32.mrf.mxu0
        %v3349 = vadd.f32 %v3260, %v3348
        %3350 = vmatmul.bf16.gmra.mxu0 %v2300
        %v3351 = vpop.f32.mrf.mxu0
        %v3352 = vadd.f32 %v3263, %v3351
        %v3353 = vpop.f32.mrf.mxu0
        %v3354 = vadd.f32 %v3265, %v3353
        %3355 = vdwg.mxu0
        %3356 = vmatpush.bf16.msra.mxu0 %v3153
        %3357 = vmatpush.bf16.msra.mxu0 %v3152
        %3358 = vmatpush.bf16.msra.mxu0 %v3151
        %3359 = vmatpush.bf16.msra.mxu0 %v3150
        %3360 = vmatpush.bf16.msra.mxu0 %v3149
        %3361 = vmatpush.bf16.msra.mxu0 %v3148
        %3362 = vmatpush.bf16.msra.mxu0 %v3147
        %3363 = vmatpush.bf16.msra.mxu0 %v3146
        %3364 = vmatmul.bf16.gmra.mxu0 0
        %v3365 = vpop.f32.mrf.mxu0
        %v3366 = vadd.f32 %v3277, %v3365
        %v3367 = vpop.f32.mrf.mxu0
        %v3368 = vadd.f32 %v3279, %v3367
        %3369 = vmatmul.bf16.gmra.mxu0 %v2494
        %v3370 = vpop.f32.mrf.mxu0
        %v3371 = vadd.f32 %v3282, %v3370
        %v3372 = vpop.f32.mrf.mxu0
        %v3373 = vadd.f32 %v3284, %v3372
        %3374 = vmatmul.bf16.gmra.mxu0 %v2495
        %v3375 = vpop.f32.mrf.mxu0
        %v3376 = vadd.f32 %v3287, %v3375
        %v3377 = vpop.f32.mrf.mxu0
        %v3378 = vadd.f32 %v3289, %v3377
        %3379 = vmatmul.bf16.gmra.mxu0 %v2496
        %v3380 = vpop.f32.mrf.mxu0
        %v3381 = vadd.f32 %v3292, %v3380
        %v3382 = vpop.f32.mrf.mxu0
        %v3383 = vadd.f32 %v3294, %v3382
        %3384 = vmatmul.bf16.gmra.mxu0 %v2497
        %v3385 = vpop.f32.mrf.mxu0
        %v3386 = vadd.f32 %v3297, %v3385
        %v3387 = vpop.f32.mrf.mxu0
        %v3388 = vadd.f32 %v3299, %v3387
        %3389 = vmatmul.bf16.gmra.mxu0 %v2498
        %v3390 = vpop.f32.mrf.mxu0
        %v3391 = vadd.f32 %v3302, %v3390
        %v3392 = vpop.f32.mrf.mxu0
        %v3393 = vadd.f32 %v3304, %v3392
        %3394 = vmatmul.bf16.gmra.mxu0 %v2499
        %v3395 = vpop.f32.mrf.mxu0
        %v3396 = vadd.f32 %v3307, %v3395
        %v3397 = vpop.f32.mrf.mxu0
        %v3398 = vadd.f32 %v3309, %v3397
        %3399 = vmatmul.bf16.gmra.mxu0 %v2500
        %v3400 = vpop.f32.mrf.mxu0
        %v3401 = vadd.f32 %v3312, %v3400
        %v3402 = vpop.f32.mrf.mxu0
        %v3403 = vadd.f32 %v3314, %v3402
        %3404 = vmatmul.bf16.gmra.mxu0 %v2501
        %v3405 = vpop.f32.mrf.mxu0
        %v3406 = vadd.f32 %v3317, %v3405
        %v3407 = vpop.f32.mrf.mxu0
        %v3408 = vadd.f32 %v3319, %v3407
        %3409 = vmatmul.bf16.gmra.mxu0 %v2502
        %v3410 = vpop.f32.mrf.mxu0
        %v3411 = vadd.f32 %v3322, %v3410
        %v3412 = vpop.f32.mrf.mxu0
        %v3413 = vadd.f32 %v3324, %v3412
        %3414 = vmatmul.bf16.gmra.mxu0 %v2503
        %v3415 = vpop.f32.mrf.mxu0
        %v3416 = vadd.f32 %v3327, %v3415
        %v3417 = vpop.f32.mrf.mxu0
        %v3418 = vadd.f32 %v3329, %v3417
        %3419 = vmatmul.bf16.gmra.mxu0 %v2504
        %v3420 = vpop.f32.mrf.mxu0
        %v3421 = vadd.f32 %v3332, %v3420
        %v3422 = vpop.f32.mrf.mxu0
        %v3423 = vadd.f32 %v3334, %v3422
        %3424 = vmatmul.bf16.gmra.mxu0 %v2505
        %v3425 = vpop.f32.mrf.mxu0
        %v3426 = vadd.f32 %v3337, %v3425
        %v3427 = vpop.f32.mrf.mxu0
        %v3428 = vadd.f32 %v3339, %v3427
        %3429 = vmatmul.bf16.gmra.mxu0 %v2506
        %v3430 = vpop.f32.mrf.mxu0
        %v3431 = vadd.f32 %v3342, %v3430
        %v3432 = vpop.f32.mrf.mxu0
        %v3433 = vadd.f32 %v3344, %v3432
        %3434 = vmatmul.bf16.gmra.mxu0 %v2507
        %v3435 = vpop.f32.mrf.mxu0
        %v3436 = vadd.f32 %v3347, %v3435
        %v3437 = vpop.f32.mrf.mxu0
        %v3438 = vadd.f32 %v3349, %v3437
        %3439 = vmatmul.bf16.gmra.mxu0 %v2508
        %v3440 = vpop.f32.mrf.mxu0
        %v3441 = vadd.f32 %v3352, %v3440
        %v3442 = vpop.f32.mrf.mxu0
        %v3443 = vadd.f32 %v3354, %v3442
        %3444 = vdwg.mxu0
        %s3445 = scalar_lea.vmem [#allocation7], 384
        %v3446 = vld [vmem:[%s3445] sm:$0xf]
        %v3447 = vld [vmem:[%s3445 + $0x4] sm:$0xf]
        %v3448 = vld [vmem:[%s3445 + $0x8] sm:$0xf]
        %v3449 = vld [vmem:[%s3445 + $0xc] sm:$0xf]
        %v3450 = vld [vmem:[%s3445 + $0x10] sm:$0xf]
        %v3451 = vld [vmem:[%s3445 + $0x14] sm:$0xf]
        %v3452 = vld [vmem:[%s3445 + $0x18] sm:$0xf]
        %v3453 = vld [vmem:[%s3445 + $0x1c] sm:$0xf]
        %v3454 = vld [vmem:[%s3445 + $0x20] sm:$0xf]
        %v3455 = vld [vmem:[%s3445 + $0x24] sm:$0xf]
        %v3456 = vld [vmem:[%s3445 + $0x28] sm:$0xf]
        %v3457 = vld [vmem:[%s3445 + $0x2c] sm:$0xf]
        %v3458 = vld [vmem:[%s3445 + $0x30] sm:$0xf]
        %v3459 = vld [vmem:[%s3445 + $0x34] sm:$0xf]
        %v3460 = vld [vmem:[%s3445 + $0x38] sm:$0xf]
        %v3461 = vld [vmem:[%s3445 + $0x3c] sm:$0xf]
        %v3462 = vld [vmem:[%s3445 + $0x40] sm:$0xf]
        %v3463 = vld [vmem:[%s3445 + $0x44] sm:$0xf]
        %v3464 = vld [vmem:[%s3445 + $0x48] sm:$0xf]
        %v3465 = vld [vmem:[%s3445 + $0x4c] sm:$0xf]
        %v3466 = vld [vmem:[%s3445 + $0x50] sm:$0xf]
        %v3467 = vld [vmem:[%s3445 + $0x54] sm:$0xf]
        %v3468 = vld [vmem:[%s3445 + $0x58] sm:$0xf]
        %v3469 = vld [vmem:[%s3445 + $0x5c] sm:$0xf]
        %v3470 = vld [vmem:[%s3445 + $0x60] sm:$0xf]
        %v3471 = vld [vmem:[%s3445 + $0x64] sm:$0xf]
        %v3472 = vld [vmem:[%s3445 + $0x68] sm:$0xf]
        %v3473 = vld [vmem:[%s3445 + $0x6c] sm:$0xf]
        %v3474 = vld [vmem:[%s3445 + $0x70] sm:$0xf]
        %v3475 = vld [vmem:[%s3445 + $0x74] sm:$0xf]
        %v3476 = vld [vmem:[%s3445 + $0x78] sm:$0xf]
        %v3477 = vld [vmem:[%s3445 + $0x7c] sm:$0xf]
        %v3478 = vld [vmem:[%s3445 + $0x80] sm:$0xf]
        %v3479 = vld [vmem:[%s3445 + $0x84] sm:$0xf]
        %v3480 = vld [vmem:[%s3445 + $0x88] sm:$0xf]
        %v3481 = vld [vmem:[%s3445 + $0x8c] sm:$0xf]
        %v3482 = vld [vmem:[%s3445 + $0x90] sm:$0xf]
        %v3483 = vld [vmem:[%s3445 + $0x94] sm:$0xf]
        %v3484 = vld [vmem:[%s3445 + $0x98] sm:$0xf]
        %v3485 = vld [vmem:[%s3445 + $0x9c] sm:$0xf]
        %v3486 = vld [vmem:[%s3445 + $0xa0] sm:$0xf]
        %v3487 = vld [vmem:[%s3445 + $0xa4] sm:$0xf]
        %v3488 = vld [vmem:[%s3445 + $0xa8] sm:$0xf]
        %v3489 = vld [vmem:[%s3445 + $0xac] sm:$0xf]
        %v3490 = vld [vmem:[%s3445 + $0xb0] sm:$0xf]
        %v3491 = vld [vmem:[%s3445 + $0xb4] sm:$0xf]
        %v3492 = vld [vmem:[%s3445 + $0xb8] sm:$0xf]
        %v3493 = vld [vmem:[%s3445 + $0xbc] sm:$0xf]
        %v3542 = vunpack.c.l.b16 %v3446
        %v3543 = vunpack.c.l.b16 %v3447
        %v3544 = vunpack.c.l.b16 %v3448
        %v3545 = vunpack.c.l.b16 %v3449
        %v3546 = vunpack.c.l.b16 %v3450
        %v3547 = vunpack.c.l.b16 %v3451
        %v3548 = vunpack.c.l.b16 %v3452
        %v3549 = vunpack.c.l.b16 %v3453
        %v3550 = vunpack.c.l.b16 %v3454
        %v3551 = vunpack.c.l.b16 %v3455
        %v3552 = vunpack.c.l.b16 %v3456
        %v3553 = vunpack.c.l.b16 %v3457
        %v3554 = vunpack.c.l.b16 %v3458
        %v3555 = vunpack.c.l.b16 %v3459
        %v3556 = vunpack.c.l.b16 %v3460
        %v3557 = vunpack.c.l.b16 %v3461
        %v3558 = vunpack.c.l.b16 %v3462
        %v3559 = vunpack.c.l.b16 %v3463
        %v3560 = vunpack.c.l.b16 %v3464
        %v3561 = vunpack.c.l.b16 %v3465
        %v3562 = vunpack.c.l.b16 %v3466
        %v3563 = vunpack.c.l.b16 %v3467
        %v3564 = vunpack.c.l.b16 %v3468
        %v3565 = vunpack.c.l.b16 %v3469
        %v3566 = vunpack.c.l.b16 %v3470
        %v3567 = vunpack.c.l.b16 %v3471
        %v3568 = vunpack.c.l.b16 %v3472
        %v3569 = vunpack.c.l.b16 %v3473
        %v3570 = vunpack.c.l.b16 %v3474
        %v3571 = vunpack.c.l.b16 %v3475
        %v3572 = vunpack.c.l.b16 %v3476
        %v3573 = vunpack.c.l.b16 %v3477
        %v3574 = vunpack.c.l.b16 %v3478
        %v3575 = vunpack.c.l.b16 %v3479
        %v3576 = vunpack.c.l.b16 %v3480
        %v3577 = vunpack.c.l.b16 %v3481
        %v3578 = vunpack.c.l.b16 %v3482
        %v3579 = vunpack.c.l.b16 %v3483
        %v3580 = vunpack.c.l.b16 %v3484
        %v3581 = vunpack.c.l.b16 %v3485
        %v3582 = vunpack.c.l.b16 %v3486
        %v3583 = vunpack.c.l.b16 %v3487
        %v3584 = vunpack.c.l.b16 %v3488
        %v3585 = vunpack.c.l.b16 %v3489
        %v3586 = vunpack.c.l.b16 %v3490
        %v3587 = vunpack.c.l.b16 %v3491
        %v3588 = vunpack.c.l.b16 %v3492
        %v3589 = vunpack.c.l.b16 %v3493
        %v3590 = vpack.c.b16 %v3543, %v3542
        %v3591 = vpack.c.b16 %v3545, %v3544
        %v3592 = vpack.c.b16 %v3547, %v3546
        %v3593 = vpack.c.b16 %v3549, %v3548
        %v3594 = vpack.c.b16 %v3551, %v3550
        %v3595 = vpack.c.b16 %v3553, %v3552
        %v3596 = vpack.c.b16 %v3555, %v3554
        %v3597 = vpack.c.b16 %v3557, %v3556
        %v3598 = vpack.c.b16 %v3559, %v3558
        %v3599 = vpack.c.b16 %v3561, %v3560
        %v3600 = vpack.c.b16 %v3563, %v3562
        %v3601 = vpack.c.b16 %v3565, %v3564
        %v3602 = vpack.c.b16 %v3567, %v3566
        %v3603 = vpack.c.b16 %v3569, %v3568
        %v3604 = vpack.c.b16 %v3571, %v3570
        %v3605 = vpack.c.b16 %v3573, %v3572
        %v3606 = vpack.c.b16 %v3575, %v3574
        %v3607 = vpack.c.b16 %v3577, %v3576
        %v3608 = vpack.c.b16 %v3579, %v3578
        %v3609 = vpack.c.b16 %v3581, %v3580
        %v3610 = vpack.c.b16 %v3583, %v3582
        %v3611 = vpack.c.b16 %v3585, %v3584
        %v3612 = vpack.c.b16 %v3587, %v3586
        %v3613 = vpack.c.b16 %v3589, %v3588
        %3638 = vmatpush.bf16.msra.mxu0 %v3597
        %3639 = vmatpush.bf16.msra.mxu0 %v3596
        %3640 = vmatpush.bf16.msra.mxu0 %v3595
        %3641 = vmatpush.bf16.msra.mxu0 %v3594
        %3642 = vmatpush.bf16.msra.mxu0 %v3593
        %3643 = vmatpush.bf16.msra.mxu0 %v3592
        %3644 = vmatpush.bf16.msra.mxu0 %v3591
        %3645 = vmatpush.bf16.msra.mxu0 %v3590
        %3646 = vmatmul.bf16.gmra.mxu0 %v2431
        %v3647 = vpop.f32.mrf.mxu0
        %v3648 = vadd.f32 0.0, %v3647
        %v3649 = vpop.f32.mrf.mxu0
        %v3650 = vadd.f32 0.0, %v3649
        %3651 = vmatmul.bf16.gmra.mxu0 %v2432
        %v3652 = vpop.f32.mrf.mxu0
        %v3653 = vadd.f32 0.0, %v3652
        %v3654 = vpop.f32.mrf.mxu0
        %v3655 = vadd.f32 0.0, %v3654
        %3656 = vmatmul.bf16.gmra.mxu0 %v2433
        %v3657 = vpop.f32.mrf.mxu0
        %v3658 = vadd.f32 0.0, %v3657
        %v3659 = vpop.f32.mrf.mxu0
        %v3660 = vadd.f32 0.0, %v3659
        %3661 = vmatmul.bf16.gmra.mxu0 %v2434
        %v3662 = vpop.f32.mrf.mxu0
        %v3663 = vadd.f32 0.0, %v3662
        %v3664 = vpop.f32.mrf.mxu0
        %v3665 = vadd.f32 0.0, %v3664
        %3666 = vmatmul.bf16.gmra.mxu0 %v2435
        %v3667 = vpop.f32.mrf.mxu0
        %v3668 = vadd.f32 0.0, %v3667
        %v3669 = vpop.f32.mrf.mxu0
        %v3670 = vadd.f32 0.0, %v3669
        %3671 = vmatmul.bf16.gmra.mxu0 %v2436
        %v3672 = vpop.f32.mrf.mxu0
        %v3673 = vadd.f32 0.0, %v3672
        %v3674 = vpop.f32.mrf.mxu0
        %v3675 = vadd.f32 0.0, %v3674
        %3676 = vmatmul.bf16.gmra.mxu0 %v2437
        %v3677 = vpop.f32.mrf.mxu0
        %v3678 = vadd.f32 0.0, %v3677
        %v3679 = vpop.f32.mrf.mxu0
        %v3680 = vadd.f32 0.0, %v3679
        %3681 = vmatmul.bf16.gmra.mxu0 %v2438
        %v3682 = vpop.f32.mrf.mxu0
        %v3683 = vadd.f32 0.0, %v3682
        %v3684 = vpop.f32.mrf.mxu0
        %v3685 = vadd.f32 0.0, %v3684
        %3686 = vmatmul.bf16.gmra.mxu0 %v2439
        %v3687 = vpop.f32.mrf.mxu0
        %v3688 = vadd.f32 0.0, %v3687
        %v3689 = vpop.f32.mrf.mxu0
        %v3690 = vadd.f32 0.0, %v3689
        %3691 = vmatmul.bf16.gmra.mxu0 %v2440
        %v3692 = vpop.f32.mrf.mxu0
        %v3693 = vadd.f32 0.0, %v3692
        %v3694 = vpop.f32.mrf.mxu0
        %v3695 = vadd.f32 0.0, %v3694
        %3696 = vmatmul.bf16.gmra.mxu0 %v2441
        %v3697 = vpop.f32.mrf.mxu0
        %v3698 = vadd.f32 0.0, %v3697
        %v3699 = vpop.f32.mrf.mxu0
        %v3700 = vadd.f32 0.0, %v3699
        %3701 = vmatmul.bf16.gmra.mxu0 %v2442
        %v3702 = vpop.f32.mrf.mxu0
        %v3703 = vadd.f32 0.0, %v3702
        %v3704 = vpop.f32.mrf.mxu0
        %v3705 = vadd.f32 0.0, %v3704
        %3706 = vmatmul.bf16.gmra.mxu0 %v2443
        %v3707 = vpop.f32.mrf.mxu0
        %v3708 = vadd.f32 0.0, %v3707
        %v3709 = vpop.f32.mrf.mxu0
        %v3710 = vadd.f32 0.0, %v3709
        %3711 = vmatmul.bf16.gmra.mxu0 %v2444
        %v3712 = vpop.f32.mrf.mxu0
        %v3713 = vadd.f32 0.0, %v3712
        %v3714 = vpop.f32.mrf.mxu0
        %v3715 = vadd.f32 0.0, %v3714
        %3716 = vmatmul.bf16.gmra.mxu0 %v2445
        %v3717 = vpop.f32.mrf.mxu0
        %v3718 = vadd.f32 0.0, %v3717
        %v3719 = vpop.f32.mrf.mxu0
        %v3720 = vadd.f32 0.0, %v3719
        %3721 = vmatmul.bf16.gmra.mxu0 0
        %v3722 = vpop.f32.mrf.mxu0
        %v3723 = vadd.f32 0.0, %v3722
        %v3724 = vpop.f32.mrf.mxu0
        %v3725 = vadd.f32 0.0, %v3724
        %3726 = vdwg.mxu0
        %3727 = vmatpush.bf16.msra.mxu0 %v3605
        %3728 = vmatpush.bf16.msra.mxu0 %v3604
        %3729 = vmatpush.bf16.msra.mxu0 %v3603
        %3730 = vmatpush.bf16.msra.mxu0 %v3602
        %3731 = vmatpush.bf16.msra.mxu0 %v3601
        %3732 = vmatpush.bf16.msra.mxu0 %v3600
        %3733 = vmatpush.bf16.msra.mxu0 %v3599
        %3734 = vmatpush.bf16.msra.mxu0 %v3598
        %3735 = vmatmul.bf16.gmra.mxu0 %v2287
        %v3736 = vpop.f32.mrf.mxu0
        %v3737 = vadd.f32 %v3648, %v3736
        %v3738 = vpop.f32.mrf.mxu0
        %v3739 = vadd.f32 %v3650, %v3738
        %3740 = vmatmul.bf16.gmra.mxu0 %v2288
        %v3741 = vpop.f32.mrf.mxu0
        %v3742 = vadd.f32 %v3653, %v3741
        %v3743 = vpop.f32.mrf.mxu0
        %v3744 = vadd.f32 %v3655, %v3743
        %3745 = vmatmul.bf16.gmra.mxu0 %v2289
        %v3746 = vpop.f32.mrf.mxu0
        %v3747 = vadd.f32 %v3658, %v3746
        %v3748 = vpop.f32.mrf.mxu0
        %v3749 = vadd.f32 %v3660, %v3748
        %3750 = vmatmul.bf16.gmra.mxu0 %v2290
        %v3751 = vpop.f32.mrf.mxu0
        %v3752 = vadd.f32 %v3663, %v3751
        %v3753 = vpop.f32.mrf.mxu0
        %v3754 = vadd.f32 %v3665, %v3753
        %3755 = vmatmul.bf16.gmra.mxu0 %v2291
        %v3756 = vpop.f32.mrf.mxu0
        %v3757 = vadd.f32 %v3668, %v3756
        %v3758 = vpop.f32.mrf.mxu0
        %v3759 = vadd.f32 %v3670, %v3758
        %3760 = vmatmul.bf16.gmra.mxu0 %v2292
        %v3761 = vpop.f32.mrf.mxu0
        %v3762 = vadd.f32 %v3673, %v3761
        %v3763 = vpop.f32.mrf.mxu0
        %v3764 = vadd.f32 %v3675, %v3763
        %3765 = vmatmul.bf16.gmra.mxu0 %v2293
        %v3766 = vpop.f32.mrf.mxu0
        %v3767 = vadd.f32 %v3678, %v3766
        %v3768 = vpop.f32.mrf.mxu0
        %v3769 = vadd.f32 %v3680, %v3768
        %3770 = vmatmul.bf16.gmra.mxu0 %v2294
        %v3771 = vpop.f32.mrf.mxu0
        %v3772 = vadd.f32 %v3683, %v3771
        %v3773 = vpop.f32.mrf.mxu0
        %v3774 = vadd.f32 %v3685, %v3773
        %3775 = vmatmul.bf16.gmra.mxu0 %v2295
        %v3776 = vpop.f32.mrf.mxu0
        %v3777 = vadd.f32 %v3688, %v3776
        %v3778 = vpop.f32.mrf.mxu0
        %v3779 = vadd.f32 %v3690, %v3778
        %3780 = vmatmul.bf16.gmra.mxu0 %v2296
        %v3781 = vpop.f32.mrf.mxu0
        %v3782 = vadd.f32 %v3693, %v3781
        %v3783 = vpop.f32.mrf.mxu0
        %v3784 = vadd.f32 %v3695, %v3783
        %3785 = vmatmul.bf16.gmra.mxu0 %v2297
        %v3786 = vpop.f32.mrf.mxu0
        %v3787 = vadd.f32 %v3698, %v3786
        %v3788 = vpop.f32.mrf.mxu0
        %v3789 = vadd.f32 %v3700, %v3788
        %3790 = vmatmul.bf16.gmra.mxu0 %v2298
        %v3791 = vpop.f32.mrf.mxu0
        %v3792 = vadd.f32 %v3703, %v3791
        %v3793 = vpop.f32.mrf.mxu0
        %v3794 = vadd.f32 %v3705, %v3793
        %3795 = vmatmul.bf16.gmra.mxu0 %v2299
        %v3796 = vpop.f32.mrf.mxu0
        %v3797 = vadd.f32 %v3708, %v3796
        %v3798 = vpop.f32.mrf.mxu0
        %v3799 = vadd.f32 %v3710, %v3798
        %3800 = vmatmul.bf16.gmra.mxu0 %v2300
        %v3801 = vpop.f32.mrf.mxu0
        %v3802 = vadd.f32 %v3713, %v3801
        %v3803 = vpop.f32.mrf.mxu0
        %v3804 = vadd.f32 %v3715, %v3803
        %3805 = vmatmul.bf16.gmra.mxu0 %v2301
        %v3806 = vpop.f32.mrf.mxu0
        %v3807 = vadd.f32 %v3718, %v3806
        %v3808 = vpop.f32.mrf.mxu0
        %v3809 = vadd.f32 %v3720, %v3808
        %3810 = vmatmul.bf16.gmra.mxu0 0
        %v3811 = vpop.f32.mrf.mxu0
        %v3812 = vadd.f32 %v3723, %v3811
        %v3813 = vpop.f32.mrf.mxu0
        %v3814 = vadd.f32 %v3725, %v3813
        %3815 = vdwg.mxu0
        %3816 = vmatpush.bf16.msra.mxu0 %v3613
        %3817 = vmatpush.bf16.msra.mxu0 %v3612
        %3818 = vmatpush.bf16.msra.mxu0 %v3611
        %3819 = vmatpush.bf16.msra.mxu0 %v3610
        %3820 = vmatpush.bf16.msra.mxu0 %v3609
        %3821 = vmatpush.bf16.msra.mxu0 %v3608
        %3822 = vmatpush.bf16.msra.mxu0 %v3607
        %3823 = vmatpush.bf16.msra.mxu0 %v3606
        %3824 = vmatmul.bf16.gmra.mxu0 %v2495
        %v3825 = vpop.f32.mrf.mxu0
        %v3826 = vadd.f32 %v3737, %v3825
        %v3827 = vpop.f32.mrf.mxu0
        %v3828 = vadd.f32 %v3739, %v3827
        %3829 = vmatmul.bf16.gmra.mxu0 %v2496
        %v3830 = vpop.f32.mrf.mxu0
        %v3831 = vadd.f32 %v3742, %v3830
        %v3832 = vpop.f32.mrf.mxu0
        %v3833 = vadd.f32 %v3744, %v3832
        %3834 = vmatmul.bf16.gmra.mxu0 %v2497
        %v3835 = vpop.f32.mrf.mxu0
        %v3836 = vadd.f32 %v3747, %v3835
        %v3837 = vpop.f32.mrf.mxu0
        %v3838 = vadd.f32 %v3749, %v3837
        %3839 = vmatmul.bf16.gmra.mxu0 %v2498
        %v3840 = vpop.f32.mrf.mxu0
        %v3841 = vadd.f32 %v3752, %v3840
        %v3842 = vpop.f32.mrf.mxu0
        %v3843 = vadd.f32 %v3754, %v3842
        %3844 = vmatmul.bf16.gmra.mxu0 %v2499
        %v3845 = vpop.f32.mrf.mxu0
        %v3846 = vadd.f32 %v3757, %v3845
        %v3847 = vpop.f32.mrf.mxu0
        %v3848 = vadd.f32 %v3759, %v3847
        %3849 = vmatmul.bf16.gmra.mxu0 %v2500
        %v3850 = vpop.f32.mrf.mxu0
        %v3851 = vadd.f32 %v3762, %v3850
        %v3852 = vpop.f32.mrf.mxu0
        %v3853 = vadd.f32 %v3764, %v3852
        %3854 = vmatmul.bf16.gmra.mxu0 %v2501
        %v3855 = vpop.f32.mrf.mxu0
        %v3856 = vadd.f32 %v3767, %v3855
        %v3857 = vpop.f32.mrf.mxu0
        %v3858 = vadd.f32 %v3769, %v3857
        %3859 = vmatmul.bf16.gmra.mxu0 %v2502
        %v3860 = vpop.f32.mrf.mxu0
        %v3861 = vadd.f32 %v3772, %v3860
        %v3862 = vpop.f32.mrf.mxu0
        %v3863 = vadd.f32 %v3774, %v3862
        %3864 = vmatmul.bf16.gmra.mxu0 %v2503
        %v3865 = vpop.f32.mrf.mxu0
        %v3866 = vadd.f32 %v3777, %v3865
        %v3867 = vpop.f32.mrf.mxu0
        %v3868 = vadd.f32 %v3779, %v3867
        %3869 = vmatmul.bf16.gmra.mxu0 %v2504
        %v3870 = vpop.f32.mrf.mxu0
        %v3871 = vadd.f32 %v3782, %v3870
        %v3872 = vpop.f32.mrf.mxu0
        %v3873 = vadd.f32 %v3784, %v3872
        %3874 = vmatmul.bf16.gmra.mxu0 %v2505
        %v3875 = vpop.f32.mrf.mxu0
        %v3876 = vadd.f32 %v3787, %v3875
        %v3877 = vpop.f32.mrf.mxu0
        %v3878 = vadd.f32 %v3789, %v3877
        %3879 = vmatmul.bf16.gmra.mxu0 %v2506
        %v3880 = vpop.f32.mrf.mxu0
        %v3881 = vadd.f32 %v3792, %v3880
        %v3882 = vpop.f32.mrf.mxu0
        %v3883 = vadd.f32 %v3794, %v3882
        %3884 = vmatmul.bf16.gmra.mxu0 %v2507
        %v3885 = vpop.f32.mrf.mxu0
        %v3886 = vadd.f32 %v3797, %v3885
        %v3887 = vpop.f32.mrf.mxu0
        %v3888 = vadd.f32 %v3799, %v3887
        %3889 = vmatmul.bf16.gmra.mxu0 %v2508
        %v3890 = vpop.f32.mrf.mxu0
        %v3891 = vadd.f32 %v3802, %v3890
        %v3892 = vpop.f32.mrf.mxu0
        %v3893 = vadd.f32 %v3804, %v3892
        %3894 = vmatmul.bf16.gmra.mxu0 %v2509
        %v3895 = vpop.f32.mrf.mxu0
        %v3896 = vadd.f32 %v3807, %v3895
        %v3897 = vpop.f32.mrf.mxu0
        %v3898 = vadd.f32 %v3809, %v3897
        %3899 = vmatmul.bf16.gmra.mxu0 0
        %v3900 = vpop.f32.mrf.mxu0
        %v3901 = vadd.f32 %v3812, %v3900
        %v3902 = vpop.f32.mrf.mxu0
        %v3903 = vadd.f32 %v3814, %v3902
        %3904 = vdwg.mxu0
        %v3905 = vadd.f32 %v3366, %v3826
        %v3906 = vadd.f32 %v3368, %v3828
        %v3907 = vadd.f32 %v3371, %v3831
        %v3908 = vadd.f32 %v3373, %v3833
        %v3909 = vadd.f32 %v3376, %v3836
        %v3910 = vadd.f32 %v3378, %v3838
        %v3911 = vadd.f32 %v3381, %v3841
        %v3912 = vadd.f32 %v3383, %v3843
        %v3913 = vadd.f32 %v3386, %v3846
        %v3914 = vadd.f32 %v3388, %v3848
        %v3915 = vadd.f32 %v3391, %v3851
        %v3916 = vadd.f32 %v3393, %v3853
        %v3917 = vadd.f32 %v3396, %v3856
        %v3918 = vadd.f32 %v3398, %v3858
        %v3919 = vadd.f32 %v3401, %v3861
        %v3920 = vadd.f32 %v3403, %v3863
        %v3921 = vadd.f32 %v3406, %v3866
        %v3922 = vadd.f32 %v3408, %v3868
        %v3923 = vadd.f32 %v3411, %v3871
        %v3924 = vadd.f32 %v3413, %v3873
        %v3925 = vadd.f32 %v3416, %v3876
        %v3926 = vadd.f32 %v3418, %v3878
        %v3927 = vadd.f32 %v3421, %v3881
        %v3928 = vadd.f32 %v3423, %v3883
        %v3929 = vadd.f32 %v3426, %v3886
        %v3930 = vadd.f32 %v3428, %v3888
        %v3931 = vadd.f32 %v3431, %v3891
        %v3932 = vadd.f32 %v3433, %v3893
        %v3933 = vadd.f32 %v3436, %v3896
        %v3934 = vadd.f32 %v3438, %v3898
        %v3935 = vadd.f32 %v3441, %v3901
        %v3936 = vadd.f32 %v3443, %v3903
        %v3937 = vld [vmem:[%s5] sm:$0x1]
        %v3939 = vperm.slane %v3937, 0
        %v3941 = vmul.f32 %v3905, %v3939
        %v3942 = vmul.f32 %v3906, %v3939
        %v3943 = vmul.f32 %v3907, %v3939
        %v3944 = vmul.f32 %v3908, %v3939
        %v3945 = vmul.f32 %v3909, %v3939
        %v3946 = vmul.f32 %v3910, %v3939
        %v3947 = vmul.f32 %v3911, %v3939
        %v3948 = vmul.f32 %v3912, %v3939
        %v3949 = vmul.f32 %v3913, %v3939
        %v3950 = vmul.f32 %v3914, %v3939
        %v3951 = vmul.f32 %v3915, %v3939
        %v3952 = vmul.f32 %v3916, %v3939
        %v3953 = vmul.f32 %v3917, %v3939
        %v3954 = vmul.f32 %v3918, %v3939
        %v3955 = vmul.f32 %v3919, %v3939
        %v3956 = vmul.f32 %v3920, %v3939
        %v3957 = vmul.f32 %v3921, %v3939
        %v3958 = vmul.f32 %v3922, %v3939
        %v3959 = vmul.f32 %v3923, %v3939
        %v3960 = vmul.f32 %v3924, %v3939
        %v3961 = vmul.f32 %v3925, %v3939
        %v3962 = vmul.f32 %v3926, %v3939
        %v3963 = vmul.f32 %v3927, %v3939
        %v3964 = vmul.f32 %v3928, %v3939
        %v3965 = vmul.f32 %v3929, %v3939
        %v3966 = vmul.f32 %v3930, %v3939
        %v3967 = vmul.f32 %v3931, %v3939
        %v3968 = vmul.f32 %v3932, %v3939
        %v3969 = vmul.f32 %v3933, %v3939
        %v3970 = vmul.f32 %v3934, %v3939
        %v3971 = vmul.f32 %v3935, %v3939
        %v3972 = vmul.f32 %v3936, %v3939
        %v3973 = vld [vmem:[%s6] sm:$0x1]
        %v3975 = vperm.slane %v3973, 0
        %v3977 = vadd.f32 %v3941, %v3975
        %v3978 = vadd.f32 %v3942, %v3975
        %v3979 = vadd.f32 %v3943, %v3975
        %v3980 = vadd.f32 %v3944, %v3975
        %v3981 = vadd.f32 %v3945, %v3975
        %v3982 = vadd.f32 %v3946, %v3975
        %v3983 = vadd.f32 %v3947, %v3975
        %v3984 = vadd.f32 %v3948, %v3975
        %v3985 = vadd.f32 %v3949, %v3975
        %v3986 = vadd.f32 %v3950, %v3975
        %v3987 = vadd.f32 %v3951, %v3975
        %v3988 = vadd.f32 %v3952, %v3975
        %v3989 = vadd.f32 %v3953, %v3975
        %v3990 = vadd.f32 %v3954, %v3975
        %v3991 = vadd.f32 %v3955, %v3975
        %v3992 = vadd.f32 %v3956, %v3975
        %v3993 = vadd.f32 %v3957, %v3975
        %v3994 = vadd.f32 %v3958, %v3975
        %v3995 = vadd.f32 %v3959, %v3975
        %v3996 = vadd.f32 %v3960, %v3975
        %v3997 = vadd.f32 %v3961, %v3975
        %v3998 = vadd.f32 %v3962, %v3975
        %v3999 = vadd.f32 %v3963, %v3975
        %v4000 = vadd.f32 %v3964, %v3975
        %v4001 = vadd.f32 %v3965, %v3975
        %v4002 = vadd.f32 %v3966, %v3975
        %v4003 = vadd.f32 %v3967, %v3975
        %v4004 = vadd.f32 %v3968, %v3975
        %v4005 = vadd.f32 %v3969, %v3975
        %v4006 = vadd.f32 %v3970, %v3975
        %v4007 = vadd.f32 %v3971, %v3975
        %v4008 = vadd.f32 %v3972, %v3975
        %v4009 = vunpack.c.l.bf16 %v333
        %v4010 = vunpack.c.l.bf16 %v334
        %v4011 = vunpack.c.l.bf16 %v335
        %v4012 = vunpack.c.l.bf16 %v336
        %v4013 = vunpack.c.l.bf16 %v337
        %v4014 = vunpack.c.l.bf16 %v338
        %v4015 = vunpack.c.l.bf16 %v339
        %v4016 = vunpack.c.l.bf16 %v340
        %v4017 = vunpack.c.l.bf16 %v341
        %v4018 = vunpack.c.l.bf16 %v342
        %v4019 = vunpack.c.l.bf16 %v343
        %v4020 = vunpack.c.l.bf16 %v344
        %v4021 = vunpack.c.l.bf16 %v345
        %v4022 = vunpack.c.l.bf16 %v346
        %v4023 = vunpack.c.l.bf16 %v347
        %v4024 = vunpack.c.l.bf16 %v348
        %v4025 = vunpack.c.l.bf16 %v349
        %v4026 = vunpack.c.l.bf16 %v350
        %v4027 = vunpack.c.l.bf16 %v351
        %v4028 = vunpack.c.l.bf16 %v352
        %v4029 = vunpack.c.l.bf16 %v353
        %v4030 = vunpack.c.l.bf16 %v354
        %v4031 = vunpack.c.l.bf16 %v355
        %v4032 = vunpack.c.l.bf16 %v356
        %v4033 = vunpack.c.l.bf16 %v357
        %v4034 = vunpack.c.l.bf16 %v358
        %v4035 = vunpack.c.l.bf16 %v359
        %v4036 = vunpack.c.l.bf16 %v360
        %v4037 = vunpack.c.l.bf16 %v361
        %v4038 = vunpack.c.l.bf16 %v362
        %v4039 = vunpack.c.l.bf16 %v363
        %v4040 = vunpack.c.l.bf16 %v364
        %v4041 = vadd.f32 %v3977, %v4009
        %v4042 = vadd.f32 %v3978, %v4010
        %v4043 = vadd.f32 %v3979, %v4011
        %v4044 = vadd.f32 %v3980, %v4012
        %v4045 = vadd.f32 %v3981, %v4013
        %v4046 = vadd.f32 %v3982, %v4014
        %v4047 = vadd.f32 %v3983, %v4015
        %v4048 = vadd.f32 %v3984, %v4016
        %v4049 = vadd.f32 %v3985, %v4017
        %v4050 = vadd.f32 %v3986, %v4018
        %v4051 = vadd.f32 %v3987, %v4019
        %v4052 = vadd.f32 %v3988, %v4020
        %v4053 = vadd.f32 %v3989, %v4021
        %v4054 = vadd.f32 %v3990, %v4022
        %v4055 = vadd.f32 %v3991, %v4023
        %v4056 = vadd.f32 %v3992, %v4024
        %v4057 = vadd.f32 %v3993, %v4025
        %v4058 = vadd.f32 %v3994, %v4026
        %v4059 = vadd.f32 %v3995, %v4027
        %v4060 = vadd.f32 %v3996, %v4028
        %v4061 = vadd.f32 %v3997, %v4029
        %v4062 = vadd.f32 %v3998, %v4030
        %v4063 = vadd.f32 %v3999, %v4031
        %v4064 = vadd.f32 %v4000, %v4032
        %v4065 = vadd.f32 %v4001, %v4033
        %v4066 = vadd.f32 %v4002, %v4034
        %v4067 = vadd.f32 %v4003, %v4035
        %v4068 = vadd.f32 %v4004, %v4036
        %v4069 = vadd.f32 %v4005, %v4037
        %v4070 = vadd.f32 %v4006, %v4038
        %v4071 = vadd.f32 %v4007, %v4039
        %v4072 = vadd.f32 %v4008, %v4040
        %v4073 = vmax.f32 %v4041, 0.0
        %v4074 = vmax.f32 %v4042, 0.0
        %v4075 = vmax.f32 %v4043, 0.0
        %v4076 = vmax.f32 %v4044, 0.0
        %v4077 = vmax.f32 %v4045, 0.0
        %v4078 = vmax.f32 %v4046, 0.0
        %v4079 = vmax.f32 %v4047, 0.0
        %v4080 = vmax.f32 %v4048, 0.0
        %v4081 = vmax.f32 %v4049, 0.0
        %v4082 = vmax.f32 %v4050, 0.0
        %v4083 = vmax.f32 %v4051, 0.0
        %v4084 = vmax.f32 %v4052, 0.0
        %v4085 = vmax.f32 %v4053, 0.0
        %v4086 = vmax.f32 %v4054, 0.0
        %v4087 = vmax.f32 %v4055, 0.0
        %v4088 = vmax.f32 %v4056, 0.0
        %v4089 = vmax.f32 %v4057, 0.0
        %v4090 = vmax.f32 %v4058, 0.0
        %v4091 = vmax.f32 %v4059, 0.0
        %v4092 = vmax.f32 %v4060, 0.0
        %v4093 = vmax.f32 %v4061, 0.0
        %v4094 = vmax.f32 %v4062, 0.0
        %v4095 = vmax.f32 %v4063, 0.0
        %v4096 = vmax.f32 %v4064, 0.0
        %v4097 = vmax.f32 %v4065, 0.0
        %v4098 = vmax.f32 %v4066, 0.0
        %v4099 = vmax.f32 %v4067, 0.0
        %v4100 = vmax.f32 %v4068, 0.0
        %v4101 = vmax.f32 %v4069, 0.0
        %v4102 = vmax.f32 %v4070, 0.0
        %v4103 = vmax.f32 %v4071, 0.0
        %v4104 = vmax.f32 %v4072, 0.0
        %v4105 = vpack.c.bf16 %v4073, %v4073
        %v4106 = vpack.c.bf16 %v4074, %v4074
        %v4107 = vpack.c.bf16 %v4075, %v4075
        %v4108 = vpack.c.bf16 %v4076, %v4076
        %v4109 = vpack.c.bf16 %v4077, %v4077
        %v4110 = vpack.c.bf16 %v4078, %v4078
        %v4111 = vpack.c.bf16 %v4079, %v4079
        %v4112 = vpack.c.bf16 %v4080, %v4080
        %v4113 = vpack.c.bf16 %v4081, %v4081
        %v4114 = vpack.c.bf16 %v4082, %v4082
        %v4115 = vpack.c.bf16 %v4083, %v4083
        %v4116 = vpack.c.bf16 %v4084, %v4084
        %v4117 = vpack.c.bf16 %v4085, %v4085
        %v4118 = vpack.c.bf16 %v4086, %v4086
        %v4119 = vpack.c.bf16 %v4087, %v4087
        %v4120 = vpack.c.bf16 %v4088, %v4088
        %v4121 = vpack.c.bf16 %v4089, %v4089
        %v4122 = vpack.c.bf16 %v4090, %v4090
        %v4123 = vpack.c.bf16 %v4091, %v4091
        %v4124 = vpack.c.bf16 %v4092, %v4092
        %v4125 = vpack.c.bf16 %v4093, %v4093
        %v4126 = vpack.c.bf16 %v4094, %v4094
        %v4127 = vpack.c.bf16 %v4095, %v4095
        %v4128 = vpack.c.bf16 %v4096, %v4096
        %v4129 = vpack.c.bf16 %v4097, %v4097
        %v4130 = vpack.c.bf16 %v4098, %v4098
        %v4131 = vpack.c.bf16 %v4099, %v4099
        %v4132 = vpack.c.bf16 %v4100, %v4100
        %v4133 = vpack.c.bf16 %v4101, %v4101
        %v4134 = vpack.c.bf16 %v4102, %v4102
        %v4135 = vpack.c.bf16 %v4103, %v4103
        %v4136 = vpack.c.bf16 %v4104, %v4104
        %4137 = vst [vmem:[%s331] sm:$0xf] %v4105
        %4138 = vst [vmem:[%s331 + $0x4] sm:$0xf] %v4106
        %4139 = vst [vmem:[%s331 + $0x8] sm:$0xf] %v4107
        %4140 = vst [vmem:[%s331 + $0xc] sm:$0xf] %v4108
        %4141 = vst [vmem:[%s331 + $0x10] sm:$0xf] %v4109
        %4142 = vst [vmem:[%s331 + $0x14] sm:$0xf] %v4110
        %4143 = vst [vmem:[%s331 + $0x18] sm:$0xf] %v4111
        %4144 = vst [vmem:[%s331 + $0x1c] sm:$0xf] %v4112
        %4145 = vst [vmem:[%s331 + $0x20] sm:$0xf] %v4113
        %4146 = vst [vmem:[%s331 + $0x24] sm:$0xf] %v4114
        %4147 = vst [vmem:[%s331 + $0x28] sm:$0xf] %v4115
        %4148 = vst [vmem:[%s331 + $0x2c] sm:$0xf] %v4116
        %4149 = vst [vmem:[%s331 + $0x30] sm:$0xf] %v4117
        %4150 = vst [vmem:[%s331 + $0x34] sm:$0xf] %v4118
        %4151 = vst [vmem:[%s331 + $0x38] sm:$0xf] %v4119
        %4152 = vst [vmem:[%s331 + $0x3c] sm:$0xf] %v4120
        %4153 = vst [vmem:[%s331 + $0x40] sm:$0xf] %v4121
        %4154 = vst [vmem:[%s331 + $0x44] sm:$0xf] %v4122
        %4155 = vst [vmem:[%s331 + $0x48] sm:$0xf] %v4123
        %4156 = vst [vmem:[%s331 + $0x4c] sm:$0xf] %v4124
        %4157 = vst [vmem:[%s331 + $0x50] sm:$0xf] %v4125
        %4158 = vst [vmem:[%s331 + $0x54] sm:$0xf] %v4126
        %4159 = vst [vmem:[%s331 + $0x58] sm:$0xf] %v4127
        %4160 = vst [vmem:[%s331 + $0x5c] sm:$0xf] %v4128
        %4161 = vst [vmem:[%s331 + $0x60] sm:$0xf] %v4129
        %4162 = vst [vmem:[%s331 + $0x64] sm:$0xf] %v4130
        %4163 = vst [vmem:[%s331 + $0x68] sm:$0xf] %v4131
        %4164 = vst [vmem:[%s331 + $0x6c] sm:$0xf] %v4132
        %4165 = vst [vmem:[%s331 + $0x70] sm:$0xf] %v4133
        %4166 = vst [vmem:[%s331 + $0x74] sm:$0xf] %v4134
        %4167 = vst [vmem:[%s331 + $0x78] sm:$0xf] %v4135
        %4168 = vst [vmem:[%s331 + $0x7c] sm:$0xf] %v4136
        %s4169 = sand.u32 %s185, 1
        %s4170 = scalar_lea.sflag [#allocation4], %s4169
        %s4171 = sand.u32 %s185, 1
        %s4172 = smul.addr %s4171, 128
        %s4173 = scalar_lea.vmem [#allocation8], %s4172
        // Predicated region
        $region61: #{tpu_custom_call.1} parent=47 // pred_check
          %p4174 = pneg %p195
        $region62: #{tpu_custom_call.1} parent=47 // pred_check_branch
          %4176 = sbr.rel (%p4174) target = $region64
        $region63: #{tpu_custom_call.1} parent=47 // pred_region
          %4178 = vsyncadd %s4170, 0
          %s4179 = smul.addr %s25, 32
          %s4180 = smul.addr %s4179, 4
          %s4181 = scalar_lea.hbm %s7, %s4180
          %s4182 = sshll.u32 %s4173, 4
          %s4183 = int_to_ptr.vmem [resolvable:$true] %s4182
          %s4184 = sshll.u32 %s4181, 4
          %s4185 = int_to_ptr.hbm [resolvable:$true] %s4184
          %4190 = dma.vmem_to_hbm [thread:$0]  %s4183, 2048, %s4185, %s4170, 64, 64, 4
        $region64: #{tpu_custom_call.1} parent=47 // pred_fallthru
          _
      $region48: #{tpu_custom_call.1} parent=5 // pred_fallthru
        _
      %p4191 = scmp.le.s32.totalorder 2, %s20
      // Predicated region
      $region65: #{tpu_custom_call.1} parent=5 // pred_check
        %p4192 = pneg %p4191
      $region66: #{tpu_custom_call.1} parent=5 // pred_check_branch
        %4194 = sbr.rel (%p4192) target = $region68
      $region67: #{tpu_custom_call.1} parent=5 // pred_region
        %s4195 = ssub.s32 %s20, 2
        // Predicated region
        $region69: #{tpu_custom_call.1} parent=67 // pred_check
          %p4196 = pneg %p201
        $region70: #{tpu_custom_call.1} parent=67 // pred_check_branch
          %4198 = sbr.rel (%p4196) target = $region72
        $region71: #{tpu_custom_call.1} parent=67 // pred_region
          %s4199 = sand.u32 %s186, 1
          %s4200 = scalar_lea.sflag [#allocation4], %s4199
          %s4201 = sand.u32 %s186, 1
          %s4202 = smul.addr %s4201, 128
          %s4203 = scalar_lea.vmem [#allocation8], %s4202
          %4205 = dma.done %s4200, 2048
        $region72: #{tpu_custom_call.1} parent=67 // pred_fallthru
          _
      $region68: #{tpu_custom_call.1} parent=5 // pred_fallthru
        _
    $region6: #{tpu_custom_call.1} parent=1 // loop_footer
      %s24 = sadd.s32 1, %s20
    $region7: #{tpu_custom_call.1} parent=1 // loop_footer_branch
      %19 = sbr.rel target = $region3
    $region8: #{tpu_custom_call.1} parent=1 // loop_exit
      _
    %4206 = vsyncpa [#allocation3], 1
    %s4207 = scalar_lea.sflag [#allocation3], 1
    %4208 = vsyncpa %s4207, 1
    %4209 = vsyncpa [#allocation6], 1
    %4210 = vsyncpa [#allocation4], 1
    %s4211 = scalar_lea.sflag [#allocation4], 1
    %4212 = vsyncpa %s4211, 1

</llo_original>
